<compile_context>
chip_gen: v7x
topology: tpu7x:2x2x1
jax: 0.10.0
libtpu: 0.0.40
codegen_flags: <defaults>
</compile_context>

<pallas_src>
import math
import numpy as np
import jax
import jax.numpy as jnp
from jax.experimental import pallas as pl
from jax.experimental.pallas import tpu as pltpu

# ----------------------------------------------------------------------------
# Model configuration (small, deterministic)
# ----------------------------------------------------------------------------
LAYERS = [
    {"dim": 8, "depth": 1, "patch_size": 4, "raft_size": 4},
    {"dim": 16, "depth": 1, "patch_size": 2, "raft_size": 4},
]
IN_CHANNELS = 3
IMAGE_SIZE = 16
NUM_CLASSES = 10
TOKEN_EF = 2
CHANNEL_EF = 4
GAP = False
SHORTCUT = True
LN_EPS = 1e-5


# ----------------------------------------------------------------------------
# Raw (PyTorch-layout) parameters
# ----------------------------------------------------------------------------
def init_raw_params(key):
    cnt = [0]

    def nxt():
        cnt[0] += 1
        return jax.random.fold_in(key, cnt[0])

    def lin(fan_in, fan_out):
        return {"w": jax.random.normal(nxt(), (fan_in, fan_out), jnp.float32) * 0.02,
                "b": jnp.zeros((fan_out,), jnp.float32)}

    def ln(d):
        return {"g": jnp.ones((d,), jnp.float32), "b": jnp.zeros((d,), jnp.float32)}

    params = {"levels": [], "heads": []}
    img = IMAGE_SIZE
    in_c = IN_CHANNELS
    last_dim = LAYERS[-1]["dim"]
    for i, layer in enumerate(LAYERS):
        dim, depth, patch, raft = (layer["dim"], layer["depth"],
                                   layer["patch_size"], layer["raft_size"])
        h = w = math.ceil(img / patch)
        lp = {"embed": lin(patch * patch * in_c, dim), "blocks": []}
        for _ in range(depth):
            blk = {}
            for name, sp in (("tokH", h), ("tokW", w)):
                d_tok = sp * raft
                blk[name] = {"ln": ln(dim),
                             "fc1": lin(d_tok, d_tok * TOKEN_EF),
                             "fc2": lin(d_tok * TOKEN_EF, d_tok)}
            blk["ch"] = {"ln": ln(dim),
                         "fc1": lin(dim, dim * CHANNEL_EF),
                         "fc2": lin(dim * CHANNEL_EF, dim)}
            lp["blocks"].append(blk)
        params["levels"].append(lp)

        hp = {"ln": ln(dim)}
        if i != len(LAYERS) - 1:
            hp["fc"] = lin(dim, last_dim * 2)
        params["heads"].append(hp)

        in_c = dim
        img = math.ceil(img / patch)

    cls_in = last_dim if GAP else last_dim * img * img
    params["classifier"] = lin(cls_in, NUM_CLASSES)
    return params


# ----------------------------------------------------------------------------
# One-time preprocessing: fold every einops permutation into the parameters.
# Canonical activation layout per level: flat index t = (hi*w + wi)*dim + c,
# with channel c = r*co + co_i (exactly the PyTorch '(chw co)' channel order).
# ----------------------------------------------------------------------------
def prepare_params(raw):
    assert SHORTCUT and not GAP, "only the configured shortcut/no-GAP path is implemented"
    mats = {}
    vec_list = []

    def addv(name, v):
        vec_list.append((name, np.asarray(v, np.float32).reshape(-1)))

    img = IMAGE_SIZE
    prev_c, prev_h, prev_w = IN_CHANNELS, IMAGE_SIZE, IMAGE_SIZE
    prev_layout = "chw"          # level-0 input is the raw image flattened (c,h,w)
    last = len(LAYERS) - 1
    last_dim = LAYERS[-1]["dim"]

    for li, layer in enumerate(LAYERS):
        dim, depth, patch, raft = (layer["dim"], layer["depth"],
                                   layer["patch_size"], layer["raft_size"])
        h = w = math.ceil(img / patch)
        co = dim // raft
        n_tok = h * w
        T = n_tok * dim
        Cin, Hin, Win = prev_c, prev_h, prev_w
        T_in = Cin * Hin * Win
        lp = raw["levels"][li]

        # ---- dense patch-extract + embed operator: (T_in, T) ----
        W_lin = np.asarray(lp["embed"]["w"], np.float32)      # (patch*patch*Cin, dim)
        b_lin = np.asarray(lp["embed"]["b"], np.float32)
        Wd = np.zeros((T_in, T), np.float32)
        for hi in range(h):
            for wi in range(w):
                p = hi * w + wi
                for p1 in range(patch):
                    for p2 in range(patch):
                        Hi, Wi = hi * patch + p1, wi * patch + p2
                        for ci in range(Cin):
                            if prev_layout == "chw":
                                u = ci * (Hin * Win) + Hi * Win + Wi
                            else:                              # previous level canonical (h,w,c)
                                u = (Hi * Win + Wi) * Cin + ci
                            q = (p1 * patch + p2) * Cin + ci
                            Wd[u, p * dim:(p + 1) * dim] = W_lin[q, :]
        mats[f"emb{li}"] = Wd
        addv(f"embb{li}", np.tile(b_lin, n_tok))

        # ---- per-token averaging operator for all LayerNorms of this level ----
        mats[f"gm{li}"] = np.kron(np.eye(n_tok, dtype=np.float32),
                                  np.full((dim, dim), 1.0 / dim, np.float32))

        # ---- static index maps ----
        def tcan(hi, wi, r, c_):
            return (hi * w + wi) * dim + r * co + c_

        # token-LN gamma is indexed by (co_i*raft + r); canonical channel is r*co + co_i
        tok_ln_idx = np.array([(c % co) * raft + (c // co) for c in range(dim)], np.int64)

        d_tokH, GH = raft * h, co * w
        permH = np.zeros(T, np.int64)
        for c_ in range(co):
            for wi in range(w):
                g = c_ * w + wi
                for r in range(raft):
                    for hi in range(h):
                        permH[g * d_tokH + (r * h + hi)] = tcan(hi, wi, r, c_)

        d_tokW, GW = raft * w, co * h
        permW = np.zeros(T, np.int64)
        for c_ in range(co):
            for hi in range(h):
                g = c_ * h + hi
                for r in range(raft):
                    for wi in range(w):
                        permW[g * d_tokW + (r * w + wi)] = tcan(hi, wi, r, c_)

        permC = np.arange(T, dtype=np.int64)

        def big_mlp(perm, G, W1, b1, W2, b2):
            # block-diagonal MLP in the permuted basis, expressed on the canonical basis
            E1 = W1.shape[1]
            big1 = np.zeros((T, G * E1), np.float32)
            big2 = np.zeros((G * E1, T), np.float32)
            big1[perm, :] = np.kron(np.eye(G, dtype=np.float32), W1)
            big2[:, perm] = np.kron(np.eye(G, dtype=np.float32), W2)
            b1f = np.tile(np.asarray(b1, np.float32), G)
            b2f = np.zeros(T, np.float32)
            b2f[perm] = np.tile(np.asarray(b2, np.float32), G)
            return big1, big2, b1f, b2f

        for bi, blk in enumerate(lp["blocks"]):
            for part, src, perm, G in (("th", "tokH", permH, GH),
                                       ("tw", "tokW", permW, GW),
                                       ("ch", "ch", permC, n_tok)):
                pp = blk[src]
                g_ln = np.asarray(pp["ln"]["g"], np.float32)
                b_ln = np.asarray(pp["ln"]["b"], np.float32)
                if part == "ch":
                    gf, bf = np.tile(g_ln, n_tok), np.tile(b_ln, n_tok)
                else:
                    gf, bf = (np.tile(g_ln[tok_ln_idx], n_tok),
                              np.tile(b_ln[tok_ln_idx], n_tok))
                addv(f"{part}{li}_{bi}_g", gf)
                addv(f"{part}{li}_{bi}_be", bf)
                big1, big2, b1f, b2f = big_mlp(
                    perm, G,
                    np.asarray(pp["fc1"]["w"], np.float32), pp["fc1"]["b"],
                    np.asarray(pp["fc2"]["w"], np.float32), pp["fc2"]["b"])
                mats[f"{part}{li}_{bi}_w1"] = big1
                mats[f"{part}{li}_{bi}_w2"] = big2
                addv(f"{part}{li}_{bi}_b1", b1f)
                addv(f"{part}{li}_{bi}_b2", b2f)

        # ---- head of this level ----
        hd = raw["heads"][li]
        addv(f"hd{li}_g", np.tile(np.asarray(hd["ln"]["g"], np.float32), n_tok))
        addv(f"hd{li}_be", np.tile(np.asarray(hd["ln"]["b"], np.float32), n_tok))
        if li != last:
            Wfc = np.asarray(hd["fc"]["w"], np.float32)        # (dim, 2*last_dim)
            Mavg = np.tile(np.eye(dim, dtype=np.float32), (n_tok, 1)) / n_tok
            mats[f"hd{li}_A"] = (Mavg @ Wfc).astype(np.float32)
            addv(f"hd{li}_fb", hd["fc"]["b"])

        prev_c, prev_h, prev_w = dim, h, w
        prev_layout = "hwc"
        img = h

    # ---- shortcut recombination (broadcast per-channel scale/shift) ----
    n_tok_last = prev_h * prev_w
    T_last = n_tok_last * last_dim
    B = np.tile(np.eye(last_dim, dtype=np.float32), (1, n_tok_last))   # (last_dim, T_last)
    bscale = np.zeros((2 * last_dim, T_last), np.float32)
    bshift = np.zeros((2 * last_dim, T_last), np.float32)
    bscale[:last_dim] = B
    bshift[last_dim:] = B
    mats["bscale"] = bscale
    mats["bshift"] = bshift

    # ---- classifier, rows permuted from PyTorch flatten order (c,h,w) -> canonical (h,w,c) ----
    Wc = np.asarray(raw["classifier"]["w"], np.float32)
    Wc_canon = np.zeros_like(Wc)
    for c in range(last_dim):
        for p in range(n_tok_last):
            Wc_canon[p * last_dim + c, :] = Wc[c * n_tok_last + p, :]
    mats["cls"] = Wc_canon
    addv("cls_b", raw["classifier"]["b"])

    mat_names = list(mats.keys())
    mats_list = [jnp.asarray(mats[n]) for n in mat_names]

    # pack every 1-D parameter vector into one small VMEM-friendly matrix
    vpad = max(v.size for _, v in vec_list)
    vpad = ((vpad + 127) // 128) * 128
    nrow = ((len(vec_list) + 7) // 8) * 8
    packed = np.zeros((nrow, vpad), np.float32)
    vec_meta = {}
    for i, (name, v) in enumerate(vec_list):
        packed[i, :v.size] = v
        vec_meta[name] = (i, int(v.size))
    return mat_names, mats_list, jnp.asarray(packed), vec_meta


# ----------------------------------------------------------------------------
# The single fused kernel
# ----------------------------------------------------------------------------
def build_kernel(mat_names, vec_meta):
    n_mats = len(mat_names)
    last = len(LAYERS) - 1
    inv_sqrt2 = 1.0 / math.sqrt(2.0)

    def kernel(*refs):
        x_ref = refs[0]
        mat_refs = dict(zip(mat_names, refs[1:1 + n_mats]))
        vec_ref = refs[1 + n_mats]
        out_ref = refs[-1]

        def mat(name):
            return mat_refs[name][...]

        def vec(name):
            row, n = vec_meta[name]
            return vec_ref[row:row + 1, :n]

        def mm(a, b):
            return jnp.dot(a, b, preferred_element_type=jnp.float32)

        def gelu(v):  # exact erf GELU (PyTorch nn.GELU default)
            return 0.5 * v * (1.0 + jax.lax.erf(v * inv_sqrt2))

        def group_ln(val, gm, gamma, beta):
            # per-token LayerNorm over channels, via the constant averaging matrix
            mu = mm(val, gm)
            var = mm((val - mu) ** 2, gm)
            return (val - mu) * jax.lax.rsqrt(var + LN_EPS) * gamma + beta

        z = x_ref[...]                       # (batch, C*H*W) canonical activation
        head_outs = []
        feat = None
        for li, layer in enumerate(LAYERS):
            z = mm(z, mat(f"emb{li}")) + vec(f"embb{li}")
            gm = mat(f"gm{li}")
            for bi in range(layer["depth"]):
                for part in ("th", "tw", "ch"):     # PermutedBlock(h), PermutedBlock(w), ChannelBlock
                    pre = f"{part}{li}_{bi}"
                    nrm = group_ln(z, gm, vec(f"{pre}_g"), vec(f"{pre}_be"))
                    hid = gelu(mm(nrm, mat(f"{pre}_w1")) + vec(f"{pre}_b1"))
                    z = z + mm(hid, mat(f"{pre}_w2")) + vec(f"{pre}_b2")
            lno = group_ln(z, gm, vec(f"hd{li}_g"), vec(f"hd{li}_be"))
            if li != last:
                # head: LN -> spatial mean -> Linear, folded into one matrix
                head_outs.append(mm(lno, mat(f"hd{li}_A")) + vec(f"hd{li}_fb"))
            else:
                feat = lno
        # shortcut recombination: scale * feat + shift (broadcast over spatial via matmul)
        for ho in reversed(head_outs):
            feat = mm(ho, mat("bscale")) * feat + mm(ho, mat("bshift"))
        # flatten + classifier (classifier weights pre-permuted to canonical layout)
        out_ref[...] = (mm(feat, mat("cls")) + vec("cls_b")).astype(out_ref.dtype)

    return kernel


def make_forward(mat_names, vec_meta):
    kernel = build_kernel(mat_names, vec_meta)

    def _spec(shape):
        n = len(shape)
        return pl.BlockSpec(tuple(shape), lambda i, _n=n: (0,) * _n)

    def forward(x, mats, vecs):
        bsz = x.shape[0]
        x2d = x.reshape(bsz, -1)             # free row-major (c,h,w) flatten
        in_specs = ([_spec(x2d.shape)]
                    + [_spec(m.shape) for m in mats]
                    + [_spec(vecs.shape)])
        return pl.pallas_call(
            kernel,
            grid=(1,),
            in_specs=in_specs,
            out_specs=_spec((bsz, NUM_CLASSES)),
            out_shape=jax.ShapeDtypeStruct((bsz, NUM_CLASSES), jnp.float32),
            compiler_params=pltpu.CompilerParams(
                dimension_semantics=("arbitrary",)),
        )(x2d, *mats, vecs)

    return forward


if __name__ == "__main__":
    key = jax.random.PRNGKey(0)
    pkey, xkey = jax.random.split(key)
    raw = init_raw_params(pkey)
    mat_names, mats, vecs, vec_meta = prepare_params(raw)
    forward = jax.jit(make_forward(mat_names, vec_meta))

    x = jax.random.normal(xkey, (2, IN_CHANNELS, IMAGE_SIZE, IMAGE_SIZE), jnp.float32)
    logits = forward(x, tuple(mats), vecs)
    logits = jax.block_until_ready(logits)

    assert logits.shape == (2, NUM_CLASSES), logits.shape
    assert bool(jnp.all(jnp.isfinite(logits)))
    print("KERNEL_OK")
</pallas_src>

<mosaic_0001>
module attributes {stable_mosaic.version = 11 : i64} {
  func.func @kernel(%arg0: i32, %arg1: memref<2x768xf32, #tpu.memory_space<vmem>>, %arg2: memref<768x128xf32, #tpu.memory_space<vmem>>, %arg3: memref<128x128xf32, #tpu.memory_space<vmem>>, %arg4: memref<128x256xf32, #tpu.memory_space<vmem>>, %arg5: memref<256x128xf32, #tpu.memory_space<vmem>>, %arg6: memref<128x256xf32, #tpu.memory_space<vmem>>, %arg7: memref<256x128xf32, #tpu.memory_space<vmem>>, %arg8: memref<128x512xf32, #tpu.memory_space<vmem>>, %arg9: memref<512x128xf32, #tpu.memory_space<vmem>>, %arg10: memref<128x32xf32, #tpu.memory_space<vmem>>, %arg11: memref<128x64xf32, #tpu.memory_space<vmem>>, %arg12: memref<64x64xf32, #tpu.memory_space<vmem>>, %arg13: memref<64x128xf32, #tpu.memory_space<vmem>>, %arg14: memref<128x64xf32, #tpu.memory_space<vmem>>, %arg15: memref<64x128xf32, #tpu.memory_space<vmem>>, %arg16: memref<128x64xf32, #tpu.memory_space<vmem>>, %arg17: memref<64x256xf32, #tpu.memory_space<vmem>>, %arg18: memref<256x64xf32, #tpu.memory_space<vmem>>, %arg19: memref<32x64xf32, #tpu.memory_space<vmem>>, %arg20: memref<32x64xf32, #tpu.memory_space<vmem>>, %arg21: memref<64x10xf32, #tpu.memory_space<vmem>>, %arg22: memref<32x512xf32, #tpu.memory_space<vmem>>, %arg23: memref<2x10xf32, #tpu.memory_space<vmem>>) attributes {dimension_semantics = [#tpu.dimension_semantics<arbitrary>], iteration_bounds = array<i64: 1>, scalar_prefetch = 0 : i64, scratch_operands = 0 : i64, tpu.core_type = #tpu.core_type<tc>, window_params = [{pipeline_mode = #tpu.pipeline_mode<synchronous>, transform_indices = @transform_0, window_bounds = array<i64: 2, 768>}, {pipeline_mode = #tpu.pipeline_mode<synchronous>, transform_indices = @transform_1, window_bounds = array<i64: 768, 128>}, {pipeline_mode = #tpu.pipeline_mode<synchronous>, transform_indices = @transform_2, window_bounds = array<i64: 128, 128>}, {pipeline_mode = #tpu.pipeline_mode<synchronous>, transform_indices = @transform_3, window_bounds = array<i64: 128, 256>}, {pipeline_mode = #tpu.pipeline_mode<synchronous>, transform_indices = @transform_4, window_bounds = array<i64: 256, 128>}, {pipeline_mode = #tpu.pipeline_mode<synchronous>, transform_indices = @transform_5, window_bounds = array<i64: 128, 256>}, {pipeline_mode = #tpu.pipeline_mode<synchronous>, transform_indices = @transform_6, window_bounds = array<i64: 256, 128>}, {pipeline_mode = #tpu.pipeline_mode<synchronous>, transform_indices = @transform_7, window_bounds = array<i64: 128, 512>}, {pipeline_mode = #tpu.pipeline_mode<synchronous>, transform_indices = @transform_8, window_bounds = array<i64: 512, 128>}, {pipeline_mode = #tpu.pipeline_mode<synchronous>, transform_indices = @transform_9, window_bounds = array<i64: 128, 32>}, {pipeline_mode = #tpu.pipeline_mode<synchronous>, transform_indices = @transform_10, window_bounds = array<i64: 128, 64>}, {pipeline_mode = #tpu.pipeline_mode<synchronous>, transform_indices = @transform_11, window_bounds = array<i64: 64, 64>}, {pipeline_mode = #tpu.pipeline_mode<synchronous>, transform_indices = @transform_12, window_bounds = array<i64: 64, 128>}, {pipeline_mode = #tpu.pipeline_mode<synchronous>, transform_indices = @transform_13, window_bounds = array<i64: 128, 64>}, {pipeline_mode = #tpu.pipeline_mode<synchronous>, transform_indices = @transform_14, window_bounds = array<i64: 64, 128>}, {pipeline_mode = #tpu.pipeline_mode<synchronous>, transform_indices = @transform_15, window_bounds = array<i64: 128, 64>}, {pipeline_mode = #tpu.pipeline_mode<synchronous>, transform_indices = @transform_16, window_bounds = array<i64: 64, 256>}, {pipeline_mode = #tpu.pipeline_mode<synchronous>, transform_indices = @transform_17, window_bounds = array<i64: 256, 64>}, {pipeline_mode = #tpu.pipeline_mode<synchronous>, transform_indices = @transform_18, window_bounds = array<i64: 32, 64>}, {pipeline_mode = #tpu.pipeline_mode<synchronous>, transform_indices = @transform_19, window_bounds = array<i64: 32, 64>}, {pipeline_mode = #tpu.pipeline_mode<synchronous>, transform_indices = @transform_20, window_bounds = array<i64: 64, 10>}, {pipeline_mode = #tpu.pipeline_mode<synchronous>, transform_indices = @transform_21, window_bounds = array<i64: 32, 512>}, {pipeline_mode = #tpu.pipeline_mode<synchronous>, transform_indices = @transform_22, window_bounds = array<i64: 2, 10>}]} {
    %c0 = arith.constant 0 : index
    %c0_0 = arith.constant 0 : index
    %0 = vector.load %arg1[%c0, %c0_0] : memref<2x768xf32, #tpu.memory_space<vmem>>, vector<2x768xf32>
    %c0_1 = arith.constant 0 : index
    %c0_2 = arith.constant 0 : index
    %1 = vector.load %arg2[%c0_1, %c0_2] : memref<768x128xf32, #tpu.memory_space<vmem>>, vector<768x128xf32>
    %cst = arith.constant dense<0.000000e+00> : vector<2x128xf32>
    %2 = tpu.matmul %0, %1, %cst {dimension_numbers = #tpu.dot_dimension_numbers<[1], [0], [0], [1], [0, 0, 1, 1], [], []>} : vector<2x768xf32>, vector<768x128xf32>, vector<2x128xf32> -> vector<2x128xf32>
    %c0_3 = arith.constant 0 : index
    %c0_4 = arith.constant 0 : index
    %3 = vector.load %arg22[%c0_3, %c0_4] : memref<32x512xf32, #tpu.memory_space<vmem>>, vector<1x128xf32>
    %4 = vector.broadcast %3 : vector<1x128xf32> to vector<2x128xf32>
    %5 = arith.addf %2, %4 : vector<2x128xf32>
    %c0_5 = arith.constant 0 : index
    %c0_6 = arith.constant 0 : index
    %6 = vector.load %arg3[%c0_5, %c0_6] : memref<128x128xf32, #tpu.memory_space<vmem>>, vector<128x128xf32>
    %c1 = arith.constant 1 : index
    %c0_7 = arith.constant 0 : index
    %7 = vector.load %arg22[%c1, %c0_7] : memref<32x512xf32, #tpu.memory_space<vmem>>, vector<1x128xf32>
    %c2 = arith.constant 2 : index
    %c0_8 = arith.constant 0 : index
    %8 = vector.load %arg22[%c2, %c0_8] : memref<32x512xf32, #tpu.memory_space<vmem>>, vector<1x128xf32>
    %cst_9 = arith.constant dense<0.000000e+00> : vector<2x128xf32>
    %9 = tpu.matmul %5, %6, %cst_9 {dimension_numbers = #tpu.dot_dimension_numbers<[1], [0], [0], [1], [0, 0, 1, 1], [], []>} : vector<2x128xf32>, vector<128x128xf32>, vector<2x128xf32> -> vector<2x128xf32>
    %10 = arith.subf %5, %9 : vector<2x128xf32>
    %11 = arith.mulf %10, %10 : vector<2x128xf32>
    %cst_10 = arith.constant dense<0.000000e+00> : vector<2x128xf32>
    %12 = tpu.matmul %11, %6, %cst_10 {dimension_numbers = #tpu.dot_dimension_numbers<[1], [0], [0], [1], [0, 0, 1, 1], [], []>} : vector<2x128xf32>, vector<128x128xf32>, vector<2x128xf32> -> vector<2x128xf32>
    %13 = arith.subf %5, %9 : vector<2x128xf32>
    %cst_11 = arith.constant 9.99999974E-6 : f32
    %14 = vector.broadcast %cst_11 : f32 to vector<2x128xf32>
    %15 = arith.addf %12, %14 : vector<2x128xf32>
    %16 = math.rsqrt %15 : vector<2x128xf32>
    %17 = arith.mulf %13, %16 : vector<2x128xf32>
    %18 = vector.broadcast %7 : vector<1x128xf32> to vector<2x128xf32>
    %19 = arith.mulf %17, %18 : vector<2x128xf32>
    %20 = vector.broadcast %8 : vector<1x128xf32> to vector<2x128xf32>
    %21 = arith.addf %19, %20 : vector<2x128xf32>
    %c0_12 = arith.constant 0 : index
    %c0_13 = arith.constant 0 : index
    %22 = vector.load %arg4[%c0_12, %c0_13] : memref<128x256xf32, #tpu.memory_space<vmem>>, vector<128x256xf32>
    %cst_14 = arith.constant dense<0.000000e+00> : vector<2x256xf32>
    %23 = tpu.matmul %21, %22, %cst_14 {dimension_numbers = #tpu.dot_dimension_numbers<[1], [0], [0], [1], [0, 0, 1, 1], [], []>} : vector<2x128xf32>, vector<128x256xf32>, vector<2x256xf32> -> vector<2x256xf32>
    %c3 = arith.constant 3 : index
    %c0_15 = arith.constant 0 : index
    %24 = vector.load %arg22[%c3, %c0_15] : memref<32x512xf32, #tpu.memory_space<vmem>>, vector<1x256xf32>
    %25 = vector.broadcast %24 : vector<1x256xf32> to vector<2x256xf32>
    %26 = arith.addf %23, %25 : vector<2x256xf32>
    %cst_16 = arith.constant 5.000000e-01 : f32
    %27 = vector.broadcast %cst_16 : f32 to vector<2x256xf32>
    %28 = arith.mulf %27, %26 : vector<2x256xf32>
    %cst_17 = arith.constant 0.707106769 : f32
    %29 = vector.broadcast %cst_17 : f32 to vector<2x256xf32>
    %30 = arith.mulf %26, %29 : vector<2x256xf32>
    %31 = math.erf %30 : vector<2x256xf32>
    %cst_18 = arith.constant 1.000000e+00 : f32
    %32 = vector.broadcast %cst_18 : f32 to vector<2x256xf32>
    %33 = arith.addf %32, %31 : vector<2x256xf32>
    %34 = arith.mulf %28, %33 : vector<2x256xf32>
    %c0_19 = arith.constant 0 : index
    %c0_20 = arith.constant 0 : index
    %35 = vector.load %arg5[%c0_19, %c0_20] : memref<256x128xf32, #tpu.memory_space<vmem>>, vector<256x128xf32>
    %cst_21 = arith.constant dense<0.000000e+00> : vector<2x128xf32>
    %36 = tpu.matmul %34, %35, %cst_21 {dimension_numbers = #tpu.dot_dimension_numbers<[1], [0], [0], [1], [0, 0, 1, 1], [], []>} : vector<2x256xf32>, vector<256x128xf32>, vector<2x128xf32> -> vector<2x128xf32>
    %37 = arith.addf %5, %36 : vector<2x128xf32>
    %c4 = arith.constant 4 : index
    %c0_22 = arith.constant 0 : index
    %38 = vector.load %arg22[%c4, %c0_22] : memref<32x512xf32, #tpu.memory_space<vmem>>, vector<1x128xf32>
    %39 = vector.broadcast %38 : vector<1x128xf32> to vector<2x128xf32>
    %40 = arith.addf %37, %39 : vector<2x128xf32>
    %c5 = arith.constant 5 : index
    %c0_23 = arith.constant 0 : index
    %41 = vector.load %arg22[%c5, %c0_23] : memref<32x512xf32, #tpu.memory_space<vmem>>, vector<1x128xf32>
    %c6 = arith.constant 6 : index
    %c0_24 = arith.constant 0 : index
    %42 = vector.load %arg22[%c6, %c0_24] : memref<32x512xf32, #tpu.memory_space<vmem>>, vector<1x128xf32>
    %cst_25 = arith.constant dense<0.000000e+00> : vector<2x128xf32>
    %43 = tpu.matmul %40, %6, %cst_25 {dimension_numbers = #tpu.dot_dimension_numbers<[1], [0], [0], [1], [0, 0, 1, 1], [], []>} : vector<2x128xf32>, vector<128x128xf32>, vector<2x128xf32> -> vector<2x128xf32>
    %44 = arith.subf %40, %43 : vector<2x128xf32>
    %45 = arith.mulf %44, %44 : vector<2x128xf32>
    %cst_26 = arith.constant dense<0.000000e+00> : vector<2x128xf32>
    %46 = tpu.matmul %45, %6, %cst_26 {dimension_numbers = #tpu.dot_dimension_numbers<[1], [0], [0], [1], [0, 0, 1, 1], [], []>} : vector<2x128xf32>, vector<128x128xf32>, vector<2x128xf32> -> vector<2x128xf32>
    %47 = arith.subf %40, %43 : vector<2x128xf32>
    %cst_27 = arith.constant 9.99999974E-6 : f32
    %48 = vector.broadcast %cst_27 : f32 to vector<2x128xf32>
    %49 = arith.addf %46, %48 : vector<2x128xf32>
    %50 = math.rsqrt %49 : vector<2x128xf32>
    %51 = arith.mulf %47, %50 : vector<2x128xf32>
    %52 = vector.broadcast %41 : vector<1x128xf32> to vector<2x128xf32>
    %53 = arith.mulf %51, %52 : vector<2x128xf32>
    %54 = vector.broadcast %42 : vector<1x128xf32> to vector<2x128xf32>
    %55 = arith.addf %53, %54 : vector<2x128xf32>
    %c0_28 = arith.constant 0 : index
    %c0_29 = arith.constant 0 : index
    %56 = vector.load %arg6[%c0_28, %c0_29] : memref<128x256xf32, #tpu.memory_space<vmem>>, vector<128x256xf32>
    %cst_30 = arith.constant dense<0.000000e+00> : vector<2x256xf32>
    %57 = tpu.matmul %55, %56, %cst_30 {dimension_numbers = #tpu.dot_dimension_numbers<[1], [0], [0], [1], [0, 0, 1, 1], [], []>} : vector<2x128xf32>, vector<128x256xf32>, vector<2x256xf32> -> vector<2x256xf32>
    %c7 = arith.constant 7 : index
    %c0_31 = arith.constant 0 : index
    %58 = vector.load %arg22[%c7, %c0_31] : memref<32x512xf32, #tpu.memory_space<vmem>>, vector<1x256xf32>
    %59 = vector.broadcast %58 : vector<1x256xf32> to vector<2x256xf32>
    %60 = arith.addf %57, %59 : vector<2x256xf32>
    %cst_32 = arith.constant 5.000000e-01 : f32
    %61 = vector.broadcast %cst_32 : f32 to vector<2x256xf32>
    %62 = arith.mulf %61, %60 : vector<2x256xf32>
    %cst_33 = arith.constant 0.707106769 : f32
    %63 = vector.broadcast %cst_33 : f32 to vector<2x256xf32>
    %64 = arith.mulf %60, %63 : vector<2x256xf32>
    %65 = math.erf %64 : vector<2x256xf32>
    %cst_34 = arith.constant 1.000000e+00 : f32
    %66 = vector.broadcast %cst_34 : f32 to vector<2x256xf32>
    %67 = arith.addf %66, %65 : vector<2x256xf32>
    %68 = arith.mulf %62, %67 : vector<2x256xf32>
    %c0_35 = arith.constant 0 : index
    %c0_36 = arith.constant 0 : index
    %69 = vector.load %arg7[%c0_35, %c0_36] : memref<256x128xf32, #tpu.memory_space<vmem>>, vector<256x128xf32>
    %cst_37 = arith.constant dense<0.000000e+00> : vector<2x128xf32>
    %70 = tpu.matmul %68, %69, %cst_37 {dimension_numbers = #tpu.dot_dimension_numbers<[1], [0], [0], [1], [0, 0, 1, 1], [], []>} : vector<2x256xf32>, vector<256x128xf32>, vector<2x128xf32> -> vector<2x128xf32>
    %71 = arith.addf %40, %70 : vector<2x128xf32>
    %c8 = arith.constant 8 : index
    %c0_38 = arith.constant 0 : index
    %72 = vector.load %arg22[%c8, %c0_38] : memref<32x512xf32, #tpu.memory_space<vmem>>, vector<1x128xf32>
    %73 = vector.broadcast %72 : vector<1x128xf32> to vector<2x128xf32>
    %74 = arith.addf %71, %73 : vector<2x128xf32>
    %c9 = arith.constant 9 : index
    %c0_39 = arith.constant 0 : index
    %75 = vector.load %arg22[%c9, %c0_39] : memref<32x512xf32, #tpu.memory_space<vmem>>, vector<1x128xf32>
    %c10 = arith.constant 10 : index
    %c0_40 = arith.constant 0 : index
    %76 = vector.load %arg22[%c10, %c0_40] : memref<32x512xf32, #tpu.memory_space<vmem>>, vector<1x128xf32>
    %cst_41 = arith.constant dense<0.000000e+00> : vector<2x128xf32>
    %77 = tpu.matmul %74, %6, %cst_41 {dimension_numbers = #tpu.dot_dimension_numbers<[1], [0], [0], [1], [0, 0, 1, 1], [], []>} : vector<2x128xf32>, vector<128x128xf32>, vector<2x128xf32> -> vector<2x128xf32>
    %78 = arith.subf %74, %77 : vector<2x128xf32>
    %79 = arith.mulf %78, %78 : vector<2x128xf32>
    %cst_42 = arith.constant dense<0.000000e+00> : vector<2x128xf32>
    %80 = tpu.matmul %79, %6, %cst_42 {dimension_numbers = #tpu.dot_dimension_numbers<[1], [0], [0], [1], [0, 0, 1, 1], [], []>} : vector<2x128xf32>, vector<128x128xf32>, vector<2x128xf32> -> vector<2x128xf32>
    %81 = arith.subf %74, %77 : vector<2x128xf32>
    %cst_43 = arith.constant 9.99999974E-6 : f32
    %82 = vector.broadcast %cst_43 : f32 to vector<2x128xf32>
    %83 = arith.addf %80, %82 : vector<2x128xf32>
    %84 = math.rsqrt %83 : vector<2x128xf32>
    %85 = arith.mulf %81, %84 : vector<2x128xf32>
    %86 = vector.broadcast %75 : vector<1x128xf32> to vector<2x128xf32>
    %87 = arith.mulf %85, %86 : vector<2x128xf32>
    %88 = vector.broadcast %76 : vector<1x128xf32> to vector<2x128xf32>
    %89 = arith.addf %87, %88 : vector<2x128xf32>
    %c0_44 = arith.constant 0 : index
    %c0_45 = arith.constant 0 : index
    %90 = vector.load %arg8[%c0_44, %c0_45] : memref<128x512xf32, #tpu.memory_space<vmem>>, vector<128x512xf32>
    %cst_46 = arith.constant dense<0.000000e+00> : vector<2x512xf32>
    %91 = tpu.matmul %89, %90, %cst_46 {dimension_numbers = #tpu.dot_dimension_numbers<[1], [0], [0], [1], [0, 0, 1, 1], [], []>} : vector<2x128xf32>, vector<128x512xf32>, vector<2x512xf32> -> vector<2x512xf32>
    %c11 = arith.constant 11 : index
    %c0_47 = arith.constant 0 : index
    %92 = vector.load %arg22[%c11, %c0_47] : memref<32x512xf32, #tpu.memory_space<vmem>>, vector<1x512xf32>
    %93 = vector.broadcast %92 : vector<1x512xf32> to vector<2x512xf32>
    %94 = arith.addf %91, %93 : vector<2x512xf32>
    %cst_48 = arith.constant 5.000000e-01 : f32
    %95 = vector.broadcast %cst_48 : f32 to vector<2x512xf32>
    %96 = arith.mulf %95, %94 : vector<2x512xf32>
    %cst_49 = arith.constant 0.707106769 : f32
    %97 = vector.broadcast %cst_49 : f32 to vector<2x512xf32>
    %98 = arith.mulf %94, %97 : vector<2x512xf32>
    %99 = math.erf %98 : vector<2x512xf32>
    %cst_50 = arith.constant 1.000000e+00 : f32
    %100 = vector.broadcast %cst_50 : f32 to vector<2x512xf32>
    %101 = arith.addf %100, %99 : vector<2x512xf32>
    %102 = arith.mulf %96, %101 : vector<2x512xf32>
    %c0_51 = arith.constant 0 : index
    %c0_52 = arith.constant 0 : index
    %103 = vector.load %arg9[%c0_51, %c0_52] : memref<512x128xf32, #tpu.memory_space<vmem>>, vector<512x128xf32>
    %cst_53 = arith.constant dense<0.000000e+00> : vector<2x128xf32>
    %104 = tpu.matmul %102, %103, %cst_53 {dimension_numbers = #tpu.dot_dimension_numbers<[1], [0], [0], [1], [0, 0, 1, 1], [], []>} : vector<2x512xf32>, vector<512x128xf32>, vector<2x128xf32> -> vector<2x128xf32>
    %105 = arith.addf %74, %104 : vector<2x128xf32>
    %c12 = arith.constant 12 : index
    %c0_54 = arith.constant 0 : index
    %106 = vector.load %arg22[%c12, %c0_54] : memref<32x512xf32, #tpu.memory_space<vmem>>, vector<1x128xf32>
    %107 = vector.broadcast %106 : vector<1x128xf32> to vector<2x128xf32>
    %108 = arith.addf %105, %107 : vector<2x128xf32>
    %c13 = arith.constant 13 : index
    %c0_55 = arith.constant 0 : index
    %109 = vector.load %arg22[%c13, %c0_55] : memref<32x512xf32, #tpu.memory_space<vmem>>, vector<1x128xf32>
    %c14 = arith.constant 14 : index
    %c0_56 = arith.constant 0 : index
    %110 = vector.load %arg22[%c14, %c0_56] : memref<32x512xf32, #tpu.memory_space<vmem>>, vector<1x128xf32>
    %cst_57 = arith.constant dense<0.000000e+00> : vector<2x128xf32>
    %111 = tpu.matmul %108, %6, %cst_57 {dimension_numbers = #tpu.dot_dimension_numbers<[1], [0], [0], [1], [0, 0, 1, 1], [], []>} : vector<2x128xf32>, vector<128x128xf32>, vector<2x128xf32> -> vector<2x128xf32>
    %112 = arith.subf %108, %111 : vector<2x128xf32>
    %113 = arith.mulf %112, %112 : vector<2x128xf32>
    %cst_58 = arith.constant dense<0.000000e+00> : vector<2x128xf32>
    %114 = tpu.matmul %113, %6, %cst_58 {dimension_numbers = #tpu.dot_dimension_numbers<[1], [0], [0], [1], [0, 0, 1, 1], [], []>} : vector<2x128xf32>, vector<128x128xf32>, vector<2x128xf32> -> vector<2x128xf32>
    %115 = arith.subf %108, %111 : vector<2x128xf32>
    %cst_59 = arith.constant 9.99999974E-6 : f32
    %116 = vector.broadcast %cst_59 : f32 to vector<2x128xf32>
    %117 = arith.addf %114, %116 : vector<2x128xf32>
    %118 = math.rsqrt %117 : vector<2x128xf32>
    %119 = arith.mulf %115, %118 : vector<2x128xf32>
    %120 = vector.broadcast %109 : vector<1x128xf32> to vector<2x128xf32>
    %121 = arith.mulf %119, %120 : vector<2x128xf32>
    %122 = vector.broadcast %110 : vector<1x128xf32> to vector<2x128xf32>
    %123 = arith.addf %121, %122 : vector<2x128xf32>
    %c0_60 = arith.constant 0 : index
    %c0_61 = arith.constant 0 : index
    %124 = vector.load %arg10[%c0_60, %c0_61] : memref<128x32xf32, #tpu.memory_space<vmem>>, vector<128x32xf32>
    %cst_62 = arith.constant dense<0.000000e+00> : vector<2x32xf32>
    %125 = tpu.matmul %123, %124, %cst_62 {dimension_numbers = #tpu.dot_dimension_numbers<[1], [0], [0], [1], [0, 0, 1, 1], [], []>} : vector<2x128xf32>, vector<128x32xf32>, vector<2x32xf32> -> vector<2x32xf32>
    %c15 = arith.constant 15 : index
    %c0_63 = arith.constant 0 : index
    %126 = vector.load %arg22[%c15, %c0_63] : memref<32x512xf32, #tpu.memory_space<vmem>>, vector<1x32xf32>
    %127 = vector.broadcast %126 : vector<1x32xf32> to vector<2x32xf32>
    %128 = arith.addf %125, %127 : vector<2x32xf32>
    %c0_64 = arith.constant 0 : index
    %c0_65 = arith.constant 0 : index
    %129 = vector.load %arg11[%c0_64, %c0_65] : memref<128x64xf32, #tpu.memory_space<vmem>>, vector<128x64xf32>
    %cst_66 = arith.constant dense<0.000000e+00> : vector<2x64xf32>
    %130 = tpu.matmul %108, %129, %cst_66 {dimension_numbers = #tpu.dot_dimension_numbers<[1], [0], [0], [1], [0, 0, 1, 1], [], []>} : vector<2x128xf32>, vector<128x64xf32>, vector<2x64xf32> -> vector<2x64xf32>
    %c16 = arith.constant 16 : index
    %c0_67 = arith.constant 0 : index
    %131 = vector.load %arg22[%c16, %c0_67] : memref<32x512xf32, #tpu.memory_space<vmem>>, vector<1x64xf32>
    %132 = vector.broadcast %131 : vector<1x64xf32> to vector<2x64xf32>
    %133 = arith.addf %130, %132 : vector<2x64xf32>
    %c0_68 = arith.constant 0 : index
    %c0_69 = arith.constant 0 : index
    %134 = vector.load %arg12[%c0_68, %c0_69] : memref<64x64xf32, #tpu.memory_space<vmem>>, vector<64x64xf32>
    %c17 = arith.constant 17 : index
    %c0_70 = arith.constant 0 : index
    %135 = vector.load %arg22[%c17, %c0_70] : memref<32x512xf32, #tpu.memory_space<vmem>>, vector<1x64xf32>
    %c18 = arith.constant 18 : index
    %c0_71 = arith.constant 0 : index
    %136 = vector.load %arg22[%c18, %c0_71] : memref<32x512xf32, #tpu.memory_space<vmem>>, vector<1x64xf32>
    %cst_72 = arith.constant dense<0.000000e+00> : vector<2x64xf32>
    %137 = tpu.matmul %133, %134, %cst_72 {dimension_numbers = #tpu.dot_dimension_numbers<[1], [0], [0], [1], [0, 0, 1, 1], [], []>} : vector<2x64xf32>, vector<64x64xf32>, vector<2x64xf32> -> vector<2x64xf32>
    %138 = arith.subf %133, %137 : vector<2x64xf32>
    %139 = arith.mulf %138, %138 : vector<2x64xf32>
    %cst_73 = arith.constant dense<0.000000e+00> : vector<2x64xf32>
    %140 = tpu.matmul %139, %134, %cst_73 {dimension_numbers = #tpu.dot_dimension_numbers<[1], [0], [0], [1], [0, 0, 1, 1], [], []>} : vector<2x64xf32>, vector<64x64xf32>, vector<2x64xf32> -> vector<2x64xf32>
    %141 = arith.subf %133, %137 : vector<2x64xf32>
    %cst_74 = arith.constant 9.99999974E-6 : f32
    %142 = vector.broadcast %cst_74 : f32 to vector<2x64xf32>
    %143 = arith.addf %140, %142 : vector<2x64xf32>
    %144 = math.rsqrt %143 : vector<2x64xf32>
    %145 = arith.mulf %141, %144 : vector<2x64xf32>
    %146 = vector.broadcast %135 : vector<1x64xf32> to vector<2x64xf32>
    %147 = arith.mulf %145, %146 : vector<2x64xf32>
    %148 = vector.broadcast %136 : vector<1x64xf32> to vector<2x64xf32>
    %149 = arith.addf %147, %148 : vector<2x64xf32>
    %c0_75 = arith.constant 0 : index
    %c0_76 = arith.constant 0 : index
    %150 = vector.load %arg13[%c0_75, %c0_76] : memref<64x128xf32, #tpu.memory_space<vmem>>, vector<64x128xf32>
    %cst_77 = arith.constant dense<0.000000e+00> : vector<2x128xf32>
    %151 = tpu.matmul %149, %150, %cst_77 {dimension_numbers = #tpu.dot_dimension_numbers<[1], [0], [0], [1], [0, 0, 1, 1], [], []>} : vector<2x64xf32>, vector<64x128xf32>, vector<2x128xf32> -> vector<2x128xf32>
    %c19 = arith.constant 19 : index
    %c0_78 = arith.constant 0 : index
    %152 = vector.load %arg22[%c19, %c0_78] : memref<32x512xf32, #tpu.memory_space<vmem>>, vector<1x128xf32>
    %153 = vector.broadcast %152 : vector<1x128xf32> to vector<2x128xf32>
    %154 = arith.addf %151, %153 : vector<2x128xf32>
    %cst_79 = arith.constant 5.000000e-01 : f32
    %155 = vector.broadcast %cst_79 : f32 to vector<2x128xf32>
    %156 = arith.mulf %155, %154 : vector<2x128xf32>
    %cst_80 = arith.constant 0.707106769 : f32
    %157 = vector.broadcast %cst_80 : f32 to vector<2x128xf32>
    %158 = arith.mulf %154, %157 : vector<2x128xf32>
    %159 = math.erf %158 : vector<2x128xf32>
    %cst_81 = arith.constant 1.000000e+00 : f32
    %160 = vector.broadcast %cst_81 : f32 to vector<2x128xf32>
    %161 = arith.addf %160, %159 : vector<2x128xf32>
    %162 = arith.mulf %156, %161 : vector<2x128xf32>
    %c0_82 = arith.constant 0 : index
    %c0_83 = arith.constant 0 : index
    %163 = vector.load %arg14[%c0_82, %c0_83] : memref<128x64xf32, #tpu.memory_space<vmem>>, vector<128x64xf32>
    %cst_84 = arith.constant dense<0.000000e+00> : vector<2x64xf32>
    %164 = tpu.matmul %162, %163, %cst_84 {dimension_numbers = #tpu.dot_dimension_numbers<[1], [0], [0], [1], [0, 0, 1, 1], [], []>} : vector<2x128xf32>, vector<128x64xf32>, vector<2x64xf32> -> vector<2x64xf32>
    %165 = arith.addf %133, %164 : vector<2x64xf32>
    %c20 = arith.constant 20 : index
    %c0_85 = arith.constant 0 : index
    %166 = vector.load %arg22[%c20, %c0_85] : memref<32x512xf32, #tpu.memory_space<vmem>>, vector<1x64xf32>
    %167 = vector.broadcast %166 : vector<1x64xf32> to vector<2x64xf32>
    %168 = arith.addf %165, %167 : vector<2x64xf32>
    %c21 = arith.constant 21 : index
    %c0_86 = arith.constant 0 : index
    %169 = vector.load %arg22[%c21, %c0_86] : memref<32x512xf32, #tpu.memory_space<vmem>>, vector<1x64xf32>
    %c22 = arith.constant 22 : index
    %c0_87 = arith.constant 0 : index
    %170 = vector.load %arg22[%c22, %c0_87] : memref<32x512xf32, #tpu.memory_space<vmem>>, vector<1x64xf32>
    %cst_88 = arith.constant dense<0.000000e+00> : vector<2x64xf32>
    %171 = tpu.matmul %168, %134, %cst_88 {dimension_numbers = #tpu.dot_dimension_numbers<[1], [0], [0], [1], [0, 0, 1, 1], [], []>} : vector<2x64xf32>, vector<64x64xf32>, vector<2x64xf32> -> vector<2x64xf32>
    %172 = arith.subf %168, %171 : vector<2x64xf32>
    %173 = arith.mulf %172, %172 : vector<2x64xf32>
    %cst_89 = arith.constant dense<0.000000e+00> : vector<2x64xf32>
    %174 = tpu.matmul %173, %134, %cst_89 {dimension_numbers = #tpu.dot_dimension_numbers<[1], [0], [0], [1], [0, 0, 1, 1], [], []>} : vector<2x64xf32>, vector<64x64xf32>, vector<2x64xf32> -> vector<2x64xf32>
    %175 = arith.subf %168, %171 : vector<2x64xf32>
    %cst_90 = arith.constant 9.99999974E-6 : f32
    %176 = vector.broadcast %cst_90 : f32 to vector<2x64xf32>
    %177 = arith.addf %174, %176 : vector<2x64xf32>
    %178 = math.rsqrt %177 : vector<2x64xf32>
    %179 = arith.mulf %175, %178 : vector<2x64xf32>
    %180 = vector.broadcast %169 : vector<1x64xf32> to vector<2x64xf32>
    %181 = arith.mulf %179, %180 : vector<2x64xf32>
    %182 = vector.broadcast %170 : vector<1x64xf32> to vector<2x64xf32>
    %183 = arith.addf %181, %182 : vector<2x64xf32>
    %c0_91 = arith.constant 0 : index
    %c0_92 = arith.constant 0 : index
    %184 = vector.load %arg15[%c0_91, %c0_92] : memref<64x128xf32, #tpu.memory_space<vmem>>, vector<64x128xf32>
    %cst_93 = arith.constant dense<0.000000e+00> : vector<2x128xf32>
    %185 = tpu.matmul %183, %184, %cst_93 {dimension_numbers = #tpu.dot_dimension_numbers<[1], [0], [0], [1], [0, 0, 1, 1], [], []>} : vector<2x64xf32>, vector<64x128xf32>, vector<2x128xf32> -> vector<2x128xf32>
    %c23 = arith.constant 23 : index
    %c0_94 = arith.constant 0 : index
    %186 = vector.load %arg22[%c23, %c0_94] : memref<32x512xf32, #tpu.memory_space<vmem>>, vector<1x128xf32>
    %187 = vector.broadcast %186 : vector<1x128xf32> to vector<2x128xf32>
    %188 = arith.addf %185, %187 : vector<2x128xf32>
    %cst_95 = arith.constant 5.000000e-01 : f32
    %189 = vector.broadcast %cst_95 : f32 to vector<2x128xf32>
    %190 = arith.mulf %189, %188 : vector<2x128xf32>
    %cst_96 = arith.constant 0.707106769 : f32
    %191 = vector.broadcast %cst_96 : f32 to vector<2x128xf32>
    %192 = arith.mulf %188, %191 : vector<2x128xf32>
    %193 = math.erf %192 : vector<2x128xf32>
    %cst_97 = arith.constant 1.000000e+00 : f32
    %194 = vector.broadcast %cst_97 : f32 to vector<2x128xf32>
    %195 = arith.addf %194, %193 : vector<2x128xf32>
    %196 = arith.mulf %190, %195 : vector<2x128xf32>
    %c0_98 = arith.constant 0 : index
    %c0_99 = arith.constant 0 : index
    %197 = vector.load %arg16[%c0_98, %c0_99] : memref<128x64xf32, #tpu.memory_space<vmem>>, vector<128x64xf32>
    %cst_100 = arith.constant dense<0.000000e+00> : vector<2x64xf32>
    %198 = tpu.matmul %196, %197, %cst_100 {dimension_numbers = #tpu.dot_dimension_numbers<[1], [0], [0], [1], [0, 0, 1, 1], [], []>} : vector<2x128xf32>, vector<128x64xf32>, vector<2x64xf32> -> vector<2x64xf32>
    %199 = arith.addf %168, %198 : vector<2x64xf32>
    %c24 = arith.constant 24 : index
    %c0_101 = arith.constant 0 : index
    %200 = vector.load %arg22[%c24, %c0_101] : memref<32x512xf32, #tpu.memory_space<vmem>>, vector<1x64xf32>
    %201 = vector.broadcast %200 : vector<1x64xf32> to vector<2x64xf32>
    %202 = arith.addf %199, %201 : vector<2x64xf32>
    %c25 = arith.constant 25 : index
    %c0_102 = arith.constant 0 : index
    %203 = vector.load %arg22[%c25, %c0_102] : memref<32x512xf32, #tpu.memory_space<vmem>>, vector<1x64xf32>
    %c26 = arith.constant 26 : index
    %c0_103 = arith.constant 0 : index
    %204 = vector.load %arg22[%c26, %c0_103] : memref<32x512xf32, #tpu.memory_space<vmem>>, vector<1x64xf32>
    %cst_104 = arith.constant dense<0.000000e+00> : vector<2x64xf32>
    %205 = tpu.matmul %202, %134, %cst_104 {dimension_numbers = #tpu.dot_dimension_numbers<[1], [0], [0], [1], [0, 0, 1, 1], [], []>} : vector<2x64xf32>, vector<64x64xf32>, vector<2x64xf32> -> vector<2x64xf32>
    %206 = arith.subf %202, %205 : vector<2x64xf32>
    %207 = arith.mulf %206, %206 : vector<2x64xf32>
    %cst_105 = arith.constant dense<0.000000e+00> : vector<2x64xf32>
    %208 = tpu.matmul %207, %134, %cst_105 {dimension_numbers = #tpu.dot_dimension_numbers<[1], [0], [0], [1], [0, 0, 1, 1], [], []>} : vector<2x64xf32>, vector<64x64xf32>, vector<2x64xf32> -> vector<2x64xf32>
    %209 = arith.subf %202, %205 : vector<2x64xf32>
    %cst_106 = arith.constant 9.99999974E-6 : f32
    %210 = vector.broadcast %cst_106 : f32 to vector<2x64xf32>
    %211 = arith.addf %208, %210 : vector<2x64xf32>
    %212 = math.rsqrt %211 : vector<2x64xf32>
    %213 = arith.mulf %209, %212 : vector<2x64xf32>
    %214 = vector.broadcast %203 : vector<1x64xf32> to vector<2x64xf32>
    %215 = arith.mulf %213, %214 : vector<2x64xf32>
    %216 = vector.broadcast %204 : vector<1x64xf32> to vector<2x64xf32>
    %217 = arith.addf %215, %216 : vector<2x64xf32>
    %c0_107 = arith.constant 0 : index
    %c0_108 = arith.constant 0 : index
    %218 = vector.load %arg17[%c0_107, %c0_108] : memref<64x256xf32, #tpu.memory_space<vmem>>, vector<64x256xf32>
    %cst_109 = arith.constant dense<0.000000e+00> : vector<2x256xf32>
    %219 = tpu.matmul %217, %218, %cst_109 {dimension_numbers = #tpu.dot_dimension_numbers<[1], [0], [0], [1], [0, 0, 1, 1], [], []>} : vector<2x64xf32>, vector<64x256xf32>, vector<2x256xf32> -> vector<2x256xf32>
    %c27 = arith.constant 27 : index
    %c0_110 = arith.constant 0 : index
    %220 = vector.load %arg22[%c27, %c0_110] : memref<32x512xf32, #tpu.memory_space<vmem>>, vector<1x256xf32>
    %221 = vector.broadcast %220 : vector<1x256xf32> to vector<2x256xf32>
    %222 = arith.addf %219, %221 : vector<2x256xf32>
    %cst_111 = arith.constant 5.000000e-01 : f32
    %223 = vector.broadcast %cst_111 : f32 to vector<2x256xf32>
    %224 = arith.mulf %223, %222 : vector<2x256xf32>
    %cst_112 = arith.constant 0.707106769 : f32
    %225 = vector.broadcast %cst_112 : f32 to vector<2x256xf32>
    %226 = arith.mulf %222, %225 : vector<2x256xf32>
    %227 = math.erf %226 : vector<2x256xf32>
    %cst_113 = arith.constant 1.000000e+00 : f32
    %228 = vector.broadcast %cst_113 : f32 to vector<2x256xf32>
    %229 = arith.addf %228, %227 : vector<2x256xf32>
    %230 = arith.mulf %224, %229 : vector<2x256xf32>
    %c0_114 = arith.constant 0 : index
    %c0_115 = arith.constant 0 : index
    %231 = vector.load %arg18[%c0_114, %c0_115] : memref<256x64xf32, #tpu.memory_space<vmem>>, vector<256x64xf32>
    %cst_116 = arith.constant dense<0.000000e+00> : vector<2x64xf32>
    %232 = tpu.matmul %230, %231, %cst_116 {dimension_numbers = #tpu.dot_dimension_numbers<[1], [0], [0], [1], [0, 0, 1, 1], [], []>} : vector<2x256xf32>, vector<256x64xf32>, vector<2x64xf32> -> vector<2x64xf32>
    %233 = arith.addf %202, %232 : vector<2x64xf32>
    %c28 = arith.constant 28 : index
    %c0_117 = arith.constant 0 : index
    %234 = vector.load %arg22[%c28, %c0_117] : memref<32x512xf32, #tpu.memory_space<vmem>>, vector<1x64xf32>
    %235 = vector.broadcast %234 : vector<1x64xf32> to vector<2x64xf32>
    %236 = arith.addf %233, %235 : vector<2x64xf32>
    %c29 = arith.constant 29 : index
    %c0_118 = arith.constant 0 : index
    %237 = vector.load %arg22[%c29, %c0_118] : memref<32x512xf32, #tpu.memory_space<vmem>>, vector<1x64xf32>
    %c30 = arith.constant 30 : index
    %c0_119 = arith.constant 0 : index
    %238 = vector.load %arg22[%c30, %c0_119] : memref<32x512xf32, #tpu.memory_space<vmem>>, vector<1x64xf32>
    %cst_120 = arith.constant dense<0.000000e+00> : vector<2x64xf32>
    %239 = tpu.matmul %236, %134, %cst_120 {dimension_numbers = #tpu.dot_dimension_numbers<[1], [0], [0], [1], [0, 0, 1, 1], [], []>} : vector<2x64xf32>, vector<64x64xf32>, vector<2x64xf32> -> vector<2x64xf32>
    %240 = arith.subf %236, %239 : vector<2x64xf32>
    %241 = arith.mulf %240, %240 : vector<2x64xf32>
    %cst_121 = arith.constant dense<0.000000e+00> : vector<2x64xf32>
    %242 = tpu.matmul %241, %134, %cst_121 {dimension_numbers = #tpu.dot_dimension_numbers<[1], [0], [0], [1], [0, 0, 1, 1], [], []>} : vector<2x64xf32>, vector<64x64xf32>, vector<2x64xf32> -> vector<2x64xf32>
    %243 = arith.subf %236, %239 : vector<2x64xf32>
    %cst_122 = arith.constant 9.99999974E-6 : f32
    %244 = vector.broadcast %cst_122 : f32 to vector<2x64xf32>
    %245 = arith.addf %242, %244 : vector<2x64xf32>
    %246 = math.rsqrt %245 : vector<2x64xf32>
    %247 = arith.mulf %243, %246 : vector<2x64xf32>
    %248 = vector.broadcast %237 : vector<1x64xf32> to vector<2x64xf32>
    %249 = arith.mulf %247, %248 : vector<2x64xf32>
    %250 = vector.broadcast %238 : vector<1x64xf32> to vector<2x64xf32>
    %251 = arith.addf %249, %250 : vector<2x64xf32>
    %c0_123 = arith.constant 0 : index
    %c0_124 = arith.constant 0 : index
    %252 = vector.load %arg19[%c0_123, %c0_124] : memref<32x64xf32, #tpu.memory_space<vmem>>, vector<32x64xf32>
    %cst_125 = arith.constant dense<0.000000e+00> : vector<2x64xf32>
    %253 = tpu.matmul %128, %252, %cst_125 {dimension_numbers = #tpu.dot_dimension_numbers<[1], [0], [0], [1], [0, 0, 1, 1], [], []>} : vector<2x32xf32>, vector<32x64xf32>, vector<2x64xf32> -> vector<2x64xf32>
    %254 = arith.mulf %253, %251 : vector<2x64xf32>
    %c0_126 = arith.constant 0 : index
    %c0_127 = arith.constant 0 : index
    %255 = vector.load %arg20[%c0_126, %c0_127] : memref<32x64xf32, #tpu.memory_space<vmem>>, vector<32x64xf32>
    %cst_128 = arith.constant dense<0.000000e+00> : vector<2x64xf32>
    %256 = tpu.matmul %128, %255, %cst_128 {dimension_numbers = #tpu.dot_dimension_numbers<[1], [0], [0], [1], [0, 0, 1, 1], [], []>} : vector<2x32xf32>, vector<32x64xf32>, vector<2x64xf32> -> vector<2x64xf32>
    %257 = arith.addf %254, %256 : vector<2x64xf32>
    %c0_129 = arith.constant 0 : index
    %c0_130 = arith.constant 0 : index
    %258 = vector.load %arg21[%c0_129, %c0_130] : memref<64x10xf32, #tpu.memory_space<vmem>>, vector<64x10xf32>
    %cst_131 = arith.constant dense<0.000000e+00> : vector<2x10xf32>
    %259 = tpu.matmul %257, %258, %cst_131 {dimension_numbers = #tpu.dot_dimension_numbers<[1], [0], [0], [1], [0, 0, 1, 1], [], []>} : vector<2x64xf32>, vector<64x10xf32>, vector<2x10xf32> -> vector<2x10xf32>
    %c31 = arith.constant 31 : index
    %c0_132 = arith.constant 0 : index
    %260 = vector.load %arg22[%c31, %c0_132] : memref<32x512xf32, #tpu.memory_space<vmem>>, vector<1x10xf32>
    %261 = vector.broadcast %260 : vector<1x10xf32> to vector<2x10xf32>
    %262 = arith.addf %259, %261 : vector<2x10xf32>
    %c0_133 = arith.constant 0 : index
    %c0_134 = arith.constant 0 : index
    %263 = vector.load %arg23[%c0_133, %c0_134] : memref<2x10xf32, #tpu.memory_space<vmem>>, vector<2x10xf32>
    tpu.vector_store %arg23[%c0_133, %c0_134], %262 {strides = array<i32>} : memref<2x10xf32, #tpu.memory_space<vmem>>, vector<2x10xf32>,
    return
  }
  func.func @transform_0(%arg0: i32) -> (i32, i32) {
    %c0_i32 = arith.constant 0 : i32
    %c0_i32_0 = arith.constant 0 : i32
    %c0_i32_1 = arith.constant 0 : i32
    return %c0_i32, %c0_i32_0 : i32, i32
  }
  func.func @transform_1(%arg0: i32) -> (i32, i32) {
    %c0_i32 = arith.constant 0 : i32
    %c0_i32_0 = arith.constant 0 : i32
    %c0_i32_1 = arith.constant 0 : i32
    return %c0_i32, %c0_i32_0 : i32, i32
  }
  func.func @transform_2(%arg0: i32) -> (i32, i32) {
    %c0_i32 = arith.constant 0 : i32
    %c0_i32_0 = arith.constant 0 : i32
    %c0_i32_1 = arith.constant 0 : i32
    return %c0_i32, %c0_i32_0 : i32, i32
  }
  func.func @transform_3(%arg0: i32) -> (i32, i32) {
    %c0_i32 = arith.constant 0 : i32
    %c0_i32_0 = arith.constant 0 : i32
    %c0_i32_1 = arith.constant 0 : i32
    return %c0_i32, %c0_i32_0 : i32, i32
  }
  func.func @transform_4(%arg0: i32) -> (i32, i32) {
    %c0_i32 = arith.constant 0 : i32
    %c0_i32_0 = arith.constant 0 : i32
    %c0_i32_1 = arith.constant 0 : i32
    return %c0_i32, %c0_i32_0 : i32, i32
  }
  func.func @transform_5(%arg0: i32) -> (i32, i32) {
    %c0_i32 = arith.constant 0 : i32
    %c0_i32_0 = arith.constant 0 : i32
    %c0_i32_1 = arith.constant 0 : i32
    return %c0_i32, %c0_i32_0 : i32, i32
  }
  func.func @transform_6(%arg0: i32) -> (i32, i32) {
    %c0_i32 = arith.constant 0 : i32
    %c0_i32_0 = arith.constant 0 : i32
    %c0_i32_1 = arith.constant 0 : i32
    return %c0_i32, %c0_i32_0 : i32, i32
  }
  func.func @transform_7(%arg0: i32) -> (i32, i32) {
    %c0_i32 = arith.constant 0 : i32
    %c0_i32_0 = arith.constant 0 : i32
    %c0_i32_1 = arith.constant 0 : i32
    return %c0_i32, %c0_i32_0 : i32, i32
  }
  func.func @transform_8(%arg0: i32) -> (i32, i32) {
    %c0_i32 = arith.constant 0 : i32
    %c0_i32_0 = arith.constant 0 : i32
    %c0_i32_1 = arith.constant 0 : i32
    return %c0_i32, %c0_i32_0 : i32, i32
  }
  func.func @transform_9(%arg0: i32) -> (i32, i32) {
    %c0_i32 = arith.constant 0 : i32
    %c0_i32_0 = arith.constant 0 : i32
    %c0_i32_1 = arith.constant 0 : i32
    return %c0_i32, %c0_i32_0 : i32, i32
  }
  func.func @transform_10(%arg0: i32) -> (i32, i32) {
    %c0_i32 = arith.constant 0 : i32
    %c0_i32_0 = arith.constant 0 : i32
    %c0_i32_1 = arith.constant 0 : i32
    return %c0_i32, %c0_i32_0 : i32, i32
  }
  func.func @transform_11(%arg0: i32) -> (i32, i32) {
    %c0_i32 = arith.constant 0 : i32
    %c0_i32_0 = arith.constant 0 : i32
    %c0_i32_1 = arith.constant 0 : i32
    return %c0_i32, %c0_i32_0 : i32, i32
  }
  func.func @transform_12(%arg0: i32) -> (i32, i32) {
    %c0_i32 = arith.constant 0 : i32
    %c0_i32_0 = arith.constant 0 : i32
    %c0_i32_1 = arith.constant 0 : i32
    return %c0_i32, %c0_i32_0 : i32, i32
  }
  func.func @transform_13(%arg0: i32) -> (i32, i32) {
    %c0_i32 = arith.constant 0 : i32
    %c0_i32_0 = arith.constant 0 : i32
    %c0_i32_1 = arith.constant 0 : i32
    return %c0_i32, %c0_i32_0 : i32, i32
  }
  func.func @transform_14(%arg0: i32) -> (i32, i32) {
    %c0_i32 = arith.constant 0 : i32
    %c0_i32_0 = arith.constant 0 : i32
    %c0_i32_1 = arith.constant 0 : i32
    return %c0_i32, %c0_i32_0 : i32, i32
  }
  func.func @transform_15(%arg0: i32) -> (i32, i32) {
    %c0_i32 = arith.constant 0 : i32
    %c0_i32_0 = arith.constant 0 : i32
    %c0_i32_1 = arith.constant 0 : i32
    return %c0_i32, %c0_i32_0 : i32, i32
  }
  func.func @transform_16(%arg0: i32) -> (i32, i32) {
    %c0_i32 = arith.constant 0 : i32
    %c0_i32_0 = arith.constant 0 : i32
    %c0_i32_1 = arith.constant 0 : i32
    return %c0_i32, %c0_i32_0 : i32, i32
  }
  func.func @transform_17(%arg0: i32) -> (i32, i32) {
    %c0_i32 = arith.constant 0 : i32
    %c0_i32_0 = arith.constant 0 : i32
    %c0_i32_1 = arith.constant 0 : i32
    return %c0_i32, %c0_i32_0 : i32, i32
  }
  func.func @transform_18(%arg0: i32) -> (i32, i32) {
    %c0_i32 = arith.constant 0 : i32
    %c0_i32_0 = arith.constant 0 : i32
    %c0_i32_1 = arith.constant 0 : i32
    return %c0_i32, %c0_i32_0 : i32, i32
  }
  func.func @transform_19(%arg0: i32) -> (i32, i32) {
    %c0_i32 = arith.constant 0 : i32
    %c0_i32_0 = arith.constant 0 : i32
    %c0_i32_1 = arith.constant 0 : i32
    return %c0_i32, %c0_i32_0 : i32, i32
  }
  func.func @transform_20(%arg0: i32) -> (i32, i32) {
    %c0_i32 = arith.constant 0 : i32
    %c0_i32_0 = arith.constant 0 : i32
    %c0_i32_1 = arith.constant 0 : i32
    return %c0_i32, %c0_i32_0 : i32, i32
  }
  func.func @transform_21(%arg0: i32) -> (i32, i32) {
    %c0_i32 = arith.constant 0 : i32
    %c0_i32_0 = arith.constant 0 : i32
    %c0_i32_1 = arith.constant 0 : i32
    return %c0_i32, %c0_i32_0 : i32, i32
  }
  func.func @transform_22(%arg0: i32) -> (i32, i32) {
    %c0_i32 = arith.constant 0 : i32
    %c0_i32_0 = arith.constant 0 : i32
    %c0_i32_1 = arith.constant 0 : i32
    return %c0_i32, %c0_i32_0 : i32, i32
  }
}

</mosaic_0001>

<llo_original>
// kernel: forward.1
$region0: #{forward.1}
  #allocation0 [shape = 'u32[]', space=smem, size = 0x4, offset = 0x4, fixed_abs, tag = 'smem constant byte address 0x4 - core index']
  #allocation1 [shape = 'u32[144,128]{1,0:T(1,128)}', space=vmem, size = 0x12000, scoped, tag = 'internal scratch']
  %s0 = inlined_call_operand.vmem [shape: f32[2,768], index: 0, kind: input, shape index: {}]
  %s1 = inlined_call_operand.vmem [shape: f32[768,128], index: 1, kind: input, shape index: {}]
  %s2 = inlined_call_operand.hbm [shape: f32[128,128], index: 2, kind: input, shape index: {}]
  %s3 = inlined_call_operand.hbm [shape: f32[128,256], index: 3, kind: input, shape index: {}]
  %s4 = inlined_call_operand.hbm [shape: f32[256,128], index: 4, kind: input, shape index: {}]
  %s5 = inlined_call_operand.hbm [shape: f32[128,256], index: 5, kind: input, shape index: {}]
  %s6 = inlined_call_operand.hbm [shape: f32[256,128], index: 6, kind: input, shape index: {}]
  %s7 = inlined_call_operand.vmem [shape: f32[128,512], index: 7, kind: input, shape index: {}]
  %s8 = inlined_call_operand.hbm [shape: f32[512,128], index: 8, kind: input, shape index: {}]
  %s9 = inlined_call_operand.vmem [shape: f32[128,32], index: 9, kind: input, shape index: {}]
  %s10 = inlined_call_operand.vmem [shape: f32[128,64], index: 10, kind: input, shape index: {}]
  %s11 = inlined_call_operand.hbm [shape: f32[64,64], index: 11, kind: input, shape index: {}]
  %s12 = inlined_call_operand.vmem [shape: f32[64,128], index: 12, kind: input, shape index: {}]
  %s13 = inlined_call_operand.vmem [shape: f32[128,64], index: 13, kind: input, shape index: {}]
  %s14 = inlined_call_operand.hbm [shape: f32[64,128], index: 14, kind: input, shape index: {}]
  %s15 = inlined_call_operand.vmem [shape: f32[128,64], index: 15, kind: input, shape index: {}]
  %s16 = inlined_call_operand.hbm [shape: f32[64,256], index: 16, kind: input, shape index: {}]
  %s17 = inlined_call_operand.vmem [shape: f32[256,64], index: 17, kind: input, shape index: {}]
  %s18 = inlined_call_operand.hbm [shape: f32[32,64], index: 18, kind: input, shape index: {}]
  %s19 = inlined_call_operand.hbm [shape: f32[32,64], index: 19, kind: input, shape index: {}]
  %s20 = inlined_call_operand.vmem [shape: f32[64,10], index: 20, kind: input, shape index: {}]
  %s21 = inlined_call_operand.hbm [shape: f32[32,512], index: 21, kind: input, shape index: {}]
  %s22 = inlined_call_operand.hbm [shape: f32[2,10], index: 22, kind: output, shape index: {}]
  %s23 = sld [smem:[#allocation0]]
  $region146: #{forward.1} parent=0
    _
  %s25 = ssub.s32 1, %s23
  %s26 = scalar_select 0, %s25, %s23
  $region1: #{forward.1} parent=0
    #allocation2 [shape = 'u8[65536]{0}', space=vmem, size = 0x10000, scoped, tag = 'input window, operand 2, single buffered']
    #allocation3 [shape = 's32[1]{0}', space=sflag, size = 0x4, scoped, tag = 'scoped memory for forward.1']
    #allocation4 [shape = 's32[1]{0}', space=sflag, size = 0x4, scoped, tag = 'scoped memory for forward.1']
    #allocation5 [shape = 'u8[131072]{0}', space=vmem, size = 0x20000, scoped, tag = 'input window, operand 3, single buffered']
    #allocation6 [shape = 's32[1]{0}', space=sflag, size = 0x4, scoped, tag = 'scoped memory for forward.1']
    #allocation7 [shape = 'u8[131072]{0}', space=vmem, size = 0x20000, scoped, tag = 'input window, operand 4, single buffered']
    #allocation8 [shape = 'u8[131072]{0}', space=vmem, size = 0x20000, scoped, tag = 'input window, operand 5, single buffered']
    #allocation9 [shape = 's32[1]{0}', space=sflag, size = 0x4, scoped, tag = 'scoped memory for forward.1']
    #allocation10 [shape = 'u8[131072]{0}', space=vmem, size = 0x20000, scoped, tag = 'input window, operand 6, single buffered']
    #allocation11 [shape = 'u8[262144]{0}', space=vmem, size = 0x40000, scoped, tag = 'input window, operand 8, single buffered']
    #allocation12 [shape = 's32[1]{0}', space=sflag, size = 0x4, scoped, tag = 'scoped memory for forward.1']
    #allocation13 [shape = 'u8[32768]{0}', space=vmem, size = 0x8000, scoped, tag = 'input window, operand 11, single buffered']
    #allocation14 [shape = 'u8[32768]{0}', space=vmem, size = 0x8000, scoped, tag = 'input window, operand 14, single buffered']
    #allocation15 [shape = 's32[1]{0}', space=sflag, size = 0x4, scoped, tag = 'scoped memory for forward.1']
    #allocation16 [shape = 'u8[65536]{0}', space=vmem, size = 0x10000, scoped, tag = 'input window, operand 16, single buffered']
    #allocation17 [shape = 'u8[16384]{0}', space=vmem, size = 0x4000, scoped, tag = 'input window, operand 18, single buffered']
    #allocation18 [shape = 's32[1]{0}', space=sflag, size = 0x4, scoped, tag = 'scoped memory for forward.1']
    #allocation19 [shape = 'u8[16384]{0}', space=vmem, size = 0x4000, scoped, tag = 'input window, operand 19, single buffered']
    #allocation20 [shape = 'u8[65536]{0}', space=vmem, size = 0x10000, scoped, tag = 'input window, operand 21, single buffered']
    #allocation21 [shape = 's32[1]{0}', space=sflag, size = 0x4, scoped, tag = 'scoped memory for forward.1']
    #allocation22 [shape = 'u8[1024]{0}', space=vmem, size = 0x400, scoped, tag = 'output window, operand 0, single buffered']
    %27 = vsyncpa [#allocation3], 0
    %28 = vsyncpa [#allocation6], 0
    %29 = vsyncpa [#allocation9], 0
    %30 = vsyncpa [#allocation12], 0
    %31 = vsyncpa [#allocation15], 0
    %32 = vsyncpa [#allocation18], 0
    %33 = vsyncpa [#allocation21], 0
    %34 = vsyncpa [#allocation4], 0
    // Predicated region
    $region2: #{forward.1} parent=1 // pred_check
      _
    $region3: #{forward.1} parent=1 // pred_check_branch
      %36 = sbr.rel (0) target = $region5
    $region4: #{forward.1} parent=1 // pred_region
      _
    $region5: #{forward.1} parent=1 // pred_fallthru
      _
    // Predicated region
    $region6: #{forward.1} parent=1 // pred_check
      _
    $region7: #{forward.1} parent=1 // pred_check_branch
      %38 = sbr.rel (0) target = $region9
    $region8: #{forward.1} parent=1 // pred_region
      _
    $region9: #{forward.1} parent=1 // pred_fallthru
      _
    // Predicated region
    $region10: #{forward.1} parent=1 // pred_check
      _
    $region11: #{forward.1} parent=1 // pred_check_branch
      %40 = sbr.rel (0) target = $region13
    $region12: #{forward.1} parent=1 // pred_region
      %s42 = ssub.s32 2048, 2048
      %43 = vsyncadd [#allocation3], %s42
      %s44 = sshll.u32 [#allocation2], 4
      %s45 = int_to_ptr.vmem [resolvable:$true] %s44
      %50 = dma.hbm_to_vmem [thread:$0]  %s2, 2048, %s45, [#allocation3], 128, 128, 8
    $region13: #{forward.1} parent=1 // pred_fallthru
      _
    // Predicated region
    $region14: #{forward.1} parent=1 // pred_check
      _
    $region15: #{forward.1} parent=1 // pred_check_branch
      %52 = sbr.rel (0) target = $region17
    $region16: #{forward.1} parent=1 // pred_region
      %s54 = ssub.s32 4096, 4096
      %55 = vsyncadd [#allocation6], %s54
      %s56 = sshll.u32 [#allocation5], 4
      %s57 = int_to_ptr.vmem [resolvable:$true] %s56
      %62 = dma.hbm_to_vmem [thread:$0]  %s3, 4096, %s57, [#allocation6], 256, 256, 16
    $region17: #{forward.1} parent=1 // pred_fallthru
      _
    // Predicated region
    $region18: #{forward.1} parent=1 // pred_check
      _
    $region19: #{forward.1} parent=1 // pred_check_branch
      %64 = sbr.rel (0) target = $region21
    $region20: #{forward.1} parent=1 // pred_region
      %s66 = ssub.s32 4096, 4096
      %67 = vsyncadd [#allocation6], %s66
      %s68 = sshll.u32 [#allocation7], 4
      %s69 = int_to_ptr.vmem [resolvable:$true] %s68
      %74 = dma.hbm_to_vmem [thread:$0]  %s4, 4096, %s69, [#allocation6], 128, 128, 8
    $region21: #{forward.1} parent=1 // pred_fallthru
      _
    // Predicated region
    $region22: #{forward.1} parent=1 // pred_check
      _
    $region23: #{forward.1} parent=1 // pred_check_branch
      %76 = sbr.rel (0) target = $region25
    $region24: #{forward.1} parent=1 // pred_region
      %s78 = ssub.s32 4096, 4096
      %79 = vsyncadd [#allocation9], %s78
      %s80 = sshll.u32 [#allocation8], 4
      %s81 = int_to_ptr.vmem [resolvable:$true] %s80
      %86 = dma.hbm_to_vmem [thread:$0]  %s5, 4096, %s81, [#allocation9], 256, 256, 16
    $region25: #{forward.1} parent=1 // pred_fallthru
      _
    // Predicated region
    $region26: #{forward.1} parent=1 // pred_check
      _
    $region27: #{forward.1} parent=1 // pred_check_branch
      %88 = sbr.rel (0) target = $region29
    $region28: #{forward.1} parent=1 // pred_region
      %s90 = ssub.s32 4096, 4096
      %91 = vsyncadd [#allocation9], %s90
      %s92 = sshll.u32 [#allocation10], 4
      %s93 = int_to_ptr.vmem [resolvable:$true] %s92
      %98 = dma.hbm_to_vmem [thread:$0]  %s6, 4096, %s93, [#allocation9], 128, 128, 8
    $region29: #{forward.1} parent=1 // pred_fallthru
      _
    // Predicated region
    $region30: #{forward.1} parent=1 // pred_check
      _
    $region31: #{forward.1} parent=1 // pred_check_branch
      %100 = sbr.rel (0) target = $region33
    $region32: #{forward.1} parent=1 // pred_region
      _
    $region33: #{forward.1} parent=1 // pred_fallthru
      _
    // Predicated region
    $region34: #{forward.1} parent=1 // pred_check
      _
    $region35: #{forward.1} parent=1 // pred_check_branch
      %102 = sbr.rel (0) target = $region37
    $region36: #{forward.1} parent=1 // pred_region
      %s104 = ssub.s32 8192, 8192
      %105 = vsyncadd [#allocation12], %s104
      %s106 = sshll.u32 [#allocation11], 4
      %s107 = int_to_ptr.vmem [resolvable:$true] %s106
      %112 = dma.hbm_to_vmem [thread:$0]  %s8, 8192, %s107, [#allocation12], 128, 128, 8
    $region37: #{forward.1} parent=1 // pred_fallthru
      _
    // Predicated region
    $region38: #{forward.1} parent=1 // pred_check
      _
    $region39: #{forward.1} parent=1 // pred_check_branch
      %114 = sbr.rel (0) target = $region41
    $region40: #{forward.1} parent=1 // pred_region
      _
    $region41: #{forward.1} parent=1 // pred_fallthru
      _
    // Predicated region
    $region42: #{forward.1} parent=1 // pred_check
      _
    $region43: #{forward.1} parent=1 // pred_check_branch
      %116 = sbr.rel (0) target = $region45
    $region44: #{forward.1} parent=1 // pred_region
      _
    $region45: #{forward.1} parent=1 // pred_fallthru
      _
    // Predicated region
    $region46: #{forward.1} parent=1 // pred_check
      _
    $region47: #{forward.1} parent=1 // pred_check_branch
      %118 = sbr.rel (0) target = $region49
    $region48: #{forward.1} parent=1 // pred_region
      %s120 = ssub.s32 1024, 1024
      %121 = vsyncadd [#allocation12], %s120
      %s122 = sshll.u32 [#allocation13], 4
      %s123 = int_to_ptr.vmem [resolvable:$true] %s122
      %128 = dma.hbm_to_vmem [thread:$0]  %s11, 1024, %s123, [#allocation12], 128, 128, 8
    $region49: #{forward.1} parent=1 // pred_fallthru
      _
    // Predicated region
    $region50: #{forward.1} parent=1 // pred_check
      _
    $region51: #{forward.1} parent=1 // pred_check_branch
      %130 = sbr.rel (0) target = $region53
    $region52: #{forward.1} parent=1 // pred_region
      _
    $region53: #{forward.1} parent=1 // pred_fallthru
      _
    // Predicated region
    $region54: #{forward.1} parent=1 // pred_check
      _
    $region55: #{forward.1} parent=1 // pred_check_branch
      %132 = sbr.rel (0) target = $region57
    $region56: #{forward.1} parent=1 // pred_region
      _
    $region57: #{forward.1} parent=1 // pred_fallthru
      _
    // Predicated region
    $region58: #{forward.1} parent=1 // pred_check
      _
    $region59: #{forward.1} parent=1 // pred_check_branch
      %134 = sbr.rel (0) target = $region61
    $region60: #{forward.1} parent=1 // pred_region
      %s136 = ssub.s32 1024, 1024
      %137 = vsyncadd [#allocation15], %s136
      %s138 = sshll.u32 [#allocation14], 4
      %s139 = int_to_ptr.vmem [resolvable:$true] %s138
      %144 = dma.hbm_to_vmem [thread:$0]  %s14, 1024, %s139, [#allocation15], 128, 128, 8
    $region61: #{forward.1} parent=1 // pred_fallthru
      _
    // Predicated region
    $region62: #{forward.1} parent=1 // pred_check
      _
    $region63: #{forward.1} parent=1 // pred_check_branch
      %146 = sbr.rel (0) target = $region65
    $region64: #{forward.1} parent=1 // pred_region
      _
    $region65: #{forward.1} parent=1 // pred_fallthru
      _
    // Predicated region
    $region66: #{forward.1} parent=1 // pred_check
      _
    $region67: #{forward.1} parent=1 // pred_check_branch
      %148 = sbr.rel (0) target = $region69
    $region68: #{forward.1} parent=1 // pred_region
      %s150 = ssub.s32 2048, 2048
      %151 = vsyncadd [#allocation15], %s150
      %s152 = sshll.u32 [#allocation16], 4
      %s153 = int_to_ptr.vmem [resolvable:$true] %s152
      %158 = dma.hbm_to_vmem [thread:$0]  %s16, 2048, %s153, [#allocation15], 256, 256, 16
    $region69: #{forward.1} parent=1 // pred_fallthru
      _
    // Predicated region
    $region70: #{forward.1} parent=1 // pred_check
      _
    $region71: #{forward.1} parent=1 // pred_check_branch
      %160 = sbr.rel (0) target = $region73
    $region72: #{forward.1} parent=1 // pred_region
      _
    $region73: #{forward.1} parent=1 // pred_fallthru
      _
    // Predicated region
    $region74: #{forward.1} parent=1 // pred_check
      _
    $region75: #{forward.1} parent=1 // pred_check_branch
      %162 = sbr.rel (0) target = $region77
    $region76: #{forward.1} parent=1 // pred_region
      %s164 = ssub.s32 512, 512
      %165 = vsyncadd [#allocation18], %s164
      %s166 = sshll.u32 [#allocation17], 4
      %s167 = int_to_ptr.vmem [resolvable:$true] %s166
      %172 = dma.hbm_to_vmem [thread:$0]  %s18, 512, %s167, [#allocation18], 128, 128, 8
    $region77: #{forward.1} parent=1 // pred_fallthru
      _
    // Predicated region
    $region78: #{forward.1} parent=1 // pred_check
      _
    $region79: #{forward.1} parent=1 // pred_check_branch
      %174 = sbr.rel (0) target = $region81
    $region80: #{forward.1} parent=1 // pred_region
      %s176 = ssub.s32 512, 512
      %177 = vsyncadd [#allocation18], %s176
      %s178 = sshll.u32 [#allocation19], 4
      %s179 = int_to_ptr.vmem [resolvable:$true] %s178
      %184 = dma.hbm_to_vmem [thread:$0]  %s19, 512, %s179, [#allocation18], 128, 128, 8
    $region81: #{forward.1} parent=1 // pred_fallthru
      _
    // Predicated region
    $region82: #{forward.1} parent=1 // pred_check
      _
    $region83: #{forward.1} parent=1 // pred_check_branch
      %186 = sbr.rel (0) target = $region85
    $region84: #{forward.1} parent=1 // pred_region
      _
    $region85: #{forward.1} parent=1 // pred_fallthru
      _
    // Predicated region
    $region86: #{forward.1} parent=1 // pred_check
      _
    $region87: #{forward.1} parent=1 // pred_check_branch
      %188 = sbr.rel (0) target = $region89
    $region88: #{forward.1} parent=1 // pred_region
      %s190 = ssub.s32 2048, 2048
      %191 = vsyncadd [#allocation21], %s190
      %s192 = sshll.u32 [#allocation20], 4
      %s193 = int_to_ptr.vmem [resolvable:$true] %s192
      %198 = dma.hbm_to_vmem [thread:$0]  %s21, 2048, %s193, [#allocation21], 512, 512, 32
    $region89: #{forward.1} parent=1 // pred_fallthru
      _
    // Predicated region
    $region90: #{forward.1} parent=1 // pred_check
      _
    $region91: #{forward.1} parent=1 // pred_check_branch
      %200 = sbr.rel (0) target = $region93
    $region92: #{forward.1} parent=1 // pred_region
      %201 = dma.done [#allocation3], 2048
    $region93: #{forward.1} parent=1 // pred_fallthru
      _
    // Predicated region
    $region94: #{forward.1} parent=1 // pred_check
      _
    $region95: #{forward.1} parent=1 // pred_check_branch
      %203 = sbr.rel (0) target = $region97
    $region96: #{forward.1} parent=1 // pred_region
      %204 = dma.done [#allocation6], 4096
    $region97: #{forward.1} parent=1 // pred_fallthru
      _
    // Predicated region
    $region98: #{forward.1} parent=1 // pred_check
      _
    $region99: #{forward.1} parent=1 // pred_check_branch
      %206 = sbr.rel (0) target = $region101
    $region100: #{forward.1} parent=1 // pred_region
      %207 = dma.done [#allocation6], 4096
    $region101: #{forward.1} parent=1 // pred_fallthru
      _
    // Predicated region
    $region102: #{forward.1} parent=1 // pred_check
      _
    $region103: #{forward.1} parent=1 // pred_check_branch
      %209 = sbr.rel (0) target = $region105
    $region104: #{forward.1} parent=1 // pred_region
      %210 = dma.done [#allocation9], 4096
    $region105: #{forward.1} parent=1 // pred_fallthru
      _
    // Predicated region
    $region106: #{forward.1} parent=1 // pred_check
      _
    $region107: #{forward.1} parent=1 // pred_check_branch
      %212 = sbr.rel (0) target = $region109
    $region108: #{forward.1} parent=1 // pred_region
      %213 = dma.done [#allocation9], 4096
    $region109: #{forward.1} parent=1 // pred_fallthru
      _
    // Predicated region
    $region110: #{forward.1} parent=1 // pred_check
      _
    $region111: #{forward.1} parent=1 // pred_check_branch
      %215 = sbr.rel (0) target = $region113
    $region112: #{forward.1} parent=1 // pred_region
      %216 = dma.done [#allocation12], 8192
    $region113: #{forward.1} parent=1 // pred_fallthru
      _
    // Predicated region
    $region114: #{forward.1} parent=1 // pred_check
      _
    $region115: #{forward.1} parent=1 // pred_check_branch
      %218 = sbr.rel (0) target = $region117
    $region116: #{forward.1} parent=1 // pred_region
      %219 = dma.done [#allocation12], 1024
    $region117: #{forward.1} parent=1 // pred_fallthru
      _
    // Predicated region
    $region118: #{forward.1} parent=1 // pred_check
      _
    $region119: #{forward.1} parent=1 // pred_check_branch
      %221 = sbr.rel (0) target = $region121
    $region120: #{forward.1} parent=1 // pred_region
      %222 = dma.done [#allocation15], 1024
    $region121: #{forward.1} parent=1 // pred_fallthru
      _
    // Predicated region
    $region122: #{forward.1} parent=1 // pred_check
      _
    $region123: #{forward.1} parent=1 // pred_check_branch
      %224 = sbr.rel (0) target = $region125
    $region124: #{forward.1} parent=1 // pred_region
      %225 = dma.done [#allocation15], 2048
    $region125: #{forward.1} parent=1 // pred_fallthru
      _
    // Predicated region
    $region126: #{forward.1} parent=1 // pred_check
      _
    $region127: #{forward.1} parent=1 // pred_check_branch
      %227 = sbr.rel (0) target = $region129
    $region128: #{forward.1} parent=1 // pred_region
      %228 = dma.done [#allocation18], 512
    $region129: #{forward.1} parent=1 // pred_fallthru
      _
    // Predicated region
    $region130: #{forward.1} parent=1 // pred_check
      _
    $region131: #{forward.1} parent=1 // pred_check_branch
      %230 = sbr.rel (0) target = $region133
    $region132: #{forward.1} parent=1 // pred_region
      %231 = dma.done [#allocation18], 512
    $region133: #{forward.1} parent=1 // pred_fallthru
      _
    // Predicated region
    $region134: #{forward.1} parent=1 // pred_check
      _
    $region135: #{forward.1} parent=1 // pred_check_branch
      %233 = sbr.rel (0) target = $region137
    $region136: #{forward.1} parent=1 // pred_region
      %234 = dma.done [#allocation21], 2048
    $region137: #{forward.1} parent=1 // pred_fallthru
      _
    %v235 = vld [vmem:[%s0] sm:$0xff]
    %v236 = vld [vmem:[%s0 + $0x8] sm:$0xf]
    %v237 = vld [vmem:[%s1] sm:$0xff]
    %v238 = vld [vmem:[%s1 + $0x8] sm:$0xff]
    %v239 = vld [vmem:[%s1 + $0x10] sm:$0xff]
    %v240 = vld [vmem:[%s1 + $0x18] sm:$0xff]
    %v241 = vld [vmem:[%s1 + $0x20] sm:$0xff]
    %v242 = vld [vmem:[%s1 + $0x28] sm:$0xff]
    %v243 = vld [vmem:[%s1 + $0x30] sm:$0xff]
    %v244 = vld [vmem:[%s1 + $0x38] sm:$0xff]
    %v245 = vld [vmem:[%s1 + $0x40] sm:$0xff]
    %v246 = vld [vmem:[%s1 + $0x48] sm:$0xff]
    %v247 = vld [vmem:[%s1 + $0x50] sm:$0xff]
    %v248 = vld [vmem:[%s1 + $0x58] sm:$0xff]
    %v249 = vld [vmem:[%s1 + $0x60] sm:$0xff]
    %v250 = vld [vmem:[%s1 + $0x68] sm:$0xff]
    %v251 = vld [vmem:[%s1 + $0x70] sm:$0xff]
    %v252 = vld [vmem:[%s1 + $0x78] sm:$0xff]
    %v253 = vld [vmem:[%s1 + $0x80] sm:$0xff]
    %v254 = vld [vmem:[%s1 + $0x88] sm:$0xff]
    %v255 = vld [vmem:[%s1 + $0x90] sm:$0xff]
    %v256 = vld [vmem:[%s1 + $0x98] sm:$0xff]
    %v257 = vld [vmem:[%s1 + $0xa0] sm:$0xff]
    %v258 = vld [vmem:[%s1 + $0xa8] sm:$0xff]
    %v259 = vld [vmem:[%s1 + $0xb0] sm:$0xff]
    %v260 = vld [vmem:[%s1 + $0xb8] sm:$0xff]
    %v261 = vld [vmem:[%s1 + $0xc0] sm:$0xff]
    %v262 = vld [vmem:[%s1 + $0xc8] sm:$0xff]
    %v263 = vld [vmem:[%s1 + $0xd0] sm:$0xff]
    %v264 = vld [vmem:[%s1 + $0xd8] sm:$0xff]
    %v265 = vld [vmem:[%s1 + $0xe0] sm:$0xff]
    %v266 = vld [vmem:[%s1 + $0xe8] sm:$0xff]
    %v267 = vld [vmem:[%s1 + $0xf0] sm:$0xff]
    %v268 = vld [vmem:[%s1 + $0xf8] sm:$0xff]
    %v269 = vld [vmem:[%s1 + $0x100] sm:$0xff]
    %v270 = vld [vmem:[%s1 + $0x108] sm:$0xff]
    %v271 = vld [vmem:[%s1 + $0x110] sm:$0xff]
    %v272 = vld [vmem:[%s1 + $0x118] sm:$0xff]
    %v273 = vld [vmem:[%s1 + $0x120] sm:$0xff]
    %v274 = vld [vmem:[%s1 + $0x128] sm:$0xff]
    %v275 = vld [vmem:[%s1 + $0x130] sm:$0xff]
    %v276 = vld [vmem:[%s1 + $0x138] sm:$0xff]
    %v277 = vld [vmem:[%s1 + $0x140] sm:$0xff]
    %v278 = vld [vmem:[%s1 + $0x148] sm:$0xff]
    %v279 = vld [vmem:[%s1 + $0x150] sm:$0xff]
    %v280 = vld [vmem:[%s1 + $0x158] sm:$0xff]
    %v281 = vld [vmem:[%s1 + $0x160] sm:$0xff]
    %v282 = vld [vmem:[%s1 + $0x168] sm:$0xff]
    %v283 = vld [vmem:[%s1 + $0x170] sm:$0xff]
    %v284 = vld [vmem:[%s1 + $0x178] sm:$0xff]
    %v285 = vld [vmem:[%s1 + $0x180] sm:$0xff]
    %v286 = vld [vmem:[%s1 + $0x188] sm:$0xff]
    %v287 = vld [vmem:[%s1 + $0x190] sm:$0xff]
    %v288 = vld [vmem:[%s1 + $0x198] sm:$0xff]
    %v289 = vld [vmem:[%s1 + $0x1a0] sm:$0xff]
    %v290 = vld [vmem:[%s1 + $0x1a8] sm:$0xff]
    %v291 = vld [vmem:[%s1 + $0x1b0] sm:$0xff]
    %v292 = vld [vmem:[%s1 + $0x1b8] sm:$0xff]
    %v293 = vld [vmem:[%s1 + $0x1c0] sm:$0xff]
    %v294 = vld [vmem:[%s1 + $0x1c8] sm:$0xff]
    %v295 = vld [vmem:[%s1 + $0x1d0] sm:$0xff]
    %v296 = vld [vmem:[%s1 + $0x1d8] sm:$0xff]
    %v297 = vld [vmem:[%s1 + $0x1e0] sm:$0xff]
    %v298 = vld [vmem:[%s1 + $0x1e8] sm:$0xff]
    %v299 = vld [vmem:[%s1 + $0x1f0] sm:$0xff]
    %v300 = vld [vmem:[%s1 + $0x1f8] sm:$0xff]
    %v301 = vld [vmem:[%s1 + $0x200] sm:$0xff]
    %v302 = vld [vmem:[%s1 + $0x208] sm:$0xff]
    %v303 = vld [vmem:[%s1 + $0x210] sm:$0xff]
    %v304 = vld [vmem:[%s1 + $0x218] sm:$0xff]
    %v305 = vld [vmem:[%s1 + $0x220] sm:$0xff]
    %v306 = vld [vmem:[%s1 + $0x228] sm:$0xff]
    %v307 = vld [vmem:[%s1 + $0x230] sm:$0xff]
    %v308 = vld [vmem:[%s1 + $0x238] sm:$0xff]
    %v309 = vld [vmem:[%s1 + $0x240] sm:$0xff]
    %v310 = vld [vmem:[%s1 + $0x248] sm:$0xff]
    %v311 = vld [vmem:[%s1 + $0x250] sm:$0xff]
    %v312 = vld [vmem:[%s1 + $0x258] sm:$0xff]
    %v313 = vld [vmem:[%s1 + $0x260] sm:$0xff]
    %v314 = vld [vmem:[%s1 + $0x268] sm:$0xff]
    %v315 = vld [vmem:[%s1 + $0x270] sm:$0xff]
    %v316 = vld [vmem:[%s1 + $0x278] sm:$0xff]
    %v317 = vld [vmem:[%s1 + $0x280] sm:$0xff]
    %v318 = vld [vmem:[%s1 + $0x288] sm:$0xff]
    %v319 = vld [vmem:[%s1 + $0x290] sm:$0xff]
    %v320 = vld [vmem:[%s1 + $0x298] sm:$0xff]
    %v321 = vld [vmem:[%s1 + $0x2a0] sm:$0xff]
    %v322 = vld [vmem:[%s1 + $0x2a8] sm:$0xff]
    %v323 = vld [vmem:[%s1 + $0x2b0] sm:$0xff]
    %v324 = vld [vmem:[%s1 + $0x2b8] sm:$0xff]
    %v325 = vld [vmem:[%s1 + $0x2c0] sm:$0xff]
    %v326 = vld [vmem:[%s1 + $0x2c8] sm:$0xff]
    %v327 = vld [vmem:[%s1 + $0x2d0] sm:$0xff]
    %v328 = vld [vmem:[%s1 + $0x2d8] sm:$0xff]
    %v329 = vld [vmem:[%s1 + $0x2e0] sm:$0xff]
    %v330 = vld [vmem:[%s1 + $0x2e8] sm:$0xff]
    %v331 = vld [vmem:[%s1 + $0x2f0] sm:$0xff]
    %v332 = vld [vmem:[%s1 + $0x2f8] sm:$0xff]
    %v333 = vld [vmem:[#allocation20] ss:$0 sm:$0xff]
    %v336 = vcombine.high %v235, %v235
    %v338 = vunpack.c.l.s4 1983009808
    %v339 = vunpack.c.0.s8 %v338
    %v340 = vlaneseq
    %v341 = vshrl.u32 %v340, 7
    %v342 = vsub.s32 %v339, %v341
    %v343 = vrot.slane %v235, %v342
    %v345 = vunpack.c.l.s4 1983009808
    %v346 = vunpack.c.0.s8 %v345
    %v347 = vlaneseq
    %v348 = vshrl.u32 %v347, 7
    %v349 = vsub.s32 %v346, %v348
    %v350 = vrot.slane %v336, %v349
    %v351 = vcombine.high %v343, %v343
    %v352 = vcombine.high %v350, %v350
    %v354 = vunpack.c.l.s4 1983009808
    %v355 = vunpack.c.0.s8 %v354
    %v356 = vlaneseq
    %v357 = vshrl.u32 %v356, 7
    %v358 = vsub.s32 %v355, %v357
    %v359 = vrot.slane %v236, %v358
    %v360 = vcombine.high %v359, %v359
    %367 = vmatprep.subr.mxu0 0.0
    %368 = vmatpush1.msra.mxu0 %v237
    %369 = vmatprep.subr.mxu0 0.0
    %370 = vmatpush1.msra.mxu0 %v238
    %371 = vmatprep.subr.mxu0 0.0
    %372 = vmatpush1.msra.mxu0 %v239
    %373 = vmatprep.subr.mxu0 0.0
    %374 = vmatpush1.msra.mxu0 %v240
    %375 = vmatprep.subr.mxu0 0.0
    %376 = vmatpush1.msra.mxu0 %v241
    %377 = vmatprep.subr.mxu0 0.0
    %378 = vmatpush1.msra.mxu0 %v242
    %379 = vmatprep.subr.mxu0 0.0
    %380 = vmatpush1.msra.mxu0 %v243
    %381 = vmatprep.subr.mxu0 0.0
    %382 = vmatpush1.msra.mxu0 %v244
    %383 = vmatprep.subr.mxu0 0.0
    %384 = vmatpush1.msra.mxu0 %v245
    %385 = vmatprep.subr.mxu0 0.0
    %386 = vmatpush1.msra.mxu0 %v246
    %387 = vmatprep.subr.mxu0 0.0
    %388 = vmatpush1.msra.mxu0 %v247
    %389 = vmatprep.subr.mxu0 0.0
    %390 = vmatpush1.msra.mxu0 %v248
    %391 = vmatprep.subr.mxu0 0.0
    %392 = vmatpush1.msra.mxu0 %v249
    %393 = vmatprep.subr.mxu0 0.0
    %394 = vmatpush1.msra.mxu0 %v250
    %395 = vmatprep.subr.mxu0 0.0
    %396 = vmatpush1.msra.mxu0 %v251
    %397 = vmatprep.subr.mxu0 0.0
    %398 = vmatpush1.msra.mxu0 %v252
    %399 = vmatprep.subr.mxu0 0.0
    %400 = vmatpush1.msra.mxu0 %v253
    %401 = vmatprep.subr.mxu0 0.0
    %402 = vmatpush1.msra.mxu0 %v254
    %403 = vmatprep.subr.mxu0 0.0
    %404 = vmatpush1.msra.mxu0 %v255
    %405 = vmatprep.subr.mxu0 0.0
    %406 = vmatpush1.msra.mxu0 %v256
    %407 = vmatprep.subr.mxu0 0.0
    %408 = vmatpush1.msra.mxu0 %v257
    %409 = vmatprep.subr.mxu0 0.0
    %410 = vmatpush1.msra.mxu0 %v258
    %411 = vmatprep.subr.mxu0 0.0
    %412 = vmatpush1.msra.mxu0 %v259
    %413 = vmatprep.subr.mxu0 0.0
    %414 = vmatpush1.msra.mxu0 %v260
    %415 = vmatprep.subr.mxu0 0.0
    %416 = vmatpush1.msra.mxu0 %v261
    %417 = vmatprep.subr.mxu0 0.0
    %418 = vmatpush1.msra.mxu0 %v262
    %419 = vmatprep.subr.mxu0 0.0
    %420 = vmatpush1.msra.mxu0 %v263
    %421 = vmatprep.subr.mxu0 0.0
    %422 = vmatpush1.msra.mxu0 %v264
    %423 = vmatprep.subr.mxu0 0.0
    %424 = vmatpush1.msra.mxu0 %v265
    %425 = vmatprep.subr.mxu0 0.0
    %426 = vmatpush1.msra.mxu0 %v266
    %427 = vmatprep.subr.mxu0 0.0
    %428 = vmatpush1.msra.mxu0 %v267
    %429 = vmatprep.subr.mxu0 0.0
    %430 = vmatpush1.msra.mxu0 %v268
    %431 = vmatprep.mubr.f32.mxu0 %v351
    %432 = vmatmul.mubr.f32.gmra.mrb[0].mxu0 %v343
    %v433 = vpop.f32.mrb[0].mxu0
    %v434 = vadd.f32 %v333, %v433
    %v435 = vpop.f32.mrb[0].mxu0
    %436 = vdwg.mxu0
    %437 = vmatprep.subr.mxu0 0.0
    %438 = vmatpush1.msra.mxu0 %v269
    %439 = vmatprep.subr.mxu0 0.0
    %440 = vmatpush1.msra.mxu0 %v270
    %441 = vmatprep.subr.mxu0 0.0
    %442 = vmatpush1.msra.mxu0 %v271
    %443 = vmatprep.subr.mxu0 0.0
    %444 = vmatpush1.msra.mxu0 %v272
    %445 = vmatprep.subr.mxu0 0.0
    %446 = vmatpush1.msra.mxu0 %v273
    %447 = vmatprep.subr.mxu0 0.0
    %448 = vmatpush1.msra.mxu0 %v274
    %449 = vmatprep.subr.mxu0 0.0
    %450 = vmatpush1.msra.mxu0 %v275
    %451 = vmatprep.subr.mxu0 0.0
    %452 = vmatpush1.msra.mxu0 %v276
    %453 = vmatprep.subr.mxu0 0.0
    %454 = vmatpush1.msra.mxu0 %v277
    %455 = vmatprep.subr.mxu0 0.0
    %456 = vmatpush1.msra.mxu0 %v278
    %457 = vmatprep.subr.mxu0 0.0
    %458 = vmatpush1.msra.mxu0 %v279
    %459 = vmatprep.subr.mxu0 0.0
    %460 = vmatpush1.msra.mxu0 %v280
    %461 = vmatprep.subr.mxu0 0.0
    %462 = vmatpush1.msra.mxu0 %v281
    %463 = vmatprep.subr.mxu0 0.0
    %464 = vmatpush1.msra.mxu0 %v282
    %465 = vmatprep.subr.mxu0 0.0
    %466 = vmatpush1.msra.mxu0 %v283
    %467 = vmatprep.subr.mxu0 0.0
    %468 = vmatpush1.msra.mxu0 %v284
    %469 = vmatprep.subr.mxu0 0.0
    %470 = vmatpush1.msra.mxu0 %v285
    %471 = vmatprep.subr.mxu0 0.0
    %472 = vmatpush1.msra.mxu0 %v286
    %473 = vmatprep.subr.mxu0 0.0
    %474 = vmatpush1.msra.mxu0 %v287
    %475 = vmatprep.subr.mxu0 0.0
    %476 = vmatpush1.msra.mxu0 %v288
    %477 = vmatprep.subr.mxu0 0.0
    %478 = vmatpush1.msra.mxu0 %v289
    %479 = vmatprep.subr.mxu0 0.0
    %480 = vmatpush1.msra.mxu0 %v290
    %481 = vmatprep.subr.mxu0 0.0
    %482 = vmatpush1.msra.mxu0 %v291
    %483 = vmatprep.subr.mxu0 0.0
    %484 = vmatpush1.msra.mxu0 %v292
    %485 = vmatprep.subr.mxu0 0.0
    %486 = vmatpush1.msra.mxu0 %v293
    %487 = vmatprep.subr.mxu0 0.0
    %488 = vmatpush1.msra.mxu0 %v294
    %489 = vmatprep.subr.mxu0 0.0
    %490 = vmatpush1.msra.mxu0 %v295
    %491 = vmatprep.subr.mxu0 0.0
    %492 = vmatpush1.msra.mxu0 %v296
    %493 = vmatprep.subr.mxu0 0.0
    %494 = vmatpush1.msra.mxu0 %v297
    %495 = vmatprep.subr.mxu0 0.0
    %496 = vmatpush1.msra.mxu0 %v298
    %497 = vmatprep.subr.mxu0 0.0
    %498 = vmatpush1.msra.mxu0 %v299
    %499 = vmatprep.subr.mxu0 0.0
    %500 = vmatpush1.msra.mxu0 %v300
    %501 = vmatprep.mubr.f32.mxu0 %v352
    %502 = vmatmul.mubr.f32.gmra.mrb[0].mxu0 %v350
    %v503 = vpop.f32.mrb[0].mxu0
    %v504 = vadd.f32 %v434, %v503
    %v505 = vpop.f32.mrb[0].mxu0
    %506 = vdwg.mxu0
    %507 = vmatprep.subr.mxu0 0.0
    %508 = vmatpush1.msra.mxu0 %v301
    %509 = vmatprep.subr.mxu0 0.0
    %510 = vmatpush1.msra.mxu0 %v302
    %511 = vmatprep.subr.mxu0 0.0
    %512 = vmatpush1.msra.mxu0 %v303
    %513 = vmatprep.subr.mxu0 0.0
    %514 = vmatpush1.msra.mxu0 %v304
    %515 = vmatprep.subr.mxu0 0.0
    %516 = vmatpush1.msra.mxu0 %v305
    %517 = vmatprep.subr.mxu0 0.0
    %518 = vmatpush1.msra.mxu0 %v306
    %519 = vmatprep.subr.mxu0 0.0
    %520 = vmatpush1.msra.mxu0 %v307
    %521 = vmatprep.subr.mxu0 0.0
    %522 = vmatpush1.msra.mxu0 %v308
    %523 = vmatprep.subr.mxu0 0.0
    %524 = vmatpush1.msra.mxu0 %v309
    %525 = vmatprep.subr.mxu0 0.0
    %526 = vmatpush1.msra.mxu0 %v310
    %527 = vmatprep.subr.mxu0 0.0
    %528 = vmatpush1.msra.mxu0 %v311
    %529 = vmatprep.subr.mxu0 0.0
    %530 = vmatpush1.msra.mxu0 %v312
    %531 = vmatprep.subr.mxu0 0.0
    %532 = vmatpush1.msra.mxu0 %v313
    %533 = vmatprep.subr.mxu0 0.0
    %534 = vmatpush1.msra.mxu0 %v314
    %535 = vmatprep.subr.mxu0 0.0
    %536 = vmatpush1.msra.mxu0 %v315
    %537 = vmatprep.subr.mxu0 0.0
    %538 = vmatpush1.msra.mxu0 %v316
    %539 = vmatprep.subr.mxu0 0.0
    %540 = vmatpush1.msra.mxu0 %v317
    %541 = vmatprep.subr.mxu0 0.0
    %542 = vmatpush1.msra.mxu0 %v318
    %543 = vmatprep.subr.mxu0 0.0
    %544 = vmatpush1.msra.mxu0 %v319
    %545 = vmatprep.subr.mxu0 0.0
    %546 = vmatpush1.msra.mxu0 %v320
    %547 = vmatprep.subr.mxu0 0.0
    %548 = vmatpush1.msra.mxu0 %v321
    %549 = vmatprep.subr.mxu0 0.0
    %550 = vmatpush1.msra.mxu0 %v322
    %551 = vmatprep.subr.mxu0 0.0
    %552 = vmatpush1.msra.mxu0 %v323
    %553 = vmatprep.subr.mxu0 0.0
    %554 = vmatpush1.msra.mxu0 %v324
    %555 = vmatprep.subr.mxu0 0.0
    %556 = vmatpush1.msra.mxu0 %v325
    %557 = vmatprep.subr.mxu0 0.0
    %558 = vmatpush1.msra.mxu0 %v326
    %559 = vmatprep.subr.mxu0 0.0
    %560 = vmatpush1.msra.mxu0 %v327
    %561 = vmatprep.subr.mxu0 0.0
    %562 = vmatpush1.msra.mxu0 %v328
    %563 = vmatprep.subr.mxu0 0.0
    %564 = vmatpush1.msra.mxu0 %v329
    %565 = vmatprep.subr.mxu0 0.0
    %566 = vmatpush1.msra.mxu0 %v330
    %567 = vmatprep.subr.mxu0 0.0
    %568 = vmatpush1.msra.mxu0 %v331
    %569 = vmatprep.subr.mxu0 0.0
    %570 = vmatpush1.msra.mxu0 %v332
    %571 = vmatprep.mubr.f32.mxu0 %v360
    %572 = vmatmul.mubr.f32.gmra.mrb[0].mxu0 %v359
    %v573 = vpop.f32.mrb[0].mxu0
    %v574 = vadd.f32 %v504, %v573
    %v575 = vpop.f32.mrb[0].mxu0
    %576 = vdwg.mxu0
    %v577 = vld [vmem:[#allocation2] sm:$0xff]
    %v578 = vld [vmem:[#allocation2 + $0x8] sm:$0xff]
    %v579 = vld [vmem:[#allocation2 + $0x10] sm:$0xff]
    %v580 = vld [vmem:[#allocation2 + $0x18] sm:$0xff]
    %v581 = vld [vmem:[#allocation2 + $0x20] sm:$0xff]
    %v582 = vld [vmem:[#allocation2 + $0x28] sm:$0xff]
    %v583 = vld [vmem:[#allocation2 + $0x30] sm:$0xff]
    %v584 = vld [vmem:[#allocation2 + $0x38] sm:$0xff]
    %v585 = vld [vmem:[#allocation2 + $0x40] sm:$0xff]
    %v586 = vld [vmem:[#allocation2 + $0x48] sm:$0xff]
    %v587 = vld [vmem:[#allocation2 + $0x50] sm:$0xff]
    %v588 = vld [vmem:[#allocation2 + $0x58] sm:$0xff]
    %v589 = vld [vmem:[#allocation2 + $0x60] sm:$0xff]
    %v590 = vld [vmem:[#allocation2 + $0x68] sm:$0xff]
    %v591 = vld [vmem:[#allocation2 + $0x70] sm:$0xff]
    %v592 = vld [vmem:[#allocation2 + $0x78] sm:$0xff]
    %v593 = vld [vmem:[#allocation20 + $0x1] ss:$0 sm:$0xff]
    %v594 = vld [vmem:[#allocation20 + $0x2] ss:$0 sm:$0xff]
    %595 = vmatprep.subr.mxu0 0.0
    %596 = vmatpush1.msra.mxu0 %v577
    %597 = vmatprep.subr.mxu0 0.0
    %598 = vmatpush1.msra.mxu0 %v578
    %599 = vmatprep.subr.mxu0 0.0
    %600 = vmatpush1.msra.mxu0 %v579
    %601 = vmatprep.subr.mxu0 0.0
    %602 = vmatpush1.msra.mxu0 %v580
    %603 = vmatprep.subr.mxu0 0.0
    %604 = vmatpush1.msra.mxu0 %v581
    %605 = vmatprep.subr.mxu0 0.0
    %606 = vmatpush1.msra.mxu0 %v582
    %607 = vmatprep.subr.mxu0 0.0
    %608 = vmatpush1.msra.mxu0 %v583
    %609 = vmatprep.subr.mxu0 0.0
    %610 = vmatpush1.msra.mxu0 %v584
    %611 = vmatprep.subr.mxu0 0.0
    %612 = vmatpush1.msra.mxu0 %v585
    %613 = vmatprep.subr.mxu0 0.0
    %614 = vmatpush1.msra.mxu0 %v586
    %615 = vmatprep.subr.mxu0 0.0
    %616 = vmatpush1.msra.mxu0 %v587
    %617 = vmatprep.subr.mxu0 0.0
    %618 = vmatpush1.msra.mxu0 %v588
    %619 = vmatprep.subr.mxu0 0.0
    %620 = vmatpush1.msra.mxu0 %v589
    %621 = vmatprep.subr.mxu0 0.0
    %622 = vmatpush1.msra.mxu0 %v590
    %623 = vmatprep.subr.mxu0 0.0
    %624 = vmatpush1.msra.mxu0 %v591
    %625 = vmatprep.subr.mxu0 0.0
    %626 = vmatpush1.msra.mxu0 %v592
    %627 = vmatprep.subr.mxu0 0.0
    %628 = vmatpush1.msra.mxu0 0.0
    %629 = vmatprep.subr.mxu0 0.0
    %630 = vmatpush1.msra.mxu0 0.0
    %631 = vmatprep.subr.mxu0 0.0
    %632 = vmatpush1.msra.mxu0 0.0
    %633 = vmatprep.subr.mxu0 0.0
    %634 = vmatpush1.msra.mxu0 0.0
    %635 = vmatprep.subr.mxu0 0.0
    %636 = vmatpush1.msra.mxu0 0.0
    %637 = vmatprep.subr.mxu0 0.0
    %638 = vmatpush1.msra.mxu0 0.0
    %639 = vmatprep.subr.mxu0 0.0
    %640 = vmatpush1.msra.mxu0 0.0
    %641 = vmatprep.subr.mxu0 0.0
    %642 = vmatpush1.msra.mxu0 0.0
    %643 = vmatprep.subr.mxu0 0.0
    %644 = vmatpush1.msra.mxu0 0.0
    %645 = vmatprep.subr.mxu0 0.0
    %646 = vmatpush1.msra.mxu0 0.0
    %647 = vmatprep.subr.mxu0 0.0
    %648 = vmatpush1.msra.mxu0 0.0
    %649 = vmatprep.subr.mxu0 0.0
    %650 = vmatpush1.msra.mxu0 0.0
    %651 = vmatprep.subr.mxu0 0.0
    %652 = vmatpush1.msra.mxu0 0.0
    %653 = vmatprep.subr.mxu0 0.0
    %654 = vmatpush1.msra.mxu0 0.0
    %655 = vmatprep.subr.mxu0 0.0
    %656 = vmatpush1.msra.mxu0 0.0
    %657 = vmatprep.subr.mxu0 0.0
    %658 = vmatpush1.msra.mxu0 0.0
    %659 = vmatprep.mubr.f32.mxu0 0.0
    %660 = vmatmul.mubr.f32.gmra.mrb[0].mxu0 %v574
    %v661 = vpop.f32.mrb[0].mxu0
    %v662 = vadd.f32 0.0, %v661
    %v663 = vpop.f32.mrb[0].mxu0
    %664 = vdwg.mxu0
    %v665 = vsub.f32 %v574, %v662
    %v666 = vmul.f32 %v665, %v665
    %667 = vmatprep.subr.mxu0 0.0
    %668 = vmatpush1.msra.mxu0 %v577
    %669 = vmatprep.subr.mxu0 0.0
    %670 = vmatpush1.msra.mxu0 %v578
    %671 = vmatprep.subr.mxu0 0.0
    %672 = vmatpush1.msra.mxu0 %v579
    %673 = vmatprep.subr.mxu0 0.0
    %674 = vmatpush1.msra.mxu0 %v580
    %675 = vmatprep.subr.mxu0 0.0
    %676 = vmatpush1.msra.mxu0 %v581
    %677 = vmatprep.subr.mxu0 0.0
    %678 = vmatpush1.msra.mxu0 %v582
    %679 = vmatprep.subr.mxu0 0.0
    %680 = vmatpush1.msra.mxu0 %v583
    %681 = vmatprep.subr.mxu0 0.0
    %682 = vmatpush1.msra.mxu0 %v584
    %683 = vmatprep.subr.mxu0 0.0
    %684 = vmatpush1.msra.mxu0 %v585
    %685 = vmatprep.subr.mxu0 0.0
    %686 = vmatpush1.msra.mxu0 %v586
    %687 = vmatprep.subr.mxu0 0.0
    %688 = vmatpush1.msra.mxu0 %v587
    %689 = vmatprep.subr.mxu0 0.0
    %690 = vmatpush1.msra.mxu0 %v588
    %691 = vmatprep.subr.mxu0 0.0
    %692 = vmatpush1.msra.mxu0 %v589
    %693 = vmatprep.subr.mxu0 0.0
    %694 = vmatpush1.msra.mxu0 %v590
    %695 = vmatprep.subr.mxu0 0.0
    %696 = vmatpush1.msra.mxu0 %v591
    %697 = vmatprep.subr.mxu0 0.0
    %698 = vmatpush1.msra.mxu0 %v592
    %699 = vmatprep.subr.mxu0 0.0
    %700 = vmatpush1.msra.mxu0 0.0
    %701 = vmatprep.subr.mxu0 0.0
    %702 = vmatpush1.msra.mxu0 0.0
    %703 = vmatprep.subr.mxu0 0.0
    %704 = vmatpush1.msra.mxu0 0.0
    %705 = vmatprep.subr.mxu0 0.0
    %706 = vmatpush1.msra.mxu0 0.0
    %707 = vmatprep.subr.mxu0 0.0
    %708 = vmatpush1.msra.mxu0 0.0
    %709 = vmatprep.subr.mxu0 0.0
    %710 = vmatpush1.msra.mxu0 0.0
    %711 = vmatprep.subr.mxu0 0.0
    %712 = vmatpush1.msra.mxu0 0.0
    %713 = vmatprep.subr.mxu0 0.0
    %714 = vmatpush1.msra.mxu0 0.0
    %715 = vmatprep.subr.mxu0 0.0
    %716 = vmatpush1.msra.mxu0 0.0
    %717 = vmatprep.subr.mxu0 0.0
    %718 = vmatpush1.msra.mxu0 0.0
    %719 = vmatprep.subr.mxu0 0.0
    %720 = vmatpush1.msra.mxu0 0.0
    %721 = vmatprep.subr.mxu0 0.0
    %722 = vmatpush1.msra.mxu0 0.0
    %723 = vmatprep.subr.mxu0 0.0
    %724 = vmatpush1.msra.mxu0 0.0
    %725 = vmatprep.subr.mxu0 0.0
    %726 = vmatpush1.msra.mxu0 0.0
    %727 = vmatprep.subr.mxu0 0.0
    %728 = vmatpush1.msra.mxu0 0.0
    %729 = vmatprep.subr.mxu0 0.0
    %730 = vmatpush1.msra.mxu0 0.0
    %731 = vmatprep.mubr.f32.mxu0 0.0
    %732 = vmatmul.mubr.f32.gmra.mrb[0].mxu0 %v666
    %v733 = vpop.f32.mrb[0].mxu0
    %v734 = vadd.f32 1e-05, %v733
    %v735 = vpop.f32.mrb[0].mxu0
    %736 = vdwg.mxu0
    %v737 = vrsqrt.pop %v734
    %v738 = vmul.f32 %v665, %v737
    %v739 = vmul.f32 %v738, %v593
    %v740 = vadd.f32 %v739, %v594
    %v741 = vld [vmem:[#allocation5] sm:$0xff]
    %v742 = vld [vmem:[#allocation5 + $0x8] sm:$0xff]
    %v743 = vld [vmem:[#allocation5 + $0x10] sm:$0xff]
    %v744 = vld [vmem:[#allocation5 + $0x18] sm:$0xff]
    %v745 = vld [vmem:[#allocation5 + $0x20] sm:$0xff]
    %v746 = vld [vmem:[#allocation5 + $0x28] sm:$0xff]
    %v747 = vld [vmem:[#allocation5 + $0x30] sm:$0xff]
    %v748 = vld [vmem:[#allocation5 + $0x38] sm:$0xff]
    %v749 = vld [vmem:[#allocation5 + $0x40] sm:$0xff]
    %v750 = vld [vmem:[#allocation5 + $0x48] sm:$0xff]
    %v751 = vld [vmem:[#allocation5 + $0x50] sm:$0xff]
    %v752 = vld [vmem:[#allocation5 + $0x58] sm:$0xff]
    %v753 = vld [vmem:[#allocation5 + $0x60] sm:$0xff]
    %v754 = vld [vmem:[#allocation5 + $0x68] sm:$0xff]
    %v755 = vld [vmem:[#allocation5 + $0x70] sm:$0xff]
    %v756 = vld [vmem:[#allocation5 + $0x78] sm:$0xff]
    %v757 = vld [vmem:[#allocation5 + $0x80] sm:$0xff]
    %v758 = vld [vmem:[#allocation5 + $0x88] sm:$0xff]
    %v759 = vld [vmem:[#allocation5 + $0x90] sm:$0xff]
    %v760 = vld [vmem:[#allocation5 + $0x98] sm:$0xff]
    %v761 = vld [vmem:[#allocation5 + $0xa0] sm:$0xff]
    %v762 = vld [vmem:[#allocation5 + $0xa8] sm:$0xff]
    %v763 = vld [vmem:[#allocation5 + $0xb0] sm:$0xff]
    %v764 = vld [vmem:[#allocation5 + $0xb8] sm:$0xff]
    %v765 = vld [vmem:[#allocation5 + $0xc0] sm:$0xff]
    %v766 = vld [vmem:[#allocation5 + $0xc8] sm:$0xff]
    %v767 = vld [vmem:[#allocation5 + $0xd0] sm:$0xff]
    %v768 = vld [vmem:[#allocation5 + $0xd8] sm:$0xff]
    %v769 = vld [vmem:[#allocation5 + $0xe0] sm:$0xff]
    %v770 = vld [vmem:[#allocation5 + $0xe8] sm:$0xff]
    %v771 = vld [vmem:[#allocation5 + $0xf0] sm:$0xff]
    %v772 = vld [vmem:[#allocation5 + $0xf8] sm:$0xff]
    %s773 = scalar_lea.vmem [#allocation20], 3
    %v774 = vld [vmem:[%s773] ss:$8 sm:$0x3]
    %v776 = vlaneseq
    %v777 = vshrl.u32 %v776, 7
    %v778 = vsub.s32 0, %v777
    %v779 = vrot.slane %v774, %v778
    %v780 = vlaneseq
    %v781 = vshrl.u32 %v780, 7
    %v782 = vsub.s32 1, %v781
    %v783 = vrot.slane %v774, %v782
    %786 = vmatprep.subr.mxu0 %v742
    %787 = vmatpush1.msra.mxu0 %v741
    %788 = vmatprep.subr.mxu0 %v744
    %789 = vmatpush1.msra.mxu0 %v743
    %790 = vmatprep.subr.mxu0 %v746
    %791 = vmatpush1.msra.mxu0 %v745
    %792 = vmatprep.subr.mxu0 %v748
    %793 = vmatpush1.msra.mxu0 %v747
    %794 = vmatprep.subr.mxu0 %v750
    %795 = vmatpush1.msra.mxu0 %v749
    %796 = vmatprep.subr.mxu0 %v752
    %797 = vmatpush1.msra.mxu0 %v751
    %798 = vmatprep.subr.mxu0 %v754
    %799 = vmatpush1.msra.mxu0 %v753
    %800 = vmatprep.subr.mxu0 %v756
    %801 = vmatpush1.msra.mxu0 %v755
    %802 = vmatprep.subr.mxu0 %v758
    %803 = vmatpush1.msra.mxu0 %v757
    %804 = vmatprep.subr.mxu0 %v760
    %805 = vmatpush1.msra.mxu0 %v759
    %806 = vmatprep.subr.mxu0 %v762
    %807 = vmatpush1.msra.mxu0 %v761
    %808 = vmatprep.subr.mxu0 %v764
    %809 = vmatpush1.msra.mxu0 %v763
    %810 = vmatprep.subr.mxu0 %v766
    %811 = vmatpush1.msra.mxu0 %v765
    %812 = vmatprep.subr.mxu0 %v768
    %813 = vmatpush1.msra.mxu0 %v767
    %814 = vmatprep.subr.mxu0 %v770
    %815 = vmatpush1.msra.mxu0 %v769
    %816 = vmatprep.subr.mxu0 %v772
    %817 = vmatpush1.msra.mxu0 %v771
    %818 = vmatprep.subr.mxu0 0.0
    %819 = vmatpush1.msra.mxu0 0.0
    %820 = vmatprep.subr.mxu0 0.0
    %821 = vmatpush1.msra.mxu0 0.0
    %822 = vmatprep.subr.mxu0 0.0
    %823 = vmatpush1.msra.mxu0 0.0
    %824 = vmatprep.subr.mxu0 0.0
    %825 = vmatpush1.msra.mxu0 0.0
    %826 = vmatprep.subr.mxu0 0.0
    %827 = vmatpush1.msra.mxu0 0.0
    %828 = vmatprep.subr.mxu0 0.0
    %829 = vmatpush1.msra.mxu0 0.0
    %830 = vmatprep.subr.mxu0 0.0
    %831 = vmatpush1.msra.mxu0 0.0
    %832 = vmatprep.subr.mxu0 0.0
    %833 = vmatpush1.msra.mxu0 0.0
    %834 = vmatprep.subr.mxu0 0.0
    %835 = vmatpush1.msra.mxu0 0.0
    %836 = vmatprep.subr.mxu0 0.0
    %837 = vmatpush1.msra.mxu0 0.0
    %838 = vmatprep.subr.mxu0 0.0
    %839 = vmatpush1.msra.mxu0 0.0
    %840 = vmatprep.subr.mxu0 0.0
    %841 = vmatpush1.msra.mxu0 0.0
    %842 = vmatprep.subr.mxu0 0.0
    %843 = vmatpush1.msra.mxu0 0.0
    %844 = vmatprep.subr.mxu0 0.0
    %845 = vmatpush1.msra.mxu0 0.0
    %846 = vmatprep.subr.mxu0 0.0
    %847 = vmatpush1.msra.mxu0 0.0
    %848 = vmatprep.subr.mxu0 0.0
    %849 = vmatpush1.msra.mxu0 0.0
    %850 = vmatprep.mubr.f32.mxu0 0.0
    %851 = vmatmul.mubr.f32.gmra.mrb[0].mxu0 %v740
    %v852 = vpop.f32.mrb[0].mxu0
    %v853 = vadd.f32 %v779, %v852
    %v854 = vpop.f32.mrb[0].mxu0
    %v855 = vadd.f32 %v783, %v854
    %856 = vdwg.mxu0
    %v857 = vmul.f32 %v853, 0.5
    %v858 = vmul.f32 %v855, 0.5
    %v859 = vmul.f32 %v853, 0.70710677
    %v860 = vmul.f32 %v855, 0.70710677
    %v861 = verf.f32.pop %v859
    %v862 = verf.f32.pop %v860
    %v863 = vadd.f32 %v861, 1.0
    %v864 = vadd.f32 %v862, 1.0
    %v865 = vmul.f32 %v857, %v863
    %v866 = vmul.f32 %v858, %v864
    %v867 = vld [vmem:[#allocation7] sm:$0xff]
    %v868 = vld [vmem:[#allocation7 + $0x8] sm:$0xff]
    %v869 = vld [vmem:[#allocation7 + $0x10] sm:$0xff]
    %v870 = vld [vmem:[#allocation7 + $0x18] sm:$0xff]
    %v871 = vld [vmem:[#allocation7 + $0x20] sm:$0xff]
    %v872 = vld [vmem:[#allocation7 + $0x28] sm:$0xff]
    %v873 = vld [vmem:[#allocation7 + $0x30] sm:$0xff]
    %v874 = vld [vmem:[#allocation7 + $0x38] sm:$0xff]
    %v875 = vld [vmem:[#allocation7 + $0x40] sm:$0xff]
    %v876 = vld [vmem:[#allocation7 + $0x48] sm:$0xff]
    %v877 = vld [vmem:[#allocation7 + $0x50] sm:$0xff]
    %v878 = vld [vmem:[#allocation7 + $0x58] sm:$0xff]
    %v879 = vld [vmem:[#allocation7 + $0x60] sm:$0xff]
    %v880 = vld [vmem:[#allocation7 + $0x68] sm:$0xff]
    %v881 = vld [vmem:[#allocation7 + $0x70] sm:$0xff]
    %v882 = vld [vmem:[#allocation7 + $0x78] sm:$0xff]
    %v883 = vld [vmem:[#allocation7 + $0x80] sm:$0xff]
    %v884 = vld [vmem:[#allocation7 + $0x88] sm:$0xff]
    %v885 = vld [vmem:[#allocation7 + $0x90] sm:$0xff]
    %v886 = vld [vmem:[#allocation7 + $0x98] sm:$0xff]
    %v887 = vld [vmem:[#allocation7 + $0xa0] sm:$0xff]
    %v888 = vld [vmem:[#allocation7 + $0xa8] sm:$0xff]
    %v889 = vld [vmem:[#allocation7 + $0xb0] sm:$0xff]
    %v890 = vld [vmem:[#allocation7 + $0xb8] sm:$0xff]
    %v891 = vld [vmem:[#allocation7 + $0xc0] sm:$0xff]
    %v892 = vld [vmem:[#allocation7 + $0xc8] sm:$0xff]
    %v893 = vld [vmem:[#allocation7 + $0xd0] sm:$0xff]
    %v894 = vld [vmem:[#allocation7 + $0xd8] sm:$0xff]
    %v895 = vld [vmem:[#allocation7 + $0xe0] sm:$0xff]
    %v896 = vld [vmem:[#allocation7 + $0xe8] sm:$0xff]
    %v897 = vld [vmem:[#allocation7 + $0xf0] sm:$0xff]
    %v898 = vld [vmem:[#allocation7 + $0xf8] sm:$0xff]
    %899 = vmatprep.subr.mxu0 0.0
    %900 = vmatpush1.msra.mxu0 %v867
    %901 = vmatprep.subr.mxu0 0.0
    %902 = vmatpush1.msra.mxu0 %v868
    %903 = vmatprep.subr.mxu0 0.0
    %904 = vmatpush1.msra.mxu0 %v869
    %905 = vmatprep.subr.mxu0 0.0
    %906 = vmatpush1.msra.mxu0 %v870
    %907 = vmatprep.subr.mxu0 0.0
    %908 = vmatpush1.msra.mxu0 %v871
    %909 = vmatprep.subr.mxu0 0.0
    %910 = vmatpush1.msra.mxu0 %v872
    %911 = vmatprep.subr.mxu0 0.0
    %912 = vmatpush1.msra.mxu0 %v873
    %913 = vmatprep.subr.mxu0 0.0
    %914 = vmatpush1.msra.mxu0 %v874
    %915 = vmatprep.subr.mxu0 0.0
    %916 = vmatpush1.msra.mxu0 %v875
    %917 = vmatprep.subr.mxu0 0.0
    %918 = vmatpush1.msra.mxu0 %v876
    %919 = vmatprep.subr.mxu0 0.0
    %920 = vmatpush1.msra.mxu0 %v877
    %921 = vmatprep.subr.mxu0 0.0
    %922 = vmatpush1.msra.mxu0 %v878
    %923 = vmatprep.subr.mxu0 0.0
    %924 = vmatpush1.msra.mxu0 %v879
    %925 = vmatprep.subr.mxu0 0.0
    %926 = vmatpush1.msra.mxu0 %v880
    %927 = vmatprep.subr.mxu0 0.0
    %928 = vmatpush1.msra.mxu0 %v881
    %929 = vmatprep.subr.mxu0 0.0
    %930 = vmatpush1.msra.mxu0 %v882
    %931 = vmatprep.subr.mxu0 0.0
    %932 = vmatpush1.msra.mxu0 %v883
    %933 = vmatprep.subr.mxu0 0.0
    %934 = vmatpush1.msra.mxu0 %v884
    %935 = vmatprep.subr.mxu0 0.0
    %936 = vmatpush1.msra.mxu0 %v885
    %937 = vmatprep.subr.mxu0 0.0
    %938 = vmatpush1.msra.mxu0 %v886
    %939 = vmatprep.subr.mxu0 0.0
    %940 = vmatpush1.msra.mxu0 %v887
    %941 = vmatprep.subr.mxu0 0.0
    %942 = vmatpush1.msra.mxu0 %v888
    %943 = vmatprep.subr.mxu0 0.0
    %944 = vmatpush1.msra.mxu0 %v889
    %945 = vmatprep.subr.mxu0 0.0
    %946 = vmatpush1.msra.mxu0 %v890
    %947 = vmatprep.subr.mxu0 0.0
    %948 = vmatpush1.msra.mxu0 %v891
    %949 = vmatprep.subr.mxu0 0.0
    %950 = vmatpush1.msra.mxu0 %v892
    %951 = vmatprep.subr.mxu0 0.0
    %952 = vmatpush1.msra.mxu0 %v893
    %953 = vmatprep.subr.mxu0 0.0
    %954 = vmatpush1.msra.mxu0 %v894
    %955 = vmatprep.subr.mxu0 0.0
    %956 = vmatpush1.msra.mxu0 %v895
    %957 = vmatprep.subr.mxu0 0.0
    %958 = vmatpush1.msra.mxu0 %v896
    %959 = vmatprep.subr.mxu0 0.0
    %960 = vmatpush1.msra.mxu0 %v897
    %961 = vmatprep.subr.mxu0 0.0
    %962 = vmatpush1.msra.mxu0 %v898
    %963 = vmatprep.mubr.f32.mxu0 %v866
    %964 = vmatmul.mubr.f32.gmra.mrb[0].mxu0 %v865
    %v965 = vpop.f32.mrb[0].mxu0
    %v966 = vadd.f32 0.0, %v965
    %v967 = vpop.f32.mrb[0].mxu0
    %968 = vdwg.mxu0
    %v969 = vadd.f32 %v574, %v966
    %v970 = vld [vmem:[#allocation20 + $0x4] ss:$0 sm:$0xff]
    %v971 = vadd.f32 %v969, %v970
    %v972 = vld [vmem:[#allocation20 + $0x5] ss:$0 sm:$0xff]
    %v973 = vld [vmem:[#allocation20 + $0x6] ss:$0 sm:$0xff]
    %974 = vmatprep.subr.mxu0 0.0
    %975 = vmatpush1.msra.mxu0 %v577
    %976 = vmatprep.subr.mxu0 0.0
    %977 = vmatpush1.msra.mxu0 %v578
    %978 = vmatprep.subr.mxu0 0.0
    %979 = vmatpush1.msra.mxu0 %v579
    %980 = vmatprep.subr.mxu0 0.0
    %981 = vmatpush1.msra.mxu0 %v580
    %982 = vmatprep.subr.mxu0 0.0
    %983 = vmatpush1.msra.mxu0 %v581
    %984 = vmatprep.subr.mxu0 0.0
    %985 = vmatpush1.msra.mxu0 %v582
    %986 = vmatprep.subr.mxu0 0.0
    %987 = vmatpush1.msra.mxu0 %v583
    %988 = vmatprep.subr.mxu0 0.0
    %989 = vmatpush1.msra.mxu0 %v584
    %990 = vmatprep.subr.mxu0 0.0
    %991 = vmatpush1.msra.mxu0 %v585
    %992 = vmatprep.subr.mxu0 0.0
    %993 = vmatpush1.msra.mxu0 %v586
    %994 = vmatprep.subr.mxu0 0.0
    %995 = vmatpush1.msra.mxu0 %v587
    %996 = vmatprep.subr.mxu0 0.0
    %997 = vmatpush1.msra.mxu0 %v588
    %998 = vmatprep.subr.mxu0 0.0
    %999 = vmatpush1.msra.mxu0 %v589
    %1000 = vmatprep.subr.mxu0 0.0
    %1001 = vmatpush1.msra.mxu0 %v590
    %1002 = vmatprep.subr.mxu0 0.0
    %1003 = vmatpush1.msra.mxu0 %v591
    %1004 = vmatprep.subr.mxu0 0.0
    %1005 = vmatpush1.msra.mxu0 %v592
    %1006 = vmatprep.subr.mxu0 0.0
    %1007 = vmatpush1.msra.mxu0 0.0
    %1008 = vmatprep.subr.mxu0 0.0
    %1009 = vmatpush1.msra.mxu0 0.0
    %1010 = vmatprep.subr.mxu0 0.0
    %1011 = vmatpush1.msra.mxu0 0.0
    %1012 = vmatprep.subr.mxu0 0.0
    %1013 = vmatpush1.msra.mxu0 0.0
    %1014 = vmatprep.subr.mxu0 0.0
    %1015 = vmatpush1.msra.mxu0 0.0
    %1016 = vmatprep.subr.mxu0 0.0
    %1017 = vmatpush1.msra.mxu0 0.0
    %1018 = vmatprep.subr.mxu0 0.0
    %1019 = vmatpush1.msra.mxu0 0.0
    %1020 = vmatprep.subr.mxu0 0.0
    %1021 = vmatpush1.msra.mxu0 0.0
    %1022 = vmatprep.subr.mxu0 0.0
    %1023 = vmatpush1.msra.mxu0 0.0
    %1024 = vmatprep.subr.mxu0 0.0
    %1025 = vmatpush1.msra.mxu0 0.0
    %1026 = vmatprep.subr.mxu0 0.0
    %1027 = vmatpush1.msra.mxu0 0.0
    %1028 = vmatprep.subr.mxu0 0.0
    %1029 = vmatpush1.msra.mxu0 0.0
    %1030 = vmatprep.subr.mxu0 0.0
    %1031 = vmatpush1.msra.mxu0 0.0
    %1032 = vmatprep.subr.mxu0 0.0
    %1033 = vmatpush1.msra.mxu0 0.0
    %1034 = vmatprep.subr.mxu0 0.0
    %1035 = vmatpush1.msra.mxu0 0.0
    %1036 = vmatprep.subr.mxu0 0.0
    %1037 = vmatpush1.msra.mxu0 0.0
    %1038 = vmatprep.mubr.f32.mxu0 0.0
    %1039 = vmatmul.mubr.f32.gmra.mrb[0].mxu0 %v971
    %v1040 = vpop.f32.mrb[0].mxu0
    %v1041 = vadd.f32 0.0, %v1040
    %v1042 = vpop.f32.mrb[0].mxu0
    %1043 = vdwg.mxu0
    %v1044 = vsub.f32 %v971, %v1041
    %v1045 = vmul.f32 %v1044, %v1044
    %1046 = vmatprep.subr.mxu0 0.0
    %1047 = vmatpush1.msra.mxu0 %v577
    %1048 = vmatprep.subr.mxu0 0.0
    %1049 = vmatpush1.msra.mxu0 %v578
    %1050 = vmatprep.subr.mxu0 0.0
    %1051 = vmatpush1.msra.mxu0 %v579
    %1052 = vmatprep.subr.mxu0 0.0
    %1053 = vmatpush1.msra.mxu0 %v580
    %1054 = vmatprep.subr.mxu0 0.0
    %1055 = vmatpush1.msra.mxu0 %v581
    %1056 = vmatprep.subr.mxu0 0.0
    %1057 = vmatpush1.msra.mxu0 %v582
    %1058 = vmatprep.subr.mxu0 0.0
    %1059 = vmatpush1.msra.mxu0 %v583
    %1060 = vmatprep.subr.mxu0 0.0
    %1061 = vmatpush1.msra.mxu0 %v584
    %1062 = vmatprep.subr.mxu0 0.0
    %1063 = vmatpush1.msra.mxu0 %v585
    %1064 = vmatprep.subr.mxu0 0.0
    %1065 = vmatpush1.msra.mxu0 %v586
    %1066 = vmatprep.subr.mxu0 0.0
    %1067 = vmatpush1.msra.mxu0 %v587
    %1068 = vmatprep.subr.mxu0 0.0
    %1069 = vmatpush1.msra.mxu0 %v588
    %1070 = vmatprep.subr.mxu0 0.0
    %1071 = vmatpush1.msra.mxu0 %v589
    %1072 = vmatprep.subr.mxu0 0.0
    %1073 = vmatpush1.msra.mxu0 %v590
    %1074 = vmatprep.subr.mxu0 0.0
    %1075 = vmatpush1.msra.mxu0 %v591
    %1076 = vmatprep.subr.mxu0 0.0
    %1077 = vmatpush1.msra.mxu0 %v592
    %1078 = vmatprep.subr.mxu0 0.0
    %1079 = vmatpush1.msra.mxu0 0.0
    %1080 = vmatprep.subr.mxu0 0.0
    %1081 = vmatpush1.msra.mxu0 0.0
    %1082 = vmatprep.subr.mxu0 0.0
    %1083 = vmatpush1.msra.mxu0 0.0
    %1084 = vmatprep.subr.mxu0 0.0
    %1085 = vmatpush1.msra.mxu0 0.0
    %1086 = vmatprep.subr.mxu0 0.0
    %1087 = vmatpush1.msra.mxu0 0.0
    %1088 = vmatprep.subr.mxu0 0.0
    %1089 = vmatpush1.msra.mxu0 0.0
    %1090 = vmatprep.subr.mxu0 0.0
    %1091 = vmatpush1.msra.mxu0 0.0
    %1092 = vmatprep.subr.mxu0 0.0
    %1093 = vmatpush1.msra.mxu0 0.0
    %1094 = vmatprep.subr.mxu0 0.0
    %1095 = vmatpush1.msra.mxu0 0.0
    %1096 = vmatprep.subr.mxu0 0.0
    %1097 = vmatpush1.msra.mxu0 0.0
    %1098 = vmatprep.subr.mxu0 0.0
    %1099 = vmatpush1.msra.mxu0 0.0
    %1100 = vmatprep.subr.mxu0 0.0
    %1101 = vmatpush1.msra.mxu0 0.0
    %1102 = vmatprep.subr.mxu0 0.0
    %1103 = vmatpush1.msra.mxu0 0.0
    %1104 = vmatprep.subr.mxu0 0.0
    %1105 = vmatpush1.msra.mxu0 0.0
    %1106 = vmatprep.subr.mxu0 0.0
    %1107 = vmatpush1.msra.mxu0 0.0
    %1108 = vmatprep.subr.mxu0 0.0
    %1109 = vmatpush1.msra.mxu0 0.0
    %1110 = vmatprep.mubr.f32.mxu0 0.0
    %1111 = vmatmul.mubr.f32.gmra.mrb[0].mxu0 %v1045
    %v1112 = vpop.f32.mrb[0].mxu0
    %v1113 = vadd.f32 1e-05, %v1112
    %v1114 = vpop.f32.mrb[0].mxu0
    %1115 = vdwg.mxu0
    %v1116 = vrsqrt.pop %v1113
    %v1117 = vmul.f32 %v1044, %v1116
    %v1118 = vmul.f32 %v1117, %v972
    %v1119 = vadd.f32 %v1118, %v973
    %v1120 = vld [vmem:[#allocation8] sm:$0xff]
    %v1121 = vld [vmem:[#allocation8 + $0x8] sm:$0xff]
    %v1122 = vld [vmem:[#allocation8 + $0x10] sm:$0xff]
    %v1123 = vld [vmem:[#allocation8 + $0x18] sm:$0xff]
    %v1124 = vld [vmem:[#allocation8 + $0x20] sm:$0xff]
    %v1125 = vld [vmem:[#allocation8 + $0x28] sm:$0xff]
    %v1126 = vld [vmem:[#allocation8 + $0x30] sm:$0xff]
    %v1127 = vld [vmem:[#allocation8 + $0x38] sm:$0xff]
    %v1128 = vld [vmem:[#allocation8 + $0x40] sm:$0xff]
    %v1129 = vld [vmem:[#allocation8 + $0x48] sm:$0xff]
    %v1130 = vld [vmem:[#allocation8 + $0x50] sm:$0xff]
    %v1131 = vld [vmem:[#allocation8 + $0x58] sm:$0xff]
    %v1132 = vld [vmem:[#allocation8 + $0x60] sm:$0xff]
    %v1133 = vld [vmem:[#allocation8 + $0x68] sm:$0xff]
    %v1134 = vld [vmem:[#allocation8 + $0x70] sm:$0xff]
    %v1135 = vld [vmem:[#allocation8 + $0x78] sm:$0xff]
    %v1136 = vld [vmem:[#allocation8 + $0x80] sm:$0xff]
    %v1137 = vld [vmem:[#allocation8 + $0x88] sm:$0xff]
    %v1138 = vld [vmem:[#allocation8 + $0x90] sm:$0xff]
    %v1139 = vld [vmem:[#allocation8 + $0x98] sm:$0xff]
    %v1140 = vld [vmem:[#allocation8 + $0xa0] sm:$0xff]
    %v1141 = vld [vmem:[#allocation8 + $0xa8] sm:$0xff]
    %v1142 = vld [vmem:[#allocation8 + $0xb0] sm:$0xff]
    %v1143 = vld [vmem:[#allocation8 + $0xb8] sm:$0xff]
    %v1144 = vld [vmem:[#allocation8 + $0xc0] sm:$0xff]
    %v1145 = vld [vmem:[#allocation8 + $0xc8] sm:$0xff]
    %v1146 = vld [vmem:[#allocation8 + $0xd0] sm:$0xff]
    %v1147 = vld [vmem:[#allocation8 + $0xd8] sm:$0xff]
    %v1148 = vld [vmem:[#allocation8 + $0xe0] sm:$0xff]
    %v1149 = vld [vmem:[#allocation8 + $0xe8] sm:$0xff]
    %v1150 = vld [vmem:[#allocation8 + $0xf0] sm:$0xff]
    %v1151 = vld [vmem:[#allocation8 + $0xf8] sm:$0xff]
    %s1152 = scalar_lea.vmem [#allocation20], 7
    %v1153 = vld [vmem:[%s1152] ss:$8 sm:$0x3]
    %v1155 = vlaneseq
    %v1156 = vshrl.u32 %v1155, 7
    %v1157 = vsub.s32 0, %v1156
    %v1158 = vrot.slane %v1153, %v1157
    %v1159 = vlaneseq
    %v1160 = vshrl.u32 %v1159, 7
    %v1161 = vsub.s32 1, %v1160
    %v1162 = vrot.slane %v1153, %v1161
    %1165 = vmatprep.subr.mxu0 %v1121
    %1166 = vmatpush1.msra.mxu0 %v1120
    %1167 = vmatprep.subr.mxu0 %v1123
    %1168 = vmatpush1.msra.mxu0 %v1122
    %1169 = vmatprep.subr.mxu0 %v1125
    %1170 = vmatpush1.msra.mxu0 %v1124
    %1171 = vmatprep.subr.mxu0 %v1127
    %1172 = vmatpush1.msra.mxu0 %v1126
    %1173 = vmatprep.subr.mxu0 %v1129
    %1174 = vmatpush1.msra.mxu0 %v1128
    %1175 = vmatprep.subr.mxu0 %v1131
    %1176 = vmatpush1.msra.mxu0 %v1130
    %1177 = vmatprep.subr.mxu0 %v1133
    %1178 = vmatpush1.msra.mxu0 %v1132
    %1179 = vmatprep.subr.mxu0 %v1135
    %1180 = vmatpush1.msra.mxu0 %v1134
    %1181 = vmatprep.subr.mxu0 %v1137
    %1182 = vmatpush1.msra.mxu0 %v1136
    %1183 = vmatprep.subr.mxu0 %v1139
    %1184 = vmatpush1.msra.mxu0 %v1138
    %1185 = vmatprep.subr.mxu0 %v1141
    %1186 = vmatpush1.msra.mxu0 %v1140
    %1187 = vmatprep.subr.mxu0 %v1143
    %1188 = vmatpush1.msra.mxu0 %v1142
    %1189 = vmatprep.subr.mxu0 %v1145
    %1190 = vmatpush1.msra.mxu0 %v1144
    %1191 = vmatprep.subr.mxu0 %v1147
    %1192 = vmatpush1.msra.mxu0 %v1146
    %1193 = vmatprep.subr.mxu0 %v1149
    %1194 = vmatpush1.msra.mxu0 %v1148
    %1195 = vmatprep.subr.mxu0 %v1151
    %1196 = vmatpush1.msra.mxu0 %v1150
    %1197 = vmatprep.subr.mxu0 0.0
    %1198 = vmatpush1.msra.mxu0 0.0
    %1199 = vmatprep.subr.mxu0 0.0
    %1200 = vmatpush1.msra.mxu0 0.0
    %1201 = vmatprep.subr.mxu0 0.0
    %1202 = vmatpush1.msra.mxu0 0.0
    %1203 = vmatprep.subr.mxu0 0.0
    %1204 = vmatpush1.msra.mxu0 0.0
    %1205 = vmatprep.subr.mxu0 0.0
    %1206 = vmatpush1.msra.mxu0 0.0
    %1207 = vmatprep.subr.mxu0 0.0
    %1208 = vmatpush1.msra.mxu0 0.0
    %1209 = vmatprep.subr.mxu0 0.0
    %1210 = vmatpush1.msra.mxu0 0.0
    %1211 = vmatprep.subr.mxu0 0.0
    %1212 = vmatpush1.msra.mxu0 0.0
    %1213 = vmatprep.subr.mxu0 0.0
    %1214 = vmatpush1.msra.mxu0 0.0
    %1215 = vmatprep.subr.mxu0 0.0
    %1216 = vmatpush1.msra.mxu0 0.0
    %1217 = vmatprep.subr.mxu0 0.0
    %1218 = vmatpush1.msra.mxu0 0.0
    %1219 = vmatprep.subr.mxu0 0.0
    %1220 = vmatpush1.msra.mxu0 0.0
    %1221 = vmatprep.subr.mxu0 0.0
    %1222 = vmatpush1.msra.mxu0 0.0
    %1223 = vmatprep.subr.mxu0 0.0
    %1224 = vmatpush1.msra.mxu0 0.0
    %1225 = vmatprep.subr.mxu0 0.0
    %1226 = vmatpush1.msra.mxu0 0.0
    %1227 = vmatprep.subr.mxu0 0.0
    %1228 = vmatpush1.msra.mxu0 0.0
    %1229 = vmatprep.mubr.f32.mxu0 0.0
    %1230 = vmatmul.mubr.f32.gmra.mrb[0].mxu0 %v1119
    %v1231 = vpop.f32.mrb[0].mxu0
    %v1232 = vadd.f32 %v1158, %v1231
    %v1233 = vpop.f32.mrb[0].mxu0
    %v1234 = vadd.f32 %v1162, %v1233
    %1235 = vdwg.mxu0
    %v1236 = vmul.f32 %v1232, 0.5
    %v1237 = vmul.f32 %v1234, 0.5
    %v1238 = vmul.f32 %v1232, 0.70710677
    %v1239 = vmul.f32 %v1234, 0.70710677
    %v1240 = verf.f32.pop %v1238
    %v1241 = verf.f32.pop %v1239
    %v1242 = vadd.f32 %v1240, 1.0
    %v1243 = vadd.f32 %v1241, 1.0
    %v1244 = vmul.f32 %v1236, %v1242
    %v1245 = vmul.f32 %v1237, %v1243
    %v1246 = vld [vmem:[#allocation10] sm:$0xff]
    %v1247 = vld [vmem:[#allocation10 + $0x8] sm:$0xff]
    %v1248 = vld [vmem:[#allocation10 + $0x10] sm:$0xff]
    %v1249 = vld [vmem:[#allocation10 + $0x18] sm:$0xff]
    %v1250 = vld [vmem:[#allocation10 + $0x20] sm:$0xff]
    %v1251 = vld [vmem:[#allocation10 + $0x28] sm:$0xff]
    %v1252 = vld [vmem:[#allocation10 + $0x30] sm:$0xff]
    %v1253 = vld [vmem:[#allocation10 + $0x38] sm:$0xff]
    %v1254 = vld [vmem:[#allocation10 + $0x40] sm:$0xff]
    %v1255 = vld [vmem:[#allocation10 + $0x48] sm:$0xff]
    %v1256 = vld [vmem:[#allocation10 + $0x50] sm:$0xff]
    %v1257 = vld [vmem:[#allocation10 + $0x58] sm:$0xff]
    %v1258 = vld [vmem:[#allocation10 + $0x60] sm:$0xff]
    %v1259 = vld [vmem:[#allocation10 + $0x68] sm:$0xff]
    %v1260 = vld [vmem:[#allocation10 + $0x70] sm:$0xff]
    %v1261 = vld [vmem:[#allocation10 + $0x78] sm:$0xff]
    %v1262 = vld [vmem:[#allocation10 + $0x80] sm:$0xff]
    %v1263 = vld [vmem:[#allocation10 + $0x88] sm:$0xff]
    %v1264 = vld [vmem:[#allocation10 + $0x90] sm:$0xff]
    %v1265 = vld [vmem:[#allocation10 + $0x98] sm:$0xff]
    %v1266 = vld [vmem:[#allocation10 + $0xa0] sm:$0xff]
    %v1267 = vld [vmem:[#allocation10 + $0xa8] sm:$0xff]
    %v1268 = vld [vmem:[#allocation10 + $0xb0] sm:$0xff]
    %v1269 = vld [vmem:[#allocation10 + $0xb8] sm:$0xff]
    %v1270 = vld [vmem:[#allocation10 + $0xc0] sm:$0xff]
    %v1271 = vld [vmem:[#allocation10 + $0xc8] sm:$0xff]
    %v1272 = vld [vmem:[#allocation10 + $0xd0] sm:$0xff]
    %v1273 = vld [vmem:[#allocation10 + $0xd8] sm:$0xff]
    %v1274 = vld [vmem:[#allocation10 + $0xe0] sm:$0xff]
    %v1275 = vld [vmem:[#allocation10 + $0xe8] sm:$0xff]
    %v1276 = vld [vmem:[#allocation10 + $0xf0] sm:$0xff]
    %v1277 = vld [vmem:[#allocation10 + $0xf8] sm:$0xff]
    %1278 = vmatprep.subr.mxu0 0.0
    %1279 = vmatpush1.msra.mxu0 %v1246
    %1280 = vmatprep.subr.mxu0 0.0
    %1281 = vmatpush1.msra.mxu0 %v1247
    %1282 = vmatprep.subr.mxu0 0.0
    %1283 = vmatpush1.msra.mxu0 %v1248
    %1284 = vmatprep.subr.mxu0 0.0
    %1285 = vmatpush1.msra.mxu0 %v1249
    %1286 = vmatprep.subr.mxu0 0.0
    %1287 = vmatpush1.msra.mxu0 %v1250
    %1288 = vmatprep.subr.mxu0 0.0
    %1289 = vmatpush1.msra.mxu0 %v1251
    %1290 = vmatprep.subr.mxu0 0.0
    %1291 = vmatpush1.msra.mxu0 %v1252
    %1292 = vmatprep.subr.mxu0 0.0
    %1293 = vmatpush1.msra.mxu0 %v1253
    %1294 = vmatprep.subr.mxu0 0.0
    %1295 = vmatpush1.msra.mxu0 %v1254
    %1296 = vmatprep.subr.mxu0 0.0
    %1297 = vmatpush1.msra.mxu0 %v1255
    %1298 = vmatprep.subr.mxu0 0.0
    %1299 = vmatpush1.msra.mxu0 %v1256
    %1300 = vmatprep.subr.mxu0 0.0
    %1301 = vmatpush1.msra.mxu0 %v1257
    %1302 = vmatprep.subr.mxu0 0.0
    %1303 = vmatpush1.msra.mxu0 %v1258
    %1304 = vmatprep.subr.mxu0 0.0
    %1305 = vmatpush1.msra.mxu0 %v1259
    %1306 = vmatprep.subr.mxu0 0.0
    %1307 = vmatpush1.msra.mxu0 %v1260
    %1308 = vmatprep.subr.mxu0 0.0
    %1309 = vmatpush1.msra.mxu0 %v1261
    %1310 = vmatprep.subr.mxu0 0.0
    %1311 = vmatpush1.msra.mxu0 %v1262
    %1312 = vmatprep.subr.mxu0 0.0
    %1313 = vmatpush1.msra.mxu0 %v1263
    %1314 = vmatprep.subr.mxu0 0.0
    %1315 = vmatpush1.msra.mxu0 %v1264
    %1316 = vmatprep.subr.mxu0 0.0
    %1317 = vmatpush1.msra.mxu0 %v1265
    %1318 = vmatprep.subr.mxu0 0.0
    %1319 = vmatpush1.msra.mxu0 %v1266
    %1320 = vmatprep.subr.mxu0 0.0
    %1321 = vmatpush1.msra.mxu0 %v1267
    %1322 = vmatprep.subr.mxu0 0.0
    %1323 = vmatpush1.msra.mxu0 %v1268
    %1324 = vmatprep.subr.mxu0 0.0
    %1325 = vmatpush1.msra.mxu0 %v1269
    %1326 = vmatprep.subr.mxu0 0.0
    %1327 = vmatpush1.msra.mxu0 %v1270
    %1328 = vmatprep.subr.mxu0 0.0
    %1329 = vmatpush1.msra.mxu0 %v1271
    %1330 = vmatprep.subr.mxu0 0.0
    %1331 = vmatpush1.msra.mxu0 %v1272
    %1332 = vmatprep.subr.mxu0 0.0
    %1333 = vmatpush1.msra.mxu0 %v1273
    %1334 = vmatprep.subr.mxu0 0.0
    %1335 = vmatpush1.msra.mxu0 %v1274
    %1336 = vmatprep.subr.mxu0 0.0
    %1337 = vmatpush1.msra.mxu0 %v1275
    %1338 = vmatprep.subr.mxu0 0.0
    %1339 = vmatpush1.msra.mxu0 %v1276
    %1340 = vmatprep.subr.mxu0 0.0
    %1341 = vmatpush1.msra.mxu0 %v1277
    %1342 = vmatprep.mubr.f32.mxu0 %v1245
    %1343 = vmatmul.mubr.f32.gmra.mrb[0].mxu0 %v1244
    %v1344 = vpop.f32.mrb[0].mxu0
    %v1345 = vadd.f32 0.0, %v1344
    %v1346 = vpop.f32.mrb[0].mxu0
    %1347 = vdwg.mxu0
    %v1348 = vadd.f32 %v971, %v1345
    %v1349 = vld [vmem:[#allocation20 + $0x20] ss:$0 sm:$0xff]
    %v1350 = vadd.f32 %v1348, %v1349
    %v1351 = vld [vmem:[#allocation20 + $0x21] ss:$0 sm:$0xff]
    %v1352 = vld [vmem:[#allocation20 + $0x22] ss:$0 sm:$0xff]
    %1353 = vmatprep.subr.mxu0 0.0
    %1354 = vmatpush1.msra.mxu0 %v577
    %1355 = vmatprep.subr.mxu0 0.0
    %1356 = vmatpush1.msra.mxu0 %v578
    %1357 = vmatprep.subr.mxu0 0.0
    %1358 = vmatpush1.msra.mxu0 %v579
    %1359 = vmatprep.subr.mxu0 0.0
    %1360 = vmatpush1.msra.mxu0 %v580
    %1361 = vmatprep.subr.mxu0 0.0
    %1362 = vmatpush1.msra.mxu0 %v581
    %1363 = vmatprep.subr.mxu0 0.0
    %1364 = vmatpush1.msra.mxu0 %v582
    %1365 = vmatprep.subr.mxu0 0.0
    %1366 = vmatpush1.msra.mxu0 %v583
    %1367 = vmatprep.subr.mxu0 0.0
    %1368 = vmatpush1.msra.mxu0 %v584
    %1369 = vmatprep.subr.mxu0 0.0
    %1370 = vmatpush1.msra.mxu0 %v585
    %1371 = vmatprep.subr.mxu0 0.0
    %1372 = vmatpush1.msra.mxu0 %v586
    %1373 = vmatprep.subr.mxu0 0.0
    %1374 = vmatpush1.msra.mxu0 %v587
    %1375 = vmatprep.subr.mxu0 0.0
    %1376 = vmatpush1.msra.mxu0 %v588
    %1377 = vmatprep.subr.mxu0 0.0
    %1378 = vmatpush1.msra.mxu0 %v589
    %1379 = vmatprep.subr.mxu0 0.0
    %1380 = vmatpush1.msra.mxu0 %v590
    %1381 = vmatprep.subr.mxu0 0.0
    %1382 = vmatpush1.msra.mxu0 %v591
    %1383 = vmatprep.subr.mxu0 0.0
    %1384 = vmatpush1.msra.mxu0 %v592
    %1385 = vmatprep.subr.mxu0 0.0
    %1386 = vmatpush1.msra.mxu0 0.0
    %1387 = vmatprep.subr.mxu0 0.0
    %1388 = vmatpush1.msra.mxu0 0.0
    %1389 = vmatprep.subr.mxu0 0.0
    %1390 = vmatpush1.msra.mxu0 0.0
    %1391 = vmatprep.subr.mxu0 0.0
    %1392 = vmatpush1.msra.mxu0 0.0
    %1393 = vmatprep.subr.mxu0 0.0
    %1394 = vmatpush1.msra.mxu0 0.0
    %1395 = vmatprep.subr.mxu0 0.0
    %1396 = vmatpush1.msra.mxu0 0.0
    %1397 = vmatprep.subr.mxu0 0.0
    %1398 = vmatpush1.msra.mxu0 0.0
    %1399 = vmatprep.subr.mxu0 0.0
    %1400 = vmatpush1.msra.mxu0 0.0
    %1401 = vmatprep.subr.mxu0 0.0
    %1402 = vmatpush1.msra.mxu0 0.0
    %1403 = vmatprep.subr.mxu0 0.0
    %1404 = vmatpush1.msra.mxu0 0.0
    %1405 = vmatprep.subr.mxu0 0.0
    %1406 = vmatpush1.msra.mxu0 0.0
    %1407 = vmatprep.subr.mxu0 0.0
    %1408 = vmatpush1.msra.mxu0 0.0
    %1409 = vmatprep.subr.mxu0 0.0
    %1410 = vmatpush1.msra.mxu0 0.0
    %1411 = vmatprep.subr.mxu0 0.0
    %1412 = vmatpush1.msra.mxu0 0.0
    %1413 = vmatprep.subr.mxu0 0.0
    %1414 = vmatpush1.msra.mxu0 0.0
    %1415 = vmatprep.subr.mxu0 0.0
    %1416 = vmatpush1.msra.mxu0 0.0
    %1417 = vmatprep.mubr.f32.mxu0 0.0
    %1418 = vmatmul.mubr.f32.gmra.mrb[0].mxu0 %v1350
    %v1419 = vpop.f32.mrb[0].mxu0
    %v1420 = vadd.f32 0.0, %v1419
    %v1421 = vpop.f32.mrb[0].mxu0
    %1422 = vdwg.mxu0
    %v1423 = vsub.f32 %v1350, %v1420
    %v1424 = vmul.f32 %v1423, %v1423
    %1425 = vmatprep.subr.mxu0 0.0
    %1426 = vmatpush1.msra.mxu0 %v577
    %1427 = vmatprep.subr.mxu0 0.0
    %1428 = vmatpush1.msra.mxu0 %v578
    %1429 = vmatprep.subr.mxu0 0.0
    %1430 = vmatpush1.msra.mxu0 %v579
    %1431 = vmatprep.subr.mxu0 0.0
    %1432 = vmatpush1.msra.mxu0 %v580
    %1433 = vmatprep.subr.mxu0 0.0
    %1434 = vmatpush1.msra.mxu0 %v581
    %1435 = vmatprep.subr.mxu0 0.0
    %1436 = vmatpush1.msra.mxu0 %v582
    %1437 = vmatprep.subr.mxu0 0.0
    %1438 = vmatpush1.msra.mxu0 %v583
    %1439 = vmatprep.subr.mxu0 0.0
    %1440 = vmatpush1.msra.mxu0 %v584
    %1441 = vmatprep.subr.mxu0 0.0
    %1442 = vmatpush1.msra.mxu0 %v585
    %1443 = vmatprep.subr.mxu0 0.0
    %1444 = vmatpush1.msra.mxu0 %v586
    %1445 = vmatprep.subr.mxu0 0.0
    %1446 = vmatpush1.msra.mxu0 %v587
    %1447 = vmatprep.subr.mxu0 0.0
    %1448 = vmatpush1.msra.mxu0 %v588
    %1449 = vmatprep.subr.mxu0 0.0
    %1450 = vmatpush1.msra.mxu0 %v589
    %1451 = vmatprep.subr.mxu0 0.0
    %1452 = vmatpush1.msra.mxu0 %v590
    %1453 = vmatprep.subr.mxu0 0.0
    %1454 = vmatpush1.msra.mxu0 %v591
    %1455 = vmatprep.subr.mxu0 0.0
    %1456 = vmatpush1.msra.mxu0 %v592
    %1457 = vmatprep.subr.mxu0 0.0
    %1458 = vmatpush1.msra.mxu0 0.0
    %1459 = vmatprep.subr.mxu0 0.0
    %1460 = vmatpush1.msra.mxu0 0.0
    %1461 = vmatprep.subr.mxu0 0.0
    %1462 = vmatpush1.msra.mxu0 0.0
    %1463 = vmatprep.subr.mxu0 0.0
    %1464 = vmatpush1.msra.mxu0 0.0
    %1465 = vmatprep.subr.mxu0 0.0
    %1466 = vmatpush1.msra.mxu0 0.0
    %1467 = vmatprep.subr.mxu0 0.0
    %1468 = vmatpush1.msra.mxu0 0.0
    %1469 = vmatprep.subr.mxu0 0.0
    %1470 = vmatpush1.msra.mxu0 0.0
    %1471 = vmatprep.subr.mxu0 0.0
    %1472 = vmatpush1.msra.mxu0 0.0
    %1473 = vmatprep.subr.mxu0 0.0
    %1474 = vmatpush1.msra.mxu0 0.0
    %1475 = vmatprep.subr.mxu0 0.0
    %1476 = vmatpush1.msra.mxu0 0.0
    %1477 = vmatprep.subr.mxu0 0.0
    %1478 = vmatpush1.msra.mxu0 0.0
    %1479 = vmatprep.subr.mxu0 0.0
    %1480 = vmatpush1.msra.mxu0 0.0
    %1481 = vmatprep.subr.mxu0 0.0
    %1482 = vmatpush1.msra.mxu0 0.0
    %1483 = vmatprep.subr.mxu0 0.0
    %1484 = vmatpush1.msra.mxu0 0.0
    %1485 = vmatprep.subr.mxu0 0.0
    %1486 = vmatpush1.msra.mxu0 0.0
    %1487 = vmatprep.subr.mxu0 0.0
    %1488 = vmatpush1.msra.mxu0 0.0
    %1489 = vmatprep.mubr.f32.mxu0 0.0
    %1490 = vmatmul.mubr.f32.gmra.mrb[0].mxu0 %v1424
    %v1491 = vpop.f32.mrb[0].mxu0
    %v1492 = vadd.f32 1e-05, %v1491
    %v1493 = vpop.f32.mrb[0].mxu0
    %1494 = vdwg.mxu0
    %v1495 = vrsqrt.pop %v1492
    %v1496 = vmul.f32 %v1423, %v1495
    %v1497 = vmul.f32 %v1496, %v1351
    %v1498 = vadd.f32 %v1497, %v1352
    %v1499 = vld [vmem:[%s7] sm:$0xff]
    %v1500 = vld [vmem:[%s7 + $0x8] sm:$0xff]
    %v1501 = vld [vmem:[%s7 + $0x10] sm:$0xff]
    %v1502 = vld [vmem:[%s7 + $0x18] sm:$0xff]
    %v1503 = vld [vmem:[%s7 + $0x20] sm:$0xff]
    %v1504 = vld [vmem:[%s7 + $0x28] sm:$0xff]
    %v1505 = vld [vmem:[%s7 + $0x30] sm:$0xff]
    %v1506 = vld [vmem:[%s7 + $0x38] sm:$0xff]
    %v1507 = vld [vmem:[%s7 + $0x40] sm:$0xff]
    %v1508 = vld [vmem:[%s7 + $0x48] sm:$0xff]
    %v1509 = vld [vmem:[%s7 + $0x50] sm:$0xff]
    %v1510 = vld [vmem:[%s7 + $0x58] sm:$0xff]
    %v1511 = vld [vmem:[%s7 + $0x60] sm:$0xff]
    %v1512 = vld [vmem:[%s7 + $0x68] sm:$0xff]
    %v1513 = vld [vmem:[%s7 + $0x70] sm:$0xff]
    %v1514 = vld [vmem:[%s7 + $0x78] sm:$0xff]
    %v1515 = vld [vmem:[%s7 + $0x80] sm:$0xff]
    %v1516 = vld [vmem:[%s7 + $0x88] sm:$0xff]
    %v1517 = vld [vmem:[%s7 + $0x90] sm:$0xff]
    %v1518 = vld [vmem:[%s7 + $0x98] sm:$0xff]
    %v1519 = vld [vmem:[%s7 + $0xa0] sm:$0xff]
    %v1520 = vld [vmem:[%s7 + $0xa8] sm:$0xff]
    %v1521 = vld [vmem:[%s7 + $0xb0] sm:$0xff]
    %v1522 = vld [vmem:[%s7 + $0xb8] sm:$0xff]
    %v1523 = vld [vmem:[%s7 + $0xc0] sm:$0xff]
    %v1524 = vld [vmem:[%s7 + $0xc8] sm:$0xff]
    %v1525 = vld [vmem:[%s7 + $0xd0] sm:$0xff]
    %v1526 = vld [vmem:[%s7 + $0xd8] sm:$0xff]
    %v1527 = vld [vmem:[%s7 + $0xe0] sm:$0xff]
    %v1528 = vld [vmem:[%s7 + $0xe8] sm:$0xff]
    %v1529 = vld [vmem:[%s7 + $0xf0] sm:$0xff]
    %v1530 = vld [vmem:[%s7 + $0xf8] sm:$0xff]
    %v1531 = vld [vmem:[%s7 + $0x100] sm:$0xff]
    %v1532 = vld [vmem:[%s7 + $0x108] sm:$0xff]
    %v1533 = vld [vmem:[%s7 + $0x110] sm:$0xff]
    %v1534 = vld [vmem:[%s7 + $0x118] sm:$0xff]
    %v1535 = vld [vmem:[%s7 + $0x120] sm:$0xff]
    %v1536 = vld [vmem:[%s7 + $0x128] sm:$0xff]
    %v1537 = vld [vmem:[%s7 + $0x130] sm:$0xff]
    %v1538 = vld [vmem:[%s7 + $0x138] sm:$0xff]
    %v1539 = vld [vmem:[%s7 + $0x140] sm:$0xff]
    %v1540 = vld [vmem:[%s7 + $0x148] sm:$0xff]
    %v1541 = vld [vmem:[%s7 + $0x150] sm:$0xff]
    %v1542 = vld [vmem:[%s7 + $0x158] sm:$0xff]
    %v1543 = vld [vmem:[%s7 + $0x160] sm:$0xff]
    %v1544 = vld [vmem:[%s7 + $0x168] sm:$0xff]
    %v1545 = vld [vmem:[%s7 + $0x170] sm:$0xff]
    %v1546 = vld [vmem:[%s7 + $0x178] sm:$0xff]
    %v1547 = vld [vmem:[%s7 + $0x180] sm:$0xff]
    %v1548 = vld [vmem:[%s7 + $0x188] sm:$0xff]
    %v1549 = vld [vmem:[%s7 + $0x190] sm:$0xff]
    %v1550 = vld [vmem:[%s7 + $0x198] sm:$0xff]
    %v1551 = vld [vmem:[%s7 + $0x1a0] sm:$0xff]
    %v1552 = vld [vmem:[%s7 + $0x1a8] sm:$0xff]
    %v1553 = vld [vmem:[%s7 + $0x1b0] sm:$0xff]
    %v1554 = vld [vmem:[%s7 + $0x1b8] sm:$0xff]
    %v1555 = vld [vmem:[%s7 + $0x1c0] sm:$0xff]
    %v1556 = vld [vmem:[%s7 + $0x1c8] sm:$0xff]
    %v1557 = vld [vmem:[%s7 + $0x1d0] sm:$0xff]
    %v1558 = vld [vmem:[%s7 + $0x1d8] sm:$0xff]
    %v1559 = vld [vmem:[%s7 + $0x1e0] sm:$0xff]
    %v1560 = vld [vmem:[%s7 + $0x1e8] sm:$0xff]
    %v1561 = vld [vmem:[%s7 + $0x1f0] sm:$0xff]
    %v1562 = vld [vmem:[%s7 + $0x1f8] sm:$0xff]
    %s1563 = scalar_lea.vmem [#allocation20], 35
    %v1564 = vld [vmem:[%s1563] ss:$8 sm:$0xf]
    %v1566 = vlaneseq
    %v1567 = vshrl.u32 %v1566, 7
    %v1568 = vsub.s32 0, %v1567
    %v1569 = vrot.slane %v1564, %v1568
    %v1570 = vlaneseq
    %v1571 = vshrl.u32 %v1570, 7
    %v1572 = vsub.s32 1, %v1571
    %v1573 = vrot.slane %v1564, %v1572
    %v1574 = vlaneseq
    %v1575 = vshrl.u32 %v1574, 7
    %v1576 = vsub.s32 2, %v1575
    %v1577 = vrot.slane %v1564, %v1576
    %v1578 = vlaneseq
    %v1579 = vshrl.u32 %v1578, 7
    %v1580 = vsub.s32 3, %v1579
    %v1581 = vrot.slane %v1564, %v1580
    %1586 = vmatprep.subr.mxu0 %v1500
    %1587 = vmatpush1.msra.mxu0 %v1499
    %1588 = vmatprep.subr.mxu0 %v1504
    %1589 = vmatpush1.msra.mxu0 %v1503
    %1590 = vmatprep.subr.mxu0 %v1508
    %1591 = vmatpush1.msra.mxu0 %v1507
    %1592 = vmatprep.subr.mxu0 %v1512
    %1593 = vmatpush1.msra.mxu0 %v1511
    %1594 = vmatprep.subr.mxu0 %v1516
    %1595 = vmatpush1.msra.mxu0 %v1515
    %1596 = vmatprep.subr.mxu0 %v1520
    %1597 = vmatpush1.msra.mxu0 %v1519
    %1598 = vmatprep.subr.mxu0 %v1524
    %1599 = vmatpush1.msra.mxu0 %v1523
    %1600 = vmatprep.subr.mxu0 %v1528
    %1601 = vmatpush1.msra.mxu0 %v1527
    %1602 = vmatprep.subr.mxu0 %v1532
    %1603 = vmatpush1.msra.mxu0 %v1531
    %1604 = vmatprep.subr.mxu0 %v1536
    %1605 = vmatpush1.msra.mxu0 %v1535
    %1606 = vmatprep.subr.mxu0 %v1540
    %1607 = vmatpush1.msra.mxu0 %v1539
    %1608 = vmatprep.subr.mxu0 %v1544
    %1609 = vmatpush1.msra.mxu0 %v1543
    %1610 = vmatprep.subr.mxu0 %v1548
    %1611 = vmatpush1.msra.mxu0 %v1547
    %1612 = vmatprep.subr.mxu0 %v1552
    %1613 = vmatpush1.msra.mxu0 %v1551
    %1614 = vmatprep.subr.mxu0 %v1556
    %1615 = vmatpush1.msra.mxu0 %v1555
    %1616 = vmatprep.subr.mxu0 %v1560
    %1617 = vmatpush1.msra.mxu0 %v1559
    %1618 = vmatprep.subr.mxu0 0.0
    %1619 = vmatpush1.msra.mxu0 0.0
    %1620 = vmatprep.subr.mxu0 0.0
    %1621 = vmatpush1.msra.mxu0 0.0
    %1622 = vmatprep.subr.mxu0 0.0
    %1623 = vmatpush1.msra.mxu0 0.0
    %1624 = vmatprep.subr.mxu0 0.0
    %1625 = vmatpush1.msra.mxu0 0.0
    %1626 = vmatprep.subr.mxu0 0.0
    %1627 = vmatpush1.msra.mxu0 0.0
    %1628 = vmatprep.subr.mxu0 0.0
    %1629 = vmatpush1.msra.mxu0 0.0
    %1630 = vmatprep.subr.mxu0 0.0
    %1631 = vmatpush1.msra.mxu0 0.0
    %1632 = vmatprep.subr.mxu0 0.0
    %1633 = vmatpush1.msra.mxu0 0.0
    %1634 = vmatprep.subr.mxu0 0.0
    %1635 = vmatpush1.msra.mxu0 0.0
    %1636 = vmatprep.subr.mxu0 0.0
    %1637 = vmatpush1.msra.mxu0 0.0
    %1638 = vmatprep.subr.mxu0 0.0
    %1639 = vmatpush1.msra.mxu0 0.0
    %1640 = vmatprep.subr.mxu0 0.0
    %1641 = vmatpush1.msra.mxu0 0.0
    %1642 = vmatprep.subr.mxu0 0.0
    %1643 = vmatpush1.msra.mxu0 0.0
    %1644 = vmatprep.subr.mxu0 0.0
    %1645 = vmatpush1.msra.mxu0 0.0
    %1646 = vmatprep.subr.mxu0 0.0
    %1647 = vmatpush1.msra.mxu0 0.0
    %1648 = vmatprep.subr.mxu0 0.0
    %1649 = vmatpush1.msra.mxu0 0.0
    %1650 = vmatprep.mubr.f32.mxu0 0.0
    %1651 = vmatmul.mubr.f32.gmra.mrb[0].mxu0 %v1498
    %v1652 = vpop.f32.mrb[0].mxu0
    %v1653 = vadd.f32 %v1569, %v1652
    %v1654 = vpop.f32.mrb[0].mxu0
    %v1655 = vadd.f32 %v1573, %v1654
    %1656 = vdwg.mxu0
    %1657 = vmatprep.subr.mxu0 %v1502
    %1658 = vmatpush1.msra.mxu0 %v1501
    %1659 = vmatprep.subr.mxu0 %v1506
    %1660 = vmatpush1.msra.mxu0 %v1505
    %1661 = vmatprep.subr.mxu0 %v1510
    %1662 = vmatpush1.msra.mxu0 %v1509
    %1663 = vmatprep.subr.mxu0 %v1514
    %1664 = vmatpush1.msra.mxu0 %v1513
    %1665 = vmatprep.subr.mxu0 %v1518
    %1666 = vmatpush1.msra.mxu0 %v1517
    %1667 = vmatprep.subr.mxu0 %v1522
    %1668 = vmatpush1.msra.mxu0 %v1521
    %1669 = vmatprep.subr.mxu0 %v1526
    %1670 = vmatpush1.msra.mxu0 %v1525
    %1671 = vmatprep.subr.mxu0 %v1530
    %1672 = vmatpush1.msra.mxu0 %v1529
    %1673 = vmatprep.subr.mxu0 %v1534
    %1674 = vmatpush1.msra.mxu0 %v1533
    %1675 = vmatprep.subr.mxu0 %v1538
    %1676 = vmatpush1.msra.mxu0 %v1537
    %1677 = vmatprep.subr.mxu0 %v1542
    %1678 = vmatpush1.msra.mxu0 %v1541
    %1679 = vmatprep.subr.mxu0 %v1546
    %1680 = vmatpush1.msra.mxu0 %v1545
    %1681 = vmatprep.subr.mxu0 %v1550
    %1682 = vmatpush1.msra.mxu0 %v1549
    %1683 = vmatprep.subr.mxu0 %v1554
    %1684 = vmatpush1.msra.mxu0 %v1553
    %1685 = vmatprep.subr.mxu0 %v1558
    %1686 = vmatpush1.msra.mxu0 %v1557
    %1687 = vmatprep.subr.mxu0 %v1562
    %1688 = vmatpush1.msra.mxu0 %v1561
    %1689 = vmatprep.subr.mxu0 0.0
    %1690 = vmatpush1.msra.mxu0 0.0
    %1691 = vmatprep.subr.mxu0 0.0
    %1692 = vmatpush1.msra.mxu0 0.0
    %1693 = vmatprep.subr.mxu0 0.0
    %1694 = vmatpush1.msra.mxu0 0.0
    %1695 = vmatprep.subr.mxu0 0.0
    %1696 = vmatpush1.msra.mxu0 0.0
    %1697 = vmatprep.subr.mxu0 0.0
    %1698 = vmatpush1.msra.mxu0 0.0
    %1699 = vmatprep.subr.mxu0 0.0
    %1700 = vmatpush1.msra.mxu0 0.0
    %1701 = vmatprep.subr.mxu0 0.0
    %1702 = vmatpush1.msra.mxu0 0.0
    %1703 = vmatprep.subr.mxu0 0.0
    %1704 = vmatpush1.msra.mxu0 0.0
    %1705 = vmatprep.subr.mxu0 0.0
    %1706 = vmatpush1.msra.mxu0 0.0
    %1707 = vmatprep.subr.mxu0 0.0
    %1708 = vmatpush1.msra.mxu0 0.0
    %1709 = vmatprep.subr.mxu0 0.0
    %1710 = vmatpush1.msra.mxu0 0.0
    %1711 = vmatprep.subr.mxu0 0.0
    %1712 = vmatpush1.msra.mxu0 0.0
    %1713 = vmatprep.subr.mxu0 0.0
    %1714 = vmatpush1.msra.mxu0 0.0
    %1715 = vmatprep.subr.mxu0 0.0
    %1716 = vmatpush1.msra.mxu0 0.0
    %1717 = vmatprep.subr.mxu0 0.0
    %1718 = vmatpush1.msra.mxu0 0.0
    %1719 = vmatprep.subr.mxu0 0.0
    %1720 = vmatpush1.msra.mxu0 0.0
    %1721 = vmatprep.mubr.f32.mxu0 0.0
    %1722 = vmatmul.mubr.f32.gmra.mrb[0].mxu0 %v1498
    %v1723 = vpop.f32.mrb[0].mxu0
    %v1724 = vadd.f32 %v1577, %v1723
    %v1725 = vpop.f32.mrb[0].mxu0
    %v1726 = vadd.f32 %v1581, %v1725
    %1727 = vdwg.mxu0
    %v1728 = vmul.f32 %v1653, 0.5
    %v1729 = vmul.f32 %v1655, 0.5
    %v1730 = vmul.f32 %v1724, 0.5
    %v1731 = vmul.f32 %v1726, 0.5
    %v1732 = vmul.f32 %v1653, 0.70710677
    %v1733 = vmul.f32 %v1655, 0.70710677
    %v1734 = vmul.f32 %v1724, 0.70710677
    %v1735 = vmul.f32 %v1726, 0.70710677
    %v1736 = verf.f32.pop %v1732
    %v1737 = verf.f32.pop %v1733
    %v1738 = verf.f32.pop %v1734
    %v1739 = verf.f32.pop %v1735
    %v1740 = vadd.f32 %v1736, 1.0
    %v1741 = vadd.f32 %v1737, 1.0
    %v1742 = vadd.f32 %v1738, 1.0
    %v1743 = vadd.f32 %v1739, 1.0
    %v1744 = vmul.f32 %v1728, %v1740
    %v1745 = vmul.f32 %v1729, %v1741
    %v1746 = vmul.f32 %v1730, %v1742
    %v1747 = vmul.f32 %v1731, %v1743
    %v1748 = vld [vmem:[#allocation11] sm:$0xff]
    %v1749 = vld [vmem:[#allocation11 + $0x8] sm:$0xff]
    %v1750 = vld [vmem:[#allocation11 + $0x10] sm:$0xff]
    %v1751 = vld [vmem:[#allocation11 + $0x18] sm:$0xff]
    %v1752 = vld [vmem:[#allocation11 + $0x20] sm:$0xff]
    %v1753 = vld [vmem:[#allocation11 + $0x28] sm:$0xff]
    %v1754 = vld [vmem:[#allocation11 + $0x30] sm:$0xff]
    %v1755 = vld [vmem:[#allocation11 + $0x38] sm:$0xff]
    %v1756 = vld [vmem:[#allocation11 + $0x40] sm:$0xff]
    %v1757 = vld [vmem:[#allocation11 + $0x48] sm:$0xff]
    %v1758 = vld [vmem:[#allocation11 + $0x50] sm:$0xff]
    %v1759 = vld [vmem:[#allocation11 + $0x58] sm:$0xff]
    %v1760 = vld [vmem:[#allocation11 + $0x60] sm:$0xff]
    %v1761 = vld [vmem:[#allocation11 + $0x68] sm:$0xff]
    %v1762 = vld [vmem:[#allocation11 + $0x70] sm:$0xff]
    %v1763 = vld [vmem:[#allocation11 + $0x78] sm:$0xff]
    %v1764 = vld [vmem:[#allocation11 + $0x80] sm:$0xff]
    %v1765 = vld [vmem:[#allocation11 + $0x88] sm:$0xff]
    %v1766 = vld [vmem:[#allocation11 + $0x90] sm:$0xff]
    %v1767 = vld [vmem:[#allocation11 + $0x98] sm:$0xff]
    %v1768 = vld [vmem:[#allocation11 + $0xa0] sm:$0xff]
    %v1769 = vld [vmem:[#allocation11 + $0xa8] sm:$0xff]
    %v1770 = vld [vmem:[#allocation11 + $0xb0] sm:$0xff]
    %v1771 = vld [vmem:[#allocation11 + $0xb8] sm:$0xff]
    %v1772 = vld [vmem:[#allocation11 + $0xc0] sm:$0xff]
    %v1773 = vld [vmem:[#allocation11 + $0xc8] sm:$0xff]
    %v1774 = vld [vmem:[#allocation11 + $0xd0] sm:$0xff]
    %v1775 = vld [vmem:[#allocation11 + $0xd8] sm:$0xff]
    %v1776 = vld [vmem:[#allocation11 + $0xe0] sm:$0xff]
    %v1777 = vld [vmem:[#allocation11 + $0xe8] sm:$0xff]
    %v1778 = vld [vmem:[#allocation11 + $0xf0] sm:$0xff]
    %v1779 = vld [vmem:[#allocation11 + $0xf8] sm:$0xff]
    %v1780 = vld [vmem:[#allocation11 + $0x100] sm:$0xff]
    %v1781 = vld [vmem:[#allocation11 + $0x108] sm:$0xff]
    %v1782 = vld [vmem:[#allocation11 + $0x110] sm:$0xff]
    %v1783 = vld [vmem:[#allocation11 + $0x118] sm:$0xff]
    %v1784 = vld [vmem:[#allocation11 + $0x120] sm:$0xff]
    %v1785 = vld [vmem:[#allocation11 + $0x128] sm:$0xff]
    %v1786 = vld [vmem:[#allocation11 + $0x130] sm:$0xff]
    %v1787 = vld [vmem:[#allocation11 + $0x138] sm:$0xff]
    %v1788 = vld [vmem:[#allocation11 + $0x140] sm:$0xff]
    %v1789 = vld [vmem:[#allocation11 + $0x148] sm:$0xff]
    %v1790 = vld [vmem:[#allocation11 + $0x150] sm:$0xff]
    %v1791 = vld [vmem:[#allocation11 + $0x158] sm:$0xff]
    %v1792 = vld [vmem:[#allocation11 + $0x160] sm:$0xff]
    %v1793 = vld [vmem:[#allocation11 + $0x168] sm:$0xff]
    %v1794 = vld [vmem:[#allocation11 + $0x170] sm:$0xff]
    %v1795 = vld [vmem:[#allocation11 + $0x178] sm:$0xff]
    %v1796 = vld [vmem:[#allocation11 + $0x180] sm:$0xff]
    %v1797 = vld [vmem:[#allocation11 + $0x188] sm:$0xff]
    %v1798 = vld [vmem:[#allocation11 + $0x190] sm:$0xff]
    %v1799 = vld [vmem:[#allocation11 + $0x198] sm:$0xff]
    %v1800 = vld [vmem:[#allocation11 + $0x1a0] sm:$0xff]
    %v1801 = vld [vmem:[#allocation11 + $0x1a8] sm:$0xff]
    %v1802 = vld [vmem:[#allocation11 + $0x1b0] sm:$0xff]
    %v1803 = vld [vmem:[#allocation11 + $0x1b8] sm:$0xff]
    %v1804 = vld [vmem:[#allocation11 + $0x1c0] sm:$0xff]
    %v1805 = vld [vmem:[#allocation11 + $0x1c8] sm:$0xff]
    %v1806 = vld [vmem:[#allocation11 + $0x1d0] sm:$0xff]
    %v1807 = vld [vmem:[#allocation11 + $0x1d8] sm:$0xff]
    %v1808 = vld [vmem:[#allocation11 + $0x1e0] sm:$0xff]
    %v1809 = vld [vmem:[#allocation11 + $0x1e8] sm:$0xff]
    %v1810 = vld [vmem:[#allocation11 + $0x1f0] sm:$0xff]
    %v1811 = vld [vmem:[#allocation11 + $0x1f8] sm:$0xff]
    %1812 = vmatprep.subr.mxu0 0.0
    %1813 = vmatpush1.msra.mxu0 %v1748
    %1814 = vmatprep.subr.mxu0 0.0
    %1815 = vmatpush1.msra.mxu0 %v1749
    %1816 = vmatprep.subr.mxu0 0.0
    %1817 = vmatpush1.msra.mxu0 %v1750
    %1818 = vmatprep.subr.mxu0 0.0
    %1819 = vmatpush1.msra.mxu0 %v1751
    %1820 = vmatprep.subr.mxu0 0.0
    %1821 = vmatpush1.msra.mxu0 %v1752
    %1822 = vmatprep.subr.mxu0 0.0
    %1823 = vmatpush1.msra.mxu0 %v1753
    %1824 = vmatprep.subr.mxu0 0.0
    %1825 = vmatpush1.msra.mxu0 %v1754
    %1826 = vmatprep.subr.mxu0 0.0
    %1827 = vmatpush1.msra.mxu0 %v1755
    %1828 = vmatprep.subr.mxu0 0.0
    %1829 = vmatpush1.msra.mxu0 %v1756
    %1830 = vmatprep.subr.mxu0 0.0
    %1831 = vmatpush1.msra.mxu0 %v1757
    %1832 = vmatprep.subr.mxu0 0.0
    %1833 = vmatpush1.msra.mxu0 %v1758
    %1834 = vmatprep.subr.mxu0 0.0
    %1835 = vmatpush1.msra.mxu0 %v1759
    %1836 = vmatprep.subr.mxu0 0.0
    %1837 = vmatpush1.msra.mxu0 %v1760
    %1838 = vmatprep.subr.mxu0 0.0
    %1839 = vmatpush1.msra.mxu0 %v1761
    %1840 = vmatprep.subr.mxu0 0.0
    %1841 = vmatpush1.msra.mxu0 %v1762
    %1842 = vmatprep.subr.mxu0 0.0
    %1843 = vmatpush1.msra.mxu0 %v1763
    %1844 = vmatprep.subr.mxu0 0.0
    %1845 = vmatpush1.msra.mxu0 %v1764
    %1846 = vmatprep.subr.mxu0 0.0
    %1847 = vmatpush1.msra.mxu0 %v1765
    %1848 = vmatprep.subr.mxu0 0.0
    %1849 = vmatpush1.msra.mxu0 %v1766
    %1850 = vmatprep.subr.mxu0 0.0
    %1851 = vmatpush1.msra.mxu0 %v1767
    %1852 = vmatprep.subr.mxu0 0.0
    %1853 = vmatpush1.msra.mxu0 %v1768
    %1854 = vmatprep.subr.mxu0 0.0
    %1855 = vmatpush1.msra.mxu0 %v1769
    %1856 = vmatprep.subr.mxu0 0.0
    %1857 = vmatpush1.msra.mxu0 %v1770
    %1858 = vmatprep.subr.mxu0 0.0
    %1859 = vmatpush1.msra.mxu0 %v1771
    %1860 = vmatprep.subr.mxu0 0.0
    %1861 = vmatpush1.msra.mxu0 %v1772
    %1862 = vmatprep.subr.mxu0 0.0
    %1863 = vmatpush1.msra.mxu0 %v1773
    %1864 = vmatprep.subr.mxu0 0.0
    %1865 = vmatpush1.msra.mxu0 %v1774
    %1866 = vmatprep.subr.mxu0 0.0
    %1867 = vmatpush1.msra.mxu0 %v1775
    %1868 = vmatprep.subr.mxu0 0.0
    %1869 = vmatpush1.msra.mxu0 %v1776
    %1870 = vmatprep.subr.mxu0 0.0
    %1871 = vmatpush1.msra.mxu0 %v1777
    %1872 = vmatprep.subr.mxu0 0.0
    %1873 = vmatpush1.msra.mxu0 %v1778
    %1874 = vmatprep.subr.mxu0 0.0
    %1875 = vmatpush1.msra.mxu0 %v1779
    %1876 = vmatprep.mubr.f32.mxu0 %v1745
    %1877 = vmatmul.mubr.f32.gmra.mrb[0].mxu0 %v1744
    %v1878 = vpop.f32.mrb[0].mxu0
    %v1879 = vadd.f32 0.0, %v1878
    %v1880 = vpop.f32.mrb[0].mxu0
    %1881 = vdwg.mxu0
    %1882 = vmatprep.subr.mxu0 0.0
    %1883 = vmatpush1.msra.mxu0 %v1780
    %1884 = vmatprep.subr.mxu0 0.0
    %1885 = vmatpush1.msra.mxu0 %v1781
    %1886 = vmatprep.subr.mxu0 0.0
    %1887 = vmatpush1.msra.mxu0 %v1782
    %1888 = vmatprep.subr.mxu0 0.0
    %1889 = vmatpush1.msra.mxu0 %v1783
    %1890 = vmatprep.subr.mxu0 0.0
    %1891 = vmatpush1.msra.mxu0 %v1784
    %1892 = vmatprep.subr.mxu0 0.0
    %1893 = vmatpush1.msra.mxu0 %v1785
    %1894 = vmatprep.subr.mxu0 0.0
    %1895 = vmatpush1.msra.mxu0 %v1786
    %1896 = vmatprep.subr.mxu0 0.0
    %1897 = vmatpush1.msra.mxu0 %v1787
    %1898 = vmatprep.subr.mxu0 0.0
    %1899 = vmatpush1.msra.mxu0 %v1788
    %1900 = vmatprep.subr.mxu0 0.0
    %1901 = vmatpush1.msra.mxu0 %v1789
    %1902 = vmatprep.subr.mxu0 0.0
    %1903 = vmatpush1.msra.mxu0 %v1790
    %1904 = vmatprep.subr.mxu0 0.0
    %1905 = vmatpush1.msra.mxu0 %v1791
    %1906 = vmatprep.subr.mxu0 0.0
    %1907 = vmatpush1.msra.mxu0 %v1792
    %1908 = vmatprep.subr.mxu0 0.0
    %1909 = vmatpush1.msra.mxu0 %v1793
    %1910 = vmatprep.subr.mxu0 0.0
    %1911 = vmatpush1.msra.mxu0 %v1794
    %1912 = vmatprep.subr.mxu0 0.0
    %1913 = vmatpush1.msra.mxu0 %v1795
    %1914 = vmatprep.subr.mxu0 0.0
    %1915 = vmatpush1.msra.mxu0 %v1796
    %1916 = vmatprep.subr.mxu0 0.0
    %1917 = vmatpush1.msra.mxu0 %v1797
    %1918 = vmatprep.subr.mxu0 0.0
    %1919 = vmatpush1.msra.mxu0 %v1798
    %1920 = vmatprep.subr.mxu0 0.0
    %1921 = vmatpush1.msra.mxu0 %v1799
    %1922 = vmatprep.subr.mxu0 0.0
    %1923 = vmatpush1.msra.mxu0 %v1800
    %1924 = vmatprep.subr.mxu0 0.0
    %1925 = vmatpush1.msra.mxu0 %v1801
    %1926 = vmatprep.subr.mxu0 0.0
    %1927 = vmatpush1.msra.mxu0 %v1802
    %1928 = vmatprep.subr.mxu0 0.0
    %1929 = vmatpush1.msra.mxu0 %v1803
    %1930 = vmatprep.subr.mxu0 0.0
    %1931 = vmatpush1.msra.mxu0 %v1804
    %1932 = vmatprep.subr.mxu0 0.0
    %1933 = vmatpush1.msra.mxu0 %v1805
    %1934 = vmatprep.subr.mxu0 0.0
    %1935 = vmatpush1.msra.mxu0 %v1806
    %1936 = vmatprep.subr.mxu0 0.0
    %1937 = vmatpush1.msra.mxu0 %v1807
    %1938 = vmatprep.subr.mxu0 0.0
    %1939 = vmatpush1.msra.mxu0 %v1808
    %1940 = vmatprep.subr.mxu0 0.0
    %1941 = vmatpush1.msra.mxu0 %v1809
    %1942 = vmatprep.subr.mxu0 0.0
    %1943 = vmatpush1.msra.mxu0 %v1810
    %1944 = vmatprep.subr.mxu0 0.0
    %1945 = vmatpush1.msra.mxu0 %v1811
    %1946 = vmatprep.mubr.f32.mxu0 %v1747
    %1947 = vmatmul.mubr.f32.gmra.mrb[0].mxu0 %v1746
    %v1948 = vpop.f32.mrb[0].mxu0
    %v1949 = vadd.f32 %v1879, %v1948
    %v1950 = vpop.f32.mrb[0].mxu0
    %1951 = vdwg.mxu0
    %v1952 = vadd.f32 %v1350, %v1949
    %v1953 = vld [vmem:[#allocation20 + $0x24] ss:$0 sm:$0xff]
    %v1954 = vadd.f32 %v1952, %v1953
    %v1955 = vld [vmem:[#allocation20 + $0x25] ss:$0 sm:$0xff]
    %v1956 = vld [vmem:[#allocation20 + $0x26] ss:$0 sm:$0xff]
    %1957 = vmatprep.subr.mxu0 0.0
    %1958 = vmatpush1.msra.mxu0 %v577
    %1959 = vmatprep.subr.mxu0 0.0
    %1960 = vmatpush1.msra.mxu0 %v578
    %1961 = vmatprep.subr.mxu0 0.0
    %1962 = vmatpush1.msra.mxu0 %v579
    %1963 = vmatprep.subr.mxu0 0.0
    %1964 = vmatpush1.msra.mxu0 %v580
    %1965 = vmatprep.subr.mxu0 0.0
    %1966 = vmatpush1.msra.mxu0 %v581
    %1967 = vmatprep.subr.mxu0 0.0
    %1968 = vmatpush1.msra.mxu0 %v582
    %1969 = vmatprep.subr.mxu0 0.0
    %1970 = vmatpush1.msra.mxu0 %v583
    %1971 = vmatprep.subr.mxu0 0.0
    %1972 = vmatpush1.msra.mxu0 %v584
    %1973 = vmatprep.subr.mxu0 0.0
    %1974 = vmatpush1.msra.mxu0 %v585
    %1975 = vmatprep.subr.mxu0 0.0
    %1976 = vmatpush1.msra.mxu0 %v586
    %1977 = vmatprep.subr.mxu0 0.0
    %1978 = vmatpush1.msra.mxu0 %v587
    %1979 = vmatprep.subr.mxu0 0.0
    %1980 = vmatpush1.msra.mxu0 %v588
    %1981 = vmatprep.subr.mxu0 0.0
    %1982 = vmatpush1.msra.mxu0 %v589
    %1983 = vmatprep.subr.mxu0 0.0
    %1984 = vmatpush1.msra.mxu0 %v590
    %1985 = vmatprep.subr.mxu0 0.0
    %1986 = vmatpush1.msra.mxu0 %v591
    %1987 = vmatprep.subr.mxu0 0.0
    %1988 = vmatpush1.msra.mxu0 %v592
    %1989 = vmatprep.subr.mxu0 0.0
    %1990 = vmatpush1.msra.mxu0 0.0
    %1991 = vmatprep.subr.mxu0 0.0
    %1992 = vmatpush1.msra.mxu0 0.0
    %1993 = vmatprep.subr.mxu0 0.0
    %1994 = vmatpush1.msra.mxu0 0.0
    %1995 = vmatprep.subr.mxu0 0.0
    %1996 = vmatpush1.msra.mxu0 0.0
    %1997 = vmatprep.subr.mxu0 0.0
    %1998 = vmatpush1.msra.mxu0 0.0
    %1999 = vmatprep.subr.mxu0 0.0
    %2000 = vmatpush1.msra.mxu0 0.0
    %2001 = vmatprep.subr.mxu0 0.0
    %2002 = vmatpush1.msra.mxu0 0.0
    %2003 = vmatprep.subr.mxu0 0.0
    %2004 = vmatpush1.msra.mxu0 0.0
    %2005 = vmatprep.subr.mxu0 0.0
    %2006 = vmatpush1.msra.mxu0 0.0
    %2007 = vmatprep.subr.mxu0 0.0
    %2008 = vmatpush1.msra.mxu0 0.0
    %2009 = vmatprep.subr.mxu0 0.0
    %2010 = vmatpush1.msra.mxu0 0.0
    %2011 = vmatprep.subr.mxu0 0.0
    %2012 = vmatpush1.msra.mxu0 0.0
    %2013 = vmatprep.subr.mxu0 0.0
    %2014 = vmatpush1.msra.mxu0 0.0
    %2015 = vmatprep.subr.mxu0 0.0
    %2016 = vmatpush1.msra.mxu0 0.0
    %2017 = vmatprep.subr.mxu0 0.0
    %2018 = vmatpush1.msra.mxu0 0.0
    %2019 = vmatprep.subr.mxu0 0.0
    %2020 = vmatpush1.msra.mxu0 0.0
    %2021 = vmatprep.mubr.f32.mxu0 0.0
    %2022 = vmatmul.mubr.f32.gmra.mrb[0].mxu0 %v1954
    %v2023 = vpop.f32.mrb[0].mxu0
    %v2024 = vadd.f32 0.0, %v2023
    %v2025 = vpop.f32.mrb[0].mxu0
    %2026 = vdwg.mxu0
    %v2027 = vsub.f32 %v1954, %v2024
    %v2028 = vmul.f32 %v2027, %v2027
    %2029 = vmatprep.subr.mxu0 0.0
    %2030 = vmatpush1.msra.mxu0 %v577
    %2031 = vmatprep.subr.mxu0 0.0
    %2032 = vmatpush1.msra.mxu0 %v578
    %2033 = vmatprep.subr.mxu0 0.0
    %2034 = vmatpush1.msra.mxu0 %v579
    %2035 = vmatprep.subr.mxu0 0.0
    %2036 = vmatpush1.msra.mxu0 %v580
    %2037 = vmatprep.subr.mxu0 0.0
    %2038 = vmatpush1.msra.mxu0 %v581
    %2039 = vmatprep.subr.mxu0 0.0
    %2040 = vmatpush1.msra.mxu0 %v582
    %2041 = vmatprep.subr.mxu0 0.0
    %2042 = vmatpush1.msra.mxu0 %v583
    %2043 = vmatprep.subr.mxu0 0.0
    %2044 = vmatpush1.msra.mxu0 %v584
    %2045 = vmatprep.subr.mxu0 0.0
    %2046 = vmatpush1.msra.mxu0 %v585
    %2047 = vmatprep.subr.mxu0 0.0
    %2048 = vmatpush1.msra.mxu0 %v586
    %2049 = vmatprep.subr.mxu0 0.0
    %2050 = vmatpush1.msra.mxu0 %v587
    %2051 = vmatprep.subr.mxu0 0.0
    %2052 = vmatpush1.msra.mxu0 %v588
    %2053 = vmatprep.subr.mxu0 0.0
    %2054 = vmatpush1.msra.mxu0 %v589
    %2055 = vmatprep.subr.mxu0 0.0
    %2056 = vmatpush1.msra.mxu0 %v590
    %2057 = vmatprep.subr.mxu0 0.0
    %2058 = vmatpush1.msra.mxu0 %v591
    %2059 = vmatprep.subr.mxu0 0.0
    %2060 = vmatpush1.msra.mxu0 %v592
    %2061 = vmatprep.subr.mxu0 0.0
    %2062 = vmatpush1.msra.mxu0 0.0
    %2063 = vmatprep.subr.mxu0 0.0
    %2064 = vmatpush1.msra.mxu0 0.0
    %2065 = vmatprep.subr.mxu0 0.0
    %2066 = vmatpush1.msra.mxu0 0.0
    %2067 = vmatprep.subr.mxu0 0.0
    %2068 = vmatpush1.msra.mxu0 0.0
    %2069 = vmatprep.subr.mxu0 0.0
    %2070 = vmatpush1.msra.mxu0 0.0
    %2071 = vmatprep.subr.mxu0 0.0
    %2072 = vmatpush1.msra.mxu0 0.0
    %2073 = vmatprep.subr.mxu0 0.0
    %2074 = vmatpush1.msra.mxu0 0.0
    %2075 = vmatprep.subr.mxu0 0.0
    %2076 = vmatpush1.msra.mxu0 0.0
    %2077 = vmatprep.subr.mxu0 0.0
    %2078 = vmatpush1.msra.mxu0 0.0
    %2079 = vmatprep.subr.mxu0 0.0
    %2080 = vmatpush1.msra.mxu0 0.0
    %2081 = vmatprep.subr.mxu0 0.0
    %2082 = vmatpush1.msra.mxu0 0.0
    %2083 = vmatprep.subr.mxu0 0.0
    %2084 = vmatpush1.msra.mxu0 0.0
    %2085 = vmatprep.subr.mxu0 0.0
    %2086 = vmatpush1.msra.mxu0 0.0
    %2087 = vmatprep.subr.mxu0 0.0
    %2088 = vmatpush1.msra.mxu0 0.0
    %2089 = vmatprep.subr.mxu0 0.0
    %2090 = vmatpush1.msra.mxu0 0.0
    %2091 = vmatprep.subr.mxu0 0.0
    %2092 = vmatpush1.msra.mxu0 0.0
    %2093 = vmatprep.mubr.f32.mxu0 0.0
    %2094 = vmatmul.mubr.f32.gmra.mrb[0].mxu0 %v2028
    %v2095 = vpop.f32.mrb[0].mxu0
    %v2096 = vadd.f32 1e-05, %v2095
    %v2097 = vpop.f32.mrb[0].mxu0
    %2098 = vdwg.mxu0
    %v2099 = vrsqrt.pop %v2096
    %v2100 = vmul.f32 %v2027, %v2099
    %v2101 = vmul.f32 %v2100, %v1955
    %v2102 = vadd.f32 %v2101, %v1956
    %v2103 = vld [vmem:[%s9] sm:$0xff]
    %v2104 = vld [vmem:[%s9 + $0x8] sm:$0xff]
    %v2105 = vld [vmem:[%s9 + $0x10] sm:$0xff]
    %v2106 = vld [vmem:[%s9 + $0x18] sm:$0xff]
    %v2107 = vld [vmem:[%s9 + $0x20] sm:$0xff]
    %v2108 = vld [vmem:[%s9 + $0x28] sm:$0xff]
    %v2109 = vld [vmem:[%s9 + $0x30] sm:$0xff]
    %v2110 = vld [vmem:[%s9 + $0x38] sm:$0xff]
    %v2111 = vld [vmem:[%s9 + $0x40] sm:$0xff]
    %v2112 = vld [vmem:[%s9 + $0x48] sm:$0xff]
    %v2113 = vld [vmem:[%s9 + $0x50] sm:$0xff]
    %v2114 = vld [vmem:[%s9 + $0x58] sm:$0xff]
    %v2115 = vld [vmem:[%s9 + $0x60] sm:$0xff]
    %v2116 = vld [vmem:[%s9 + $0x68] sm:$0xff]
    %v2117 = vld [vmem:[%s9 + $0x70] sm:$0xff]
    %v2118 = vld [vmem:[%s9 + $0x78] sm:$0xff]
    %v2119 = vld [vmem:[#allocation20 + $0x27] ss:$0 sm:$0xff]
    %2120 = vmatprep.subr.mxu0 0.0
    %2121 = vmatpush1.msra.mxu0 %v2103
    %2122 = vmatprep.subr.mxu0 0.0
    %2123 = vmatpush1.msra.mxu0 %v2104
    %2124 = vmatprep.subr.mxu0 0.0
    %2125 = vmatpush1.msra.mxu0 %v2105
    %2126 = vmatprep.subr.mxu0 0.0
    %2127 = vmatpush1.msra.mxu0 %v2106
    %2128 = vmatprep.subr.mxu0 0.0
    %2129 = vmatpush1.msra.mxu0 %v2107
    %2130 = vmatprep.subr.mxu0 0.0
    %2131 = vmatpush1.msra.mxu0 %v2108
    %2132 = vmatprep.subr.mxu0 0.0
    %2133 = vmatpush1.msra.mxu0 %v2109
    %2134 = vmatprep.subr.mxu0 0.0
    %2135 = vmatpush1.msra.mxu0 %v2110
    %2136 = vmatprep.subr.mxu0 0.0
    %2137 = vmatpush1.msra.mxu0 %v2111
    %2138 = vmatprep.subr.mxu0 0.0
    %2139 = vmatpush1.msra.mxu0 %v2112
    %2140 = vmatprep.subr.mxu0 0.0
    %2141 = vmatpush1.msra.mxu0 %v2113
    %2142 = vmatprep.subr.mxu0 0.0
    %2143 = vmatpush1.msra.mxu0 %v2114
    %2144 = vmatprep.subr.mxu0 0.0
    %2145 = vmatpush1.msra.mxu0 %v2115
    %2146 = vmatprep.subr.mxu0 0.0
    %2147 = vmatpush1.msra.mxu0 %v2116
    %2148 = vmatprep.subr.mxu0 0.0
    %2149 = vmatpush1.msra.mxu0 %v2117
    %2150 = vmatprep.subr.mxu0 0.0
    %2151 = vmatpush1.msra.mxu0 %v2118
    %2152 = vmatprep.subr.mxu0 0.0
    %2153 = vmatpush1.msra.mxu0 0.0
    %2154 = vmatprep.subr.mxu0 0.0
    %2155 = vmatpush1.msra.mxu0 0.0
    %2156 = vmatprep.subr.mxu0 0.0
    %2157 = vmatpush1.msra.mxu0 0.0
    %2158 = vmatprep.subr.mxu0 0.0
    %2159 = vmatpush1.msra.mxu0 0.0
    %2160 = vmatprep.subr.mxu0 0.0
    %2161 = vmatpush1.msra.mxu0 0.0
    %2162 = vmatprep.subr.mxu0 0.0
    %2163 = vmatpush1.msra.mxu0 0.0
    %2164 = vmatprep.subr.mxu0 0.0
    %2165 = vmatpush1.msra.mxu0 0.0
    %2166 = vmatprep.subr.mxu0 0.0
    %2167 = vmatpush1.msra.mxu0 0.0
    %2168 = vmatprep.subr.mxu0 0.0
    %2169 = vmatpush1.msra.mxu0 0.0
    %2170 = vmatprep.subr.mxu0 0.0
    %2171 = vmatpush1.msra.mxu0 0.0
    %2172 = vmatprep.subr.mxu0 0.0
    %2173 = vmatpush1.msra.mxu0 0.0
    %2174 = vmatprep.subr.mxu0 0.0
    %2175 = vmatpush1.msra.mxu0 0.0
    %2176 = vmatprep.subr.mxu0 0.0
    %2177 = vmatpush1.msra.mxu0 0.0
    %2178 = vmatprep.subr.mxu0 0.0
    %2179 = vmatpush1.msra.mxu0 0.0
    %2180 = vmatprep.subr.mxu0 0.0
    %2181 = vmatpush1.msra.mxu0 0.0
    %2182 = vmatprep.subr.mxu0 0.0
    %2183 = vmatpush1.msra.mxu0 0.0
    %2184 = vmatprep.mubr.f32.mxu0 0.0
    %2185 = vmatmul.mubr.f32.gmra.mrb[0].mxu0 %v2102
    %v2186 = vpop.f32.mrb[0].mxu0
    %v2187 = vadd.f32 %v2119, %v2186
    %v2188 = vpop.f32.mrb[0].mxu0
    %2189 = vdwg.mxu0
    %v2190 = vld [vmem:[%s10] sm:$0xff]
    %v2191 = vld [vmem:[%s10 + $0x8] sm:$0xff]
    %v2192 = vld [vmem:[%s10 + $0x10] sm:$0xff]
    %v2193 = vld [vmem:[%s10 + $0x18] sm:$0xff]
    %v2194 = vld [vmem:[%s10 + $0x20] sm:$0xff]
    %v2195 = vld [vmem:[%s10 + $0x28] sm:$0xff]
    %v2196 = vld [vmem:[%s10 + $0x30] sm:$0xff]
    %v2197 = vld [vmem:[%s10 + $0x38] sm:$0xff]
    %v2198 = vld [vmem:[%s10 + $0x40] sm:$0xff]
    %v2199 = vld [vmem:[%s10 + $0x48] sm:$0xff]
    %v2200 = vld [vmem:[%s10 + $0x50] sm:$0xff]
    %v2201 = vld [vmem:[%s10 + $0x58] sm:$0xff]
    %v2202 = vld [vmem:[%s10 + $0x60] sm:$0xff]
    %v2203 = vld [vmem:[%s10 + $0x68] sm:$0xff]
    %v2204 = vld [vmem:[%s10 + $0x70] sm:$0xff]
    %v2205 = vld [vmem:[%s10 + $0x78] sm:$0xff]
    %v2206 = vld [vmem:[#allocation20 + $0x40] ss:$0 sm:$0xff]
    %2207 = vmatprep.subr.mxu0 0.0
    %2208 = vmatpush1.msra.mxu0 %v2190
    %2209 = vmatprep.subr.mxu0 0.0
    %2210 = vmatpush1.msra.mxu0 %v2191
    %2211 = vmatprep.subr.mxu0 0.0
    %2212 = vmatpush1.msra.mxu0 %v2192
    %2213 = vmatprep.subr.mxu0 0.0
    %2214 = vmatpush1.msra.mxu0 %v2193
    %2215 = vmatprep.subr.mxu0 0.0
    %2216 = vmatpush1.msra.mxu0 %v2194
    %2217 = vmatprep.subr.mxu0 0.0
    %2218 = vmatpush1.msra.mxu0 %v2195
    %2219 = vmatprep.subr.mxu0 0.0
    %2220 = vmatpush1.msra.mxu0 %v2196
    %2221 = vmatprep.subr.mxu0 0.0
    %2222 = vmatpush1.msra.mxu0 %v2197
    %2223 = vmatprep.subr.mxu0 0.0
    %2224 = vmatpush1.msra.mxu0 %v2198
    %2225 = vmatprep.subr.mxu0 0.0
    %2226 = vmatpush1.msra.mxu0 %v2199
    %2227 = vmatprep.subr.mxu0 0.0
    %2228 = vmatpush1.msra.mxu0 %v2200
    %2229 = vmatprep.subr.mxu0 0.0
    %2230 = vmatpush1.msra.mxu0 %v2201
    %2231 = vmatprep.subr.mxu0 0.0
    %2232 = vmatpush1.msra.mxu0 %v2202
    %2233 = vmatprep.subr.mxu0 0.0
    %2234 = vmatpush1.msra.mxu0 %v2203
    %2235 = vmatprep.subr.mxu0 0.0
    %2236 = vmatpush1.msra.mxu0 %v2204
    %2237 = vmatprep.subr.mxu0 0.0
    %2238 = vmatpush1.msra.mxu0 %v2205
    %2239 = vmatprep.subr.mxu0 0.0
    %2240 = vmatpush1.msra.mxu0 0.0
    %2241 = vmatprep.subr.mxu0 0.0
    %2242 = vmatpush1.msra.mxu0 0.0
    %2243 = vmatprep.subr.mxu0 0.0
    %2244 = vmatpush1.msra.mxu0 0.0
    %2245 = vmatprep.subr.mxu0 0.0
    %2246 = vmatpush1.msra.mxu0 0.0
    %2247 = vmatprep.subr.mxu0 0.0
    %2248 = vmatpush1.msra.mxu0 0.0
    %2249 = vmatprep.subr.mxu0 0.0
    %2250 = vmatpush1.msra.mxu0 0.0
    %2251 = vmatprep.subr.mxu0 0.0
    %2252 = vmatpush1.msra.mxu0 0.0
    %2253 = vmatprep.subr.mxu0 0.0
    %2254 = vmatpush1.msra.mxu0 0.0
    %2255 = vmatprep.subr.mxu0 0.0
    %2256 = vmatpush1.msra.mxu0 0.0
    %2257 = vmatprep.subr.mxu0 0.0
    %2258 = vmatpush1.msra.mxu0 0.0
    %2259 = vmatprep.subr.mxu0 0.0
    %2260 = vmatpush1.msra.mxu0 0.0
    %2261 = vmatprep.subr.mxu0 0.0
    %2262 = vmatpush1.msra.mxu0 0.0
    %2263 = vmatprep.subr.mxu0 0.0
    %2264 = vmatpush1.msra.mxu0 0.0
    %2265 = vmatprep.subr.mxu0 0.0
    %2266 = vmatpush1.msra.mxu0 0.0
    %2267 = vmatprep.subr.mxu0 0.0
    %2268 = vmatpush1.msra.mxu0 0.0
    %2269 = vmatprep.subr.mxu0 0.0
    %2270 = vmatpush1.msra.mxu0 0.0
    %2271 = vmatprep.mubr.f32.mxu0 0.0
    %2272 = vmatmul.mubr.f32.gmra.mrb[0].mxu0 %v1954
    %v2273 = vpop.f32.mrb[0].mxu0
    %v2274 = vadd.f32 %v2206, %v2273
    %v2275 = vpop.f32.mrb[0].mxu0
    %2276 = vdwg.mxu0
    %v2277 = vld [vmem:[#allocation13] sm:$0xff]
    %v2278 = vld [vmem:[#allocation13 + $0x8] sm:$0xff]
    %v2279 = vld [vmem:[#allocation13 + $0x10] sm:$0xff]
    %v2280 = vld [vmem:[#allocation13 + $0x18] sm:$0xff]
    %v2281 = vld [vmem:[#allocation13 + $0x20] sm:$0xff]
    %v2282 = vld [vmem:[#allocation13 + $0x28] sm:$0xff]
    %v2283 = vld [vmem:[#allocation13 + $0x30] sm:$0xff]
    %v2284 = vld [vmem:[#allocation13 + $0x38] sm:$0xff]
    %v2285 = vld [vmem:[#allocation20 + $0x41] ss:$0 sm:$0xff]
    %v2286 = vld [vmem:[#allocation20 + $0x42] ss:$0 sm:$0xff]
    %vm2287 = vcmask 523264
    %v2289 = vsel %vm2287, %v2274, 0
    %2291 = vmatprep.subr.mxu0 0.0
    %2292 = vmatpush1.msra.mxu0 %v2277
    %2293 = vmatprep.subr.mxu0 0.0
    %2294 = vmatpush1.msra.mxu0 %v2278
    %2295 = vmatprep.subr.mxu0 0.0
    %2296 = vmatpush1.msra.mxu0 %v2279
    %2297 = vmatprep.subr.mxu0 0.0
    %2298 = vmatpush1.msra.mxu0 %v2280
    %2299 = vmatprep.subr.mxu0 0.0
    %2300 = vmatpush1.msra.mxu0 %v2281
    %2301 = vmatprep.subr.mxu0 0.0
    %2302 = vmatpush1.msra.mxu0 %v2282
    %2303 = vmatprep.subr.mxu0 0.0
    %2304 = vmatpush1.msra.mxu0 %v2283
    %2305 = vmatprep.subr.mxu0 0.0
    %2306 = vmatpush1.msra.mxu0 %v2284
    %2307 = vmatprep.subr.mxu0 0.0
    %2308 = vmatpush1.msra.mxu0 0.0
    %2309 = vmatprep.subr.mxu0 0.0
    %2310 = vmatpush1.msra.mxu0 0.0
    %2311 = vmatprep.subr.mxu0 0.0
    %2312 = vmatpush1.msra.mxu0 0.0
    %2313 = vmatprep.subr.mxu0 0.0
    %2314 = vmatpush1.msra.mxu0 0.0
    %2315 = vmatprep.subr.mxu0 0.0
    %2316 = vmatpush1.msra.mxu0 0.0
    %2317 = vmatprep.subr.mxu0 0.0
    %2318 = vmatpush1.msra.mxu0 0.0
    %2319 = vmatprep.subr.mxu0 0.0
    %2320 = vmatpush1.msra.mxu0 0.0
    %2321 = vmatprep.subr.mxu0 0.0
    %2322 = vmatpush1.msra.mxu0 0.0
    %2323 = vmatprep.subr.mxu0 0.0
    %2324 = vmatpush1.msra.mxu0 0.0
    %2325 = vmatprep.subr.mxu0 0.0
    %2326 = vmatpush1.msra.mxu0 0.0
    %2327 = vmatprep.subr.mxu0 0.0
    %2328 = vmatpush1.msra.mxu0 0.0
    %2329 = vmatprep.subr.mxu0 0.0
    %2330 = vmatpush1.msra.mxu0 0.0
    %2331 = vmatprep.subr.mxu0 0.0
    %2332 = vmatpush1.msra.mxu0 0.0
    %2333 = vmatprep.subr.mxu0 0.0
    %2334 = vmatpush1.msra.mxu0 0.0
    %2335 = vmatprep.subr.mxu0 0.0
    %2336 = vmatpush1.msra.mxu0 0.0
    %2337 = vmatprep.subr.mxu0 0.0
    %2338 = vmatpush1.msra.mxu0 0.0
    %2339 = vmatprep.subr.mxu0 0.0
    %2340 = vmatpush1.msra.mxu0 0.0
    %2341 = vmatprep.subr.mxu0 0.0
    %2342 = vmatpush1.msra.mxu0 0.0
    %2343 = vmatprep.subr.mxu0 0.0
    %2344 = vmatpush1.msra.mxu0 0.0
    %2345 = vmatprep.subr.mxu0 0.0
    %2346 = vmatpush1.msra.mxu0 0.0
    %2347 = vmatprep.subr.mxu0 0.0
    %2348 = vmatpush1.msra.mxu0 0.0
    %2349 = vmatprep.subr.mxu0 0.0
    %2350 = vmatpush1.msra.mxu0 0.0
    %2351 = vmatprep.subr.mxu0 0.0
    %2352 = vmatpush1.msra.mxu0 0.0
    %2353 = vmatprep.subr.mxu0 0.0
    %2354 = vmatpush1.msra.mxu0 0.0
    %2355 = vmatprep.mubr.f32.mxu0 0.0
    %2356 = vmatmul.mubr.f32.gmra.mrb[0].mxu0 %v2289
    %v2357 = vpop.f32.mrb[0].mxu0
    %v2358 = vadd.f32 0.0, %v2357
    %v2359 = vpop.f32.mrb[0].mxu0
    %2360 = vdwg.mxu0
    %v2361 = vsub.f32 %v2274, %v2358
    %v2362 = vmul.f32 %v2361, %v2361
    %v2364 = vsel %vm2287, %v2362, 0
    %2366 = vmatprep.subr.mxu0 0.0
    %2367 = vmatpush1.msra.mxu0 %v2277
    %2368 = vmatprep.subr.mxu0 0.0
    %2369 = vmatpush1.msra.mxu0 %v2278
    %2370 = vmatprep.subr.mxu0 0.0
    %2371 = vmatpush1.msra.mxu0 %v2279
    %2372 = vmatprep.subr.mxu0 0.0
    %2373 = vmatpush1.msra.mxu0 %v2280
    %2374 = vmatprep.subr.mxu0 0.0
    %2375 = vmatpush1.msra.mxu0 %v2281
    %2376 = vmatprep.subr.mxu0 0.0
    %2377 = vmatpush1.msra.mxu0 %v2282
    %2378 = vmatprep.subr.mxu0 0.0
    %2379 = vmatpush1.msra.mxu0 %v2283
    %2380 = vmatprep.subr.mxu0 0.0
    %2381 = vmatpush1.msra.mxu0 %v2284
    %2382 = vmatprep.subr.mxu0 0.0
    %2383 = vmatpush1.msra.mxu0 0.0
    %2384 = vmatprep.subr.mxu0 0.0
    %2385 = vmatpush1.msra.mxu0 0.0
    %2386 = vmatprep.subr.mxu0 0.0
    %2387 = vmatpush1.msra.mxu0 0.0
    %2388 = vmatprep.subr.mxu0 0.0
    %2389 = vmatpush1.msra.mxu0 0.0
    %2390 = vmatprep.subr.mxu0 0.0
    %2391 = vmatpush1.msra.mxu0 0.0
    %2392 = vmatprep.subr.mxu0 0.0
    %2393 = vmatpush1.msra.mxu0 0.0
    %2394 = vmatprep.subr.mxu0 0.0
    %2395 = vmatpush1.msra.mxu0 0.0
    %2396 = vmatprep.subr.mxu0 0.0
    %2397 = vmatpush1.msra.mxu0 0.0
    %2398 = vmatprep.subr.mxu0 0.0
    %2399 = vmatpush1.msra.mxu0 0.0
    %2400 = vmatprep.subr.mxu0 0.0
    %2401 = vmatpush1.msra.mxu0 0.0
    %2402 = vmatprep.subr.mxu0 0.0
    %2403 = vmatpush1.msra.mxu0 0.0
    %2404 = vmatprep.subr.mxu0 0.0
    %2405 = vmatpush1.msra.mxu0 0.0
    %2406 = vmatprep.subr.mxu0 0.0
    %2407 = vmatpush1.msra.mxu0 0.0
    %2408 = vmatprep.subr.mxu0 0.0
    %2409 = vmatpush1.msra.mxu0 0.0
    %2410 = vmatprep.subr.mxu0 0.0
    %2411 = vmatpush1.msra.mxu0 0.0
    %2412 = vmatprep.subr.mxu0 0.0
    %2413 = vmatpush1.msra.mxu0 0.0
    %2414 = vmatprep.subr.mxu0 0.0
    %2415 = vmatpush1.msra.mxu0 0.0
    %2416 = vmatprep.subr.mxu0 0.0
    %2417 = vmatpush1.msra.mxu0 0.0
    %2418 = vmatprep.subr.mxu0 0.0
    %2419 = vmatpush1.msra.mxu0 0.0
    %2420 = vmatprep.subr.mxu0 0.0
    %2421 = vmatpush1.msra.mxu0 0.0
    %2422 = vmatprep.subr.mxu0 0.0
    %2423 = vmatpush1.msra.mxu0 0.0
    %2424 = vmatprep.subr.mxu0 0.0
    %2425 = vmatpush1.msra.mxu0 0.0
    %2426 = vmatprep.subr.mxu0 0.0
    %2427 = vmatpush1.msra.mxu0 0.0
    %2428 = vmatprep.subr.mxu0 0.0
    %2429 = vmatpush1.msra.mxu0 0.0
    %2430 = vmatprep.mubr.f32.mxu0 0.0
    %2431 = vmatmul.mubr.f32.gmra.mrb[0].mxu0 %v2364
    %v2432 = vpop.f32.mrb[0].mxu0
    %v2433 = vadd.f32 1e-05, %v2432
    %v2434 = vpop.f32.mrb[0].mxu0
    %2435 = vdwg.mxu0
    %v2436 = vrsqrt.pop %v2433
    %v2437 = vmul.f32 %v2361, %v2436
    %v2438 = vmul.f32 %v2437, %v2285
    %v2439 = vadd.f32 %v2438, %v2286
    %v2440 = vld [vmem:[%s12] sm:$0xff]
    %v2441 = vld [vmem:[%s12 + $0x8] sm:$0xff]
    %v2442 = vld [vmem:[%s12 + $0x10] sm:$0xff]
    %v2443 = vld [vmem:[%s12 + $0x18] sm:$0xff]
    %v2444 = vld [vmem:[%s12 + $0x20] sm:$0xff]
    %v2445 = vld [vmem:[%s12 + $0x28] sm:$0xff]
    %v2446 = vld [vmem:[%s12 + $0x30] sm:$0xff]
    %v2447 = vld [vmem:[%s12 + $0x38] sm:$0xff]
    %v2448 = vld [vmem:[#allocation20 + $0x43] ss:$0 sm:$0xff]
    %v2450 = vsel %vm2287, %v2439, 0
    %2452 = vmatprep.subr.mxu0 0.0
    %2453 = vmatpush1.msra.mxu0 %v2440
    %2454 = vmatprep.subr.mxu0 0.0
    %2455 = vmatpush1.msra.mxu0 %v2441
    %2456 = vmatprep.subr.mxu0 0.0
    %2457 = vmatpush1.msra.mxu0 %v2442
    %2458 = vmatprep.subr.mxu0 0.0
    %2459 = vmatpush1.msra.mxu0 %v2443
    %2460 = vmatprep.subr.mxu0 0.0
    %2461 = vmatpush1.msra.mxu0 %v2444
    %2462 = vmatprep.subr.mxu0 0.0
    %2463 = vmatpush1.msra.mxu0 %v2445
    %2464 = vmatprep.subr.mxu0 0.0
    %2465 = vmatpush1.msra.mxu0 %v2446
    %2466 = vmatprep.subr.mxu0 0.0
    %2467 = vmatpush1.msra.mxu0 %v2447
    %2468 = vmatprep.subr.mxu0 0.0
    %2469 = vmatpush1.msra.mxu0 0.0
    %2470 = vmatprep.subr.mxu0 0.0
    %2471 = vmatpush1.msra.mxu0 0.0
    %2472 = vmatprep.subr.mxu0 0.0
    %2473 = vmatpush1.msra.mxu0 0.0
    %2474 = vmatprep.subr.mxu0 0.0
    %2475 = vmatpush1.msra.mxu0 0.0
    %2476 = vmatprep.subr.mxu0 0.0
    %2477 = vmatpush1.msra.mxu0 0.0
    %2478 = vmatprep.subr.mxu0 0.0
    %2479 = vmatpush1.msra.mxu0 0.0
    %2480 = vmatprep.subr.mxu0 0.0
    %2481 = vmatpush1.msra.mxu0 0.0
    %2482 = vmatprep.subr.mxu0 0.0
    %2483 = vmatpush1.msra.mxu0 0.0
    %2484 = vmatprep.subr.mxu0 0.0
    %2485 = vmatpush1.msra.mxu0 0.0
    %2486 = vmatprep.subr.mxu0 0.0
    %2487 = vmatpush1.msra.mxu0 0.0
    %2488 = vmatprep.subr.mxu0 0.0
    %2489 = vmatpush1.msra.mxu0 0.0
    %2490 = vmatprep.subr.mxu0 0.0
    %2491 = vmatpush1.msra.mxu0 0.0
    %2492 = vmatprep.subr.mxu0 0.0
    %2493 = vmatpush1.msra.mxu0 0.0
    %2494 = vmatprep.subr.mxu0 0.0
    %2495 = vmatpush1.msra.mxu0 0.0
    %2496 = vmatprep.subr.mxu0 0.0
    %2497 = vmatpush1.msra.mxu0 0.0
    %2498 = vmatprep.subr.mxu0 0.0
    %2499 = vmatpush1.msra.mxu0 0.0
    %2500 = vmatprep.subr.mxu0 0.0
    %2501 = vmatpush1.msra.mxu0 0.0
    %2502 = vmatprep.subr.mxu0 0.0
    %2503 = vmatpush1.msra.mxu0 0.0
    %2504 = vmatprep.subr.mxu0 0.0
    %2505 = vmatpush1.msra.mxu0 0.0
    %2506 = vmatprep.subr.mxu0 0.0
    %2507 = vmatpush1.msra.mxu0 0.0
    %2508 = vmatprep.subr.mxu0 0.0
    %2509 = vmatpush1.msra.mxu0 0.0
    %2510 = vmatprep.subr.mxu0 0.0
    %2511 = vmatpush1.msra.mxu0 0.0
    %2512 = vmatprep.subr.mxu0 0.0
    %2513 = vmatpush1.msra.mxu0 0.0
    %2514 = vmatprep.subr.mxu0 0.0
    %2515 = vmatpush1.msra.mxu0 0.0
    %2516 = vmatprep.mubr.f32.mxu0 0.0
    %2517 = vmatmul.mubr.f32.gmra.mrb[0].mxu0 %v2450
    %v2518 = vpop.f32.mrb[0].mxu0
    %v2519 = vadd.f32 %v2448, %v2518
    %v2520 = vpop.f32.mrb[0].mxu0
    %2521 = vdwg.mxu0
    %v2522 = vmul.f32 %v2519, 0.5
    %v2523 = vmul.f32 %v2519, 0.70710677
    %v2524 = verf.f32.pop %v2523
    %v2525 = vadd.f32 %v2524, 1.0
    %v2526 = vmul.f32 %v2522, %v2525
    %v2527 = vld [vmem:[%s13] sm:$0xff]
    %v2528 = vld [vmem:[%s13 + $0x8] sm:$0xff]
    %v2529 = vld [vmem:[%s13 + $0x10] sm:$0xff]
    %v2530 = vld [vmem:[%s13 + $0x18] sm:$0xff]
    %v2531 = vld [vmem:[%s13 + $0x20] sm:$0xff]
    %v2532 = vld [vmem:[%s13 + $0x28] sm:$0xff]
    %v2533 = vld [vmem:[%s13 + $0x30] sm:$0xff]
    %v2534 = vld [vmem:[%s13 + $0x38] sm:$0xff]
    %v2535 = vld [vmem:[%s13 + $0x40] sm:$0xff]
    %v2536 = vld [vmem:[%s13 + $0x48] sm:$0xff]
    %v2537 = vld [vmem:[%s13 + $0x50] sm:$0xff]
    %v2538 = vld [vmem:[%s13 + $0x58] sm:$0xff]
    %v2539 = vld [vmem:[%s13 + $0x60] sm:$0xff]
    %v2540 = vld [vmem:[%s13 + $0x68] sm:$0xff]
    %v2541 = vld [vmem:[%s13 + $0x70] sm:$0xff]
    %v2542 = vld [vmem:[%s13 + $0x78] sm:$0xff]
    %2543 = vmatprep.subr.mxu0 0.0
    %2544 = vmatpush1.msra.mxu0 %v2527
    %2545 = vmatprep.subr.mxu0 0.0
    %2546 = vmatpush1.msra.mxu0 %v2528
    %2547 = vmatprep.subr.mxu0 0.0
    %2548 = vmatpush1.msra.mxu0 %v2529
    %2549 = vmatprep.subr.mxu0 0.0
    %2550 = vmatpush1.msra.mxu0 %v2530
    %2551 = vmatprep.subr.mxu0 0.0
    %2552 = vmatpush1.msra.mxu0 %v2531
    %2553 = vmatprep.subr.mxu0 0.0
    %2554 = vmatpush1.msra.mxu0 %v2532
    %2555 = vmatprep.subr.mxu0 0.0
    %2556 = vmatpush1.msra.mxu0 %v2533
    %2557 = vmatprep.subr.mxu0 0.0
    %2558 = vmatpush1.msra.mxu0 %v2534
    %2559 = vmatprep.subr.mxu0 0.0
    %2560 = vmatpush1.msra.mxu0 %v2535
    %2561 = vmatprep.subr.mxu0 0.0
    %2562 = vmatpush1.msra.mxu0 %v2536
    %2563 = vmatprep.subr.mxu0 0.0
    %2564 = vmatpush1.msra.mxu0 %v2537
    %2565 = vmatprep.subr.mxu0 0.0
    %2566 = vmatpush1.msra.mxu0 %v2538
    %2567 = vmatprep.subr.mxu0 0.0
    %2568 = vmatpush1.msra.mxu0 %v2539
    %2569 = vmatprep.subr.mxu0 0.0
    %2570 = vmatpush1.msra.mxu0 %v2540
    %2571 = vmatprep.subr.mxu0 0.0
    %2572 = vmatpush1.msra.mxu0 %v2541
    %2573 = vmatprep.subr.mxu0 0.0
    %2574 = vmatpush1.msra.mxu0 %v2542
    %2575 = vmatprep.subr.mxu0 0.0
    %2576 = vmatpush1.msra.mxu0 0.0
    %2577 = vmatprep.subr.mxu0 0.0
    %2578 = vmatpush1.msra.mxu0 0.0
    %2579 = vmatprep.subr.mxu0 0.0
    %2580 = vmatpush1.msra.mxu0 0.0
    %2581 = vmatprep.subr.mxu0 0.0
    %2582 = vmatpush1.msra.mxu0 0.0
    %2583 = vmatprep.subr.mxu0 0.0
    %2584 = vmatpush1.msra.mxu0 0.0
    %2585 = vmatprep.subr.mxu0 0.0
    %2586 = vmatpush1.msra.mxu0 0.0
    %2587 = vmatprep.subr.mxu0 0.0
    %2588 = vmatpush1.msra.mxu0 0.0
    %2589 = vmatprep.subr.mxu0 0.0
    %2590 = vmatpush1.msra.mxu0 0.0
    %2591 = vmatprep.subr.mxu0 0.0
    %2592 = vmatpush1.msra.mxu0 0.0
    %2593 = vmatprep.subr.mxu0 0.0
    %2594 = vmatpush1.msra.mxu0 0.0
    %2595 = vmatprep.subr.mxu0 0.0
    %2596 = vmatpush1.msra.mxu0 0.0
    %2597 = vmatprep.subr.mxu0 0.0
    %2598 = vmatpush1.msra.mxu0 0.0
    %2599 = vmatprep.subr.mxu0 0.0
    %2600 = vmatpush1.msra.mxu0 0.0
    %2601 = vmatprep.subr.mxu0 0.0
    %2602 = vmatpush1.msra.mxu0 0.0
    %2603 = vmatprep.subr.mxu0 0.0
    %2604 = vmatpush1.msra.mxu0 0.0
    %2605 = vmatprep.subr.mxu0 0.0
    %2606 = vmatpush1.msra.mxu0 0.0
    %2607 = vmatprep.mubr.f32.mxu0 0.0
    %2608 = vmatmul.mubr.f32.gmra.mrb[0].mxu0 %v2526
    %v2609 = vpop.f32.mrb[0].mxu0
    %v2610 = vadd.f32 0.0, %v2609
    %v2611 = vpop.f32.mrb[0].mxu0
    %2612 = vdwg.mxu0
    %v2613 = vadd.f32 %v2274, %v2610
    %v2614 = vld [vmem:[#allocation20 + $0x44] ss:$0 sm:$0xff]
    %v2615 = vadd.f32 %v2613, %v2614
    %v2616 = vld [vmem:[#allocation20 + $0x45] ss:$0 sm:$0xff]
    %v2617 = vld [vmem:[#allocation20 + $0x46] ss:$0 sm:$0xff]
    %v2619 = vsel %vm2287, %v2615, 0
    %2621 = vmatprep.subr.mxu0 0.0
    %2622 = vmatpush1.msra.mxu0 %v2277
    %2623 = vmatprep.subr.mxu0 0.0
    %2624 = vmatpush1.msra.mxu0 %v2278
    %2625 = vmatprep.subr.mxu0 0.0
    %2626 = vmatpush1.msra.mxu0 %v2279
    %2627 = vmatprep.subr.mxu0 0.0
    %2628 = vmatpush1.msra.mxu0 %v2280
    %2629 = vmatprep.subr.mxu0 0.0
    %2630 = vmatpush1.msra.mxu0 %v2281
    %2631 = vmatprep.subr.mxu0 0.0
    %2632 = vmatpush1.msra.mxu0 %v2282
    %2633 = vmatprep.subr.mxu0 0.0
    %2634 = vmatpush1.msra.mxu0 %v2283
    %2635 = vmatprep.subr.mxu0 0.0
    %2636 = vmatpush1.msra.mxu0 %v2284
    %2637 = vmatprep.subr.mxu0 0.0
    %2638 = vmatpush1.msra.mxu0 0.0
    %2639 = vmatprep.subr.mxu0 0.0
    %2640 = vmatpush1.msra.mxu0 0.0
    %2641 = vmatprep.subr.mxu0 0.0
    %2642 = vmatpush1.msra.mxu0 0.0
    %2643 = vmatprep.subr.mxu0 0.0
    %2644 = vmatpush1.msra.mxu0 0.0
    %2645 = vmatprep.subr.mxu0 0.0
    %2646 = vmatpush1.msra.mxu0 0.0
    %2647 = vmatprep.subr.mxu0 0.0
    %2648 = vmatpush1.msra.mxu0 0.0
    %2649 = vmatprep.subr.mxu0 0.0
    %2650 = vmatpush1.msra.mxu0 0.0
    %2651 = vmatprep.subr.mxu0 0.0
    %2652 = vmatpush1.msra.mxu0 0.0
    %2653 = vmatprep.subr.mxu0 0.0
    %2654 = vmatpush1.msra.mxu0 0.0
    %2655 = vmatprep.subr.mxu0 0.0
    %2656 = vmatpush1.msra.mxu0 0.0
    %2657 = vmatprep.subr.mxu0 0.0
    %2658 = vmatpush1.msra.mxu0 0.0
    %2659 = vmatprep.subr.mxu0 0.0
    %2660 = vmatpush1.msra.mxu0 0.0
    %2661 = vmatprep.subr.mxu0 0.0
    %2662 = vmatpush1.msra.mxu0 0.0
    %2663 = vmatprep.subr.mxu0 0.0
    %2664 = vmatpush1.msra.mxu0 0.0
    %2665 = vmatprep.subr.mxu0 0.0
    %2666 = vmatpush1.msra.mxu0 0.0
    %2667 = vmatprep.subr.mxu0 0.0
    %2668 = vmatpush1.msra.mxu0 0.0
    %2669 = vmatprep.subr.mxu0 0.0
    %2670 = vmatpush1.msra.mxu0 0.0
    %2671 = vmatprep.subr.mxu0 0.0
    %2672 = vmatpush1.msra.mxu0 0.0
    %2673 = vmatprep.subr.mxu0 0.0
    %2674 = vmatpush1.msra.mxu0 0.0
    %2675 = vmatprep.subr.mxu0 0.0
    %2676 = vmatpush1.msra.mxu0 0.0
    %2677 = vmatprep.subr.mxu0 0.0
    %2678 = vmatpush1.msra.mxu0 0.0
    %2679 = vmatprep.subr.mxu0 0.0
    %2680 = vmatpush1.msra.mxu0 0.0
    %2681 = vmatprep.subr.mxu0 0.0
    %2682 = vmatpush1.msra.mxu0 0.0
    %2683 = vmatprep.subr.mxu0 0.0
    %2684 = vmatpush1.msra.mxu0 0.0
    %2685 = vmatprep.mubr.f32.mxu0 0.0
    %2686 = vmatmul.mubr.f32.gmra.mrb[0].mxu0 %v2619
    %v2687 = vpop.f32.mrb[0].mxu0
    %v2688 = vadd.f32 0.0, %v2687
    %v2689 = vpop.f32.mrb[0].mxu0
    %2690 = vdwg.mxu0
    %v2691 = vsub.f32 %v2615, %v2688
    %v2692 = vmul.f32 %v2691, %v2691
    %v2694 = vsel %vm2287, %v2692, 0
    %2696 = vmatprep.subr.mxu0 0.0
    %2697 = vmatpush1.msra.mxu0 %v2277
    %2698 = vmatprep.subr.mxu0 0.0
    %2699 = vmatpush1.msra.mxu0 %v2278
    %2700 = vmatprep.subr.mxu0 0.0
    %2701 = vmatpush1.msra.mxu0 %v2279
    %2702 = vmatprep.subr.mxu0 0.0
    %2703 = vmatpush1.msra.mxu0 %v2280
    %2704 = vmatprep.subr.mxu0 0.0
    %2705 = vmatpush1.msra.mxu0 %v2281
    %2706 = vmatprep.subr.mxu0 0.0
    %2707 = vmatpush1.msra.mxu0 %v2282
    %2708 = vmatprep.subr.mxu0 0.0
    %2709 = vmatpush1.msra.mxu0 %v2283
    %2710 = vmatprep.subr.mxu0 0.0
    %2711 = vmatpush1.msra.mxu0 %v2284
    %2712 = vmatprep.subr.mxu0 0.0
    %2713 = vmatpush1.msra.mxu0 0.0
    %2714 = vmatprep.subr.mxu0 0.0
    %2715 = vmatpush1.msra.mxu0 0.0
    %2716 = vmatprep.subr.mxu0 0.0
    %2717 = vmatpush1.msra.mxu0 0.0
    %2718 = vmatprep.subr.mxu0 0.0
    %2719 = vmatpush1.msra.mxu0 0.0
    %2720 = vmatprep.subr.mxu0 0.0
    %2721 = vmatpush1.msra.mxu0 0.0
    %2722 = vmatprep.subr.mxu0 0.0
    %2723 = vmatpush1.msra.mxu0 0.0
    %2724 = vmatprep.subr.mxu0 0.0
    %2725 = vmatpush1.msra.mxu0 0.0
    %2726 = vmatprep.subr.mxu0 0.0
    %2727 = vmatpush1.msra.mxu0 0.0
    %2728 = vmatprep.subr.mxu0 0.0
    %2729 = vmatpush1.msra.mxu0 0.0
    %2730 = vmatprep.subr.mxu0 0.0
    %2731 = vmatpush1.msra.mxu0 0.0
    %2732 = vmatprep.subr.mxu0 0.0
    %2733 = vmatpush1.msra.mxu0 0.0
    %2734 = vmatprep.subr.mxu0 0.0
    %2735 = vmatpush1.msra.mxu0 0.0
    %2736 = vmatprep.subr.mxu0 0.0
    %2737 = vmatpush1.msra.mxu0 0.0
    %2738 = vmatprep.subr.mxu0 0.0
    %2739 = vmatpush1.msra.mxu0 0.0
    %2740 = vmatprep.subr.mxu0 0.0
    %2741 = vmatpush1.msra.mxu0 0.0
    %2742 = vmatprep.subr.mxu0 0.0
    %2743 = vmatpush1.msra.mxu0 0.0
    %2744 = vmatprep.subr.mxu0 0.0
    %2745 = vmatpush1.msra.mxu0 0.0
    %2746 = vmatprep.subr.mxu0 0.0
    %2747 = vmatpush1.msra.mxu0 0.0
    %2748 = vmatprep.subr.mxu0 0.0
    %2749 = vmatpush1.msra.mxu0 0.0
    %2750 = vmatprep.subr.mxu0 0.0
    %2751 = vmatpush1.msra.mxu0 0.0
    %2752 = vmatprep.subr.mxu0 0.0
    %2753 = vmatpush1.msra.mxu0 0.0
    %2754 = vmatprep.subr.mxu0 0.0
    %2755 = vmatpush1.msra.mxu0 0.0
    %2756 = vmatprep.subr.mxu0 0.0
    %2757 = vmatpush1.msra.mxu0 0.0
    %2758 = vmatprep.subr.mxu0 0.0
    %2759 = vmatpush1.msra.mxu0 0.0
    %2760 = vmatprep.mubr.f32.mxu0 0.0
    %2761 = vmatmul.mubr.f32.gmra.mrb[0].mxu0 %v2694
    %v2762 = vpop.f32.mrb[0].mxu0
    %v2763 = vadd.f32 1e-05, %v2762
    %v2764 = vpop.f32.mrb[0].mxu0
    %2765 = vdwg.mxu0
    %v2766 = vrsqrt.pop %v2763
    %v2767 = vmul.f32 %v2691, %v2766
    %v2768 = vmul.f32 %v2767, %v2616
    %v2769 = vadd.f32 %v2768, %v2617
    %v2770 = vld [vmem:[#allocation14] sm:$0xff]
    %v2771 = vld [vmem:[#allocation14 + $0x8] sm:$0xff]
    %v2772 = vld [vmem:[#allocation14 + $0x10] sm:$0xff]
    %v2773 = vld [vmem:[#allocation14 + $0x18] sm:$0xff]
    %v2774 = vld [vmem:[#allocation14 + $0x20] sm:$0xff]
    %v2775 = vld [vmem:[#allocation14 + $0x28] sm:$0xff]
    %v2776 = vld [vmem:[#allocation14 + $0x30] sm:$0xff]
    %v2777 = vld [vmem:[#allocation14 + $0x38] sm:$0xff]
    %v2778 = vld [vmem:[#allocation20 + $0x47] ss:$0 sm:$0xff]
    %v2780 = vsel %vm2287, %v2769, 0
    %2782 = vmatprep.subr.mxu0 0.0
    %2783 = vmatpush1.msra.mxu0 %v2770
    %2784 = vmatprep.subr.mxu0 0.0
    %2785 = vmatpush1.msra.mxu0 %v2771
    %2786 = vmatprep.subr.mxu0 0.0
    %2787 = vmatpush1.msra.mxu0 %v2772
    %2788 = vmatprep.subr.mxu0 0.0
    %2789 = vmatpush1.msra.mxu0 %v2773
    %2790 = vmatprep.subr.mxu0 0.0
    %2791 = vmatpush1.msra.mxu0 %v2774
    %2792 = vmatprep.subr.mxu0 0.0
    %2793 = vmatpush1.msra.mxu0 %v2775
    %2794 = vmatprep.subr.mxu0 0.0
    %2795 = vmatpush1.msra.mxu0 %v2776
    %2796 = vmatprep.subr.mxu0 0.0
    %2797 = vmatpush1.msra.mxu0 %v2777
    %2798 = vmatprep.subr.mxu0 0.0
    %2799 = vmatpush1.msra.mxu0 0.0
    %2800 = vmatprep.subr.mxu0 0.0
    %2801 = vmatpush1.msra.mxu0 0.0
    %2802 = vmatprep.subr.mxu0 0.0
    %2803 = vmatpush1.msra.mxu0 0.0
    %2804 = vmatprep.subr.mxu0 0.0
    %2805 = vmatpush1.msra.mxu0 0.0
    %2806 = vmatprep.subr.mxu0 0.0
    %2807 = vmatpush1.msra.mxu0 0.0
    %2808 = vmatprep.subr.mxu0 0.0
    %2809 = vmatpush1.msra.mxu0 0.0
    %2810 = vmatprep.subr.mxu0 0.0
    %2811 = vmatpush1.msra.mxu0 0.0
    %2812 = vmatprep.subr.mxu0 0.0
    %2813 = vmatpush1.msra.mxu0 0.0
    %2814 = vmatprep.subr.mxu0 0.0
    %2815 = vmatpush1.msra.mxu0 0.0
    %2816 = vmatprep.subr.mxu0 0.0
    %2817 = vmatpush1.msra.mxu0 0.0
    %2818 = vmatprep.subr.mxu0 0.0
    %2819 = vmatpush1.msra.mxu0 0.0
    %2820 = vmatprep.subr.mxu0 0.0
    %2821 = vmatpush1.msra.mxu0 0.0
    %2822 = vmatprep.subr.mxu0 0.0
    %2823 = vmatpush1.msra.mxu0 0.0
    %2824 = vmatprep.subr.mxu0 0.0
    %2825 = vmatpush1.msra.mxu0 0.0
    %2826 = vmatprep.subr.mxu0 0.0
    %2827 = vmatpush1.msra.mxu0 0.0
    %2828 = vmatprep.subr.mxu0 0.0
    %2829 = vmatpush1.msra.mxu0 0.0
    %2830 = vmatprep.subr.mxu0 0.0
    %2831 = vmatpush1.msra.mxu0 0.0
    %2832 = vmatprep.subr.mxu0 0.0
    %2833 = vmatpush1.msra.mxu0 0.0
    %2834 = vmatprep.subr.mxu0 0.0
    %2835 = vmatpush1.msra.mxu0 0.0
    %2836 = vmatprep.subr.mxu0 0.0
    %2837 = vmatpush1.msra.mxu0 0.0
    %2838 = vmatprep.subr.mxu0 0.0
    %2839 = vmatpush1.msra.mxu0 0.0
    %2840 = vmatprep.subr.mxu0 0.0
    %2841 = vmatpush1.msra.mxu0 0.0
    %2842 = vmatprep.subr.mxu0 0.0
    %2843 = vmatpush1.msra.mxu0 0.0
    %2844 = vmatprep.subr.mxu0 0.0
    %2845 = vmatpush1.msra.mxu0 0.0
    %2846 = vmatprep.mubr.f32.mxu0 0.0
    %2847 = vmatmul.mubr.f32.gmra.mrb[0].mxu0 %v2780
    %v2848 = vpop.f32.mrb[0].mxu0
    %v2849 = vadd.f32 %v2778, %v2848
    %v2850 = vpop.f32.mrb[0].mxu0
    %2851 = vdwg.mxu0
    %v2852 = vmul.f32 %v2849, 0.5
    %v2853 = vmul.f32 %v2849, 0.70710677
    %v2854 = verf.f32.pop %v2853
    %v2855 = vadd.f32 %v2854, 1.0
    %v2856 = vmul.f32 %v2852, %v2855
    %v2857 = vld [vmem:[%s15] sm:$0xff]
    %v2858 = vld [vmem:[%s15 + $0x8] sm:$0xff]
    %v2859 = vld [vmem:[%s15 + $0x10] sm:$0xff]
    %v2860 = vld [vmem:[%s15 + $0x18] sm:$0xff]
    %v2861 = vld [vmem:[%s15 + $0x20] sm:$0xff]
    %v2862 = vld [vmem:[%s15 + $0x28] sm:$0xff]
    %v2863 = vld [vmem:[%s15 + $0x30] sm:$0xff]
    %v2864 = vld [vmem:[%s15 + $0x38] sm:$0xff]
    %v2865 = vld [vmem:[%s15 + $0x40] sm:$0xff]
    %v2866 = vld [vmem:[%s15 + $0x48] sm:$0xff]
    %v2867 = vld [vmem:[%s15 + $0x50] sm:$0xff]
    %v2868 = vld [vmem:[%s15 + $0x58] sm:$0xff]
    %v2869 = vld [vmem:[%s15 + $0x60] sm:$0xff]
    %v2870 = vld [vmem:[%s15 + $0x68] sm:$0xff]
    %v2871 = vld [vmem:[%s15 + $0x70] sm:$0xff]
    %v2872 = vld [vmem:[%s15 + $0x78] sm:$0xff]
    %2873 = vmatprep.subr.mxu0 0.0
    %2874 = vmatpush1.msra.mxu0 %v2857
    %2875 = vmatprep.subr.mxu0 0.0
    %2876 = vmatpush1.msra.mxu0 %v2858
    %2877 = vmatprep.subr.mxu0 0.0
    %2878 = vmatpush1.msra.mxu0 %v2859
    %2879 = vmatprep.subr.mxu0 0.0
    %2880 = vmatpush1.msra.mxu0 %v2860
    %2881 = vmatprep.subr.mxu0 0.0
    %2882 = vmatpush1.msra.mxu0 %v2861
    %2883 = vmatprep.subr.mxu0 0.0
    %2884 = vmatpush1.msra.mxu0 %v2862
    %2885 = vmatprep.subr.mxu0 0.0
    %2886 = vmatpush1.msra.mxu0 %v2863
    %2887 = vmatprep.subr.mxu0 0.0
    %2888 = vmatpush1.msra.mxu0 %v2864
    %2889 = vmatprep.subr.mxu0 0.0
    %2890 = vmatpush1.msra.mxu0 %v2865
    %2891 = vmatprep.subr.mxu0 0.0
    %2892 = vmatpush1.msra.mxu0 %v2866
    %2893 = vmatprep.subr.mxu0 0.0
    %2894 = vmatpush1.msra.mxu0 %v2867
    %2895 = vmatprep.subr.mxu0 0.0
    %2896 = vmatpush1.msra.mxu0 %v2868
    %2897 = vmatprep.subr.mxu0 0.0
    %2898 = vmatpush1.msra.mxu0 %v2869
    %2899 = vmatprep.subr.mxu0 0.0
    %2900 = vmatpush1.msra.mxu0 %v2870
    %2901 = vmatprep.subr.mxu0 0.0
    %2902 = vmatpush1.msra.mxu0 %v2871
    %2903 = vmatprep.subr.mxu0 0.0
    %2904 = vmatpush1.msra.mxu0 %v2872
    %2905 = vmatprep.subr.mxu0 0.0
    %2906 = vmatpush1.msra.mxu0 0.0
    %2907 = vmatprep.subr.mxu0 0.0
    %2908 = vmatpush1.msra.mxu0 0.0
    %2909 = vmatprep.subr.mxu0 0.0
    %2910 = vmatpush1.msra.mxu0 0.0
    %2911 = vmatprep.subr.mxu0 0.0
    %2912 = vmatpush1.msra.mxu0 0.0
    %2913 = vmatprep.subr.mxu0 0.0
    %2914 = vmatpush1.msra.mxu0 0.0
    %2915 = vmatprep.subr.mxu0 0.0
    %2916 = vmatpush1.msra.mxu0 0.0
    %2917 = vmatprep.subr.mxu0 0.0
    %2918 = vmatpush1.msra.mxu0 0.0
    %2919 = vmatprep.subr.mxu0 0.0
    %2920 = vmatpush1.msra.mxu0 0.0
    %2921 = vmatprep.subr.mxu0 0.0
    %2922 = vmatpush1.msra.mxu0 0.0
    %2923 = vmatprep.subr.mxu0 0.0
    %2924 = vmatpush1.msra.mxu0 0.0
    %2925 = vmatprep.subr.mxu0 0.0
    %2926 = vmatpush1.msra.mxu0 0.0
    %2927 = vmatprep.subr.mxu0 0.0
    %2928 = vmatpush1.msra.mxu0 0.0
    %2929 = vmatprep.subr.mxu0 0.0
    %2930 = vmatpush1.msra.mxu0 0.0
    %2931 = vmatprep.subr.mxu0 0.0
    %2932 = vmatpush1.msra.mxu0 0.0
    %2933 = vmatprep.subr.mxu0 0.0
    %2934 = vmatpush1.msra.mxu0 0.0
    %2935 = vmatprep.subr.mxu0 0.0
    %2936 = vmatpush1.msra.mxu0 0.0
    %2937 = vmatprep.mubr.f32.mxu0 0.0
    %2938 = vmatmul.mubr.f32.gmra.mrb[0].mxu0 %v2856
    %v2939 = vpop.f32.mrb[0].mxu0
    %v2940 = vadd.f32 0.0, %v2939
    %v2941 = vpop.f32.mrb[0].mxu0
    %2942 = vdwg.mxu0
    %v2943 = vadd.f32 %v2615, %v2940
    %v2944 = vld [vmem:[#allocation20 + $0x60] ss:$0 sm:$0xff]
    %v2945 = vadd.f32 %v2943, %v2944
    %v2946 = vld [vmem:[#allocation20 + $0x61] ss:$0 sm:$0xff]
    %v2947 = vld [vmem:[#allocation20 + $0x62] ss:$0 sm:$0xff]
    %v2949 = vsel %vm2287, %v2945, 0
    %2951 = vmatprep.subr.mxu0 0.0
    %2952 = vmatpush1.msra.mxu0 %v2277
    %2953 = vmatprep.subr.mxu0 0.0
    %2954 = vmatpush1.msra.mxu0 %v2278
    %2955 = vmatprep.subr.mxu0 0.0
    %2956 = vmatpush1.msra.mxu0 %v2279
    %2957 = vmatprep.subr.mxu0 0.0
    %2958 = vmatpush1.msra.mxu0 %v2280
    %2959 = vmatprep.subr.mxu0 0.0
    %2960 = vmatpush1.msra.mxu0 %v2281
    %2961 = vmatprep.subr.mxu0 0.0
    %2962 = vmatpush1.msra.mxu0 %v2282
    %2963 = vmatprep.subr.mxu0 0.0
    %2964 = vmatpush1.msra.mxu0 %v2283
    %2965 = vmatprep.subr.mxu0 0.0
    %2966 = vmatpush1.msra.mxu0 %v2284
    %2967 = vmatprep.subr.mxu0 0.0
    %2968 = vmatpush1.msra.mxu0 0.0
    %2969 = vmatprep.subr.mxu0 0.0
    %2970 = vmatpush1.msra.mxu0 0.0
    %2971 = vmatprep.subr.mxu0 0.0
    %2972 = vmatpush1.msra.mxu0 0.0
    %2973 = vmatprep.subr.mxu0 0.0
    %2974 = vmatpush1.msra.mxu0 0.0
    %2975 = vmatprep.subr.mxu0 0.0
    %2976 = vmatpush1.msra.mxu0 0.0
    %2977 = vmatprep.subr.mxu0 0.0
    %2978 = vmatpush1.msra.mxu0 0.0
    %2979 = vmatprep.subr.mxu0 0.0
    %2980 = vmatpush1.msra.mxu0 0.0
    %2981 = vmatprep.subr.mxu0 0.0
    %2982 = vmatpush1.msra.mxu0 0.0
    %2983 = vmatprep.subr.mxu0 0.0
    %2984 = vmatpush1.msra.mxu0 0.0
    %2985 = vmatprep.subr.mxu0 0.0
    %2986 = vmatpush1.msra.mxu0 0.0
    %2987 = vmatprep.subr.mxu0 0.0
    %2988 = vmatpush1.msra.mxu0 0.0
    %2989 = vmatprep.subr.mxu0 0.0
    %2990 = vmatpush1.msra.mxu0 0.0
    %2991 = vmatprep.subr.mxu0 0.0
    %2992 = vmatpush1.msra.mxu0 0.0
    %2993 = vmatprep.subr.mxu0 0.0
    %2994 = vmatpush1.msra.mxu0 0.0
    %2995 = vmatprep.subr.mxu0 0.0
    %2996 = vmatpush1.msra.mxu0 0.0
    %2997 = vmatprep.subr.mxu0 0.0
    %2998 = vmatpush1.msra.mxu0 0.0
    %2999 = vmatprep.subr.mxu0 0.0
    %3000 = vmatpush1.msra.mxu0 0.0
    %3001 = vmatprep.subr.mxu0 0.0
    %3002 = vmatpush1.msra.mxu0 0.0
    %3003 = vmatprep.subr.mxu0 0.0
    %3004 = vmatpush1.msra.mxu0 0.0
    %3005 = vmatprep.subr.mxu0 0.0
    %3006 = vmatpush1.msra.mxu0 0.0
    %3007 = vmatprep.subr.mxu0 0.0
    %3008 = vmatpush1.msra.mxu0 0.0
    %3009 = vmatprep.subr.mxu0 0.0
    %3010 = vmatpush1.msra.mxu0 0.0
    %3011 = vmatprep.subr.mxu0 0.0
    %3012 = vmatpush1.msra.mxu0 0.0
    %3013 = vmatprep.subr.mxu0 0.0
    %3014 = vmatpush1.msra.mxu0 0.0
    %3015 = vmatprep.mubr.f32.mxu0 0.0
    %3016 = vmatmul.mubr.f32.gmra.mrb[0].mxu0 %v2949
    %v3017 = vpop.f32.mrb[0].mxu0
    %v3018 = vadd.f32 0.0, %v3017
    %v3019 = vpop.f32.mrb[0].mxu0
    %3020 = vdwg.mxu0
    %v3021 = vsub.f32 %v2945, %v3018
    %v3022 = vmul.f32 %v3021, %v3021
    %v3024 = vsel %vm2287, %v3022, 0
    %3026 = vmatprep.subr.mxu0 0.0
    %3027 = vmatpush1.msra.mxu0 %v2277
    %3028 = vmatprep.subr.mxu0 0.0
    %3029 = vmatpush1.msra.mxu0 %v2278
    %3030 = vmatprep.subr.mxu0 0.0
    %3031 = vmatpush1.msra.mxu0 %v2279
    %3032 = vmatprep.subr.mxu0 0.0
    %3033 = vmatpush1.msra.mxu0 %v2280
    %3034 = vmatprep.subr.mxu0 0.0
    %3035 = vmatpush1.msra.mxu0 %v2281
    %3036 = vmatprep.subr.mxu0 0.0
    %3037 = vmatpush1.msra.mxu0 %v2282
    %3038 = vmatprep.subr.mxu0 0.0
    %3039 = vmatpush1.msra.mxu0 %v2283
    %3040 = vmatprep.subr.mxu0 0.0
    %3041 = vmatpush1.msra.mxu0 %v2284
    %3042 = vmatprep.subr.mxu0 0.0
    %3043 = vmatpush1.msra.mxu0 0.0
    %3044 = vmatprep.subr.mxu0 0.0
    %3045 = vmatpush1.msra.mxu0 0.0
    %3046 = vmatprep.subr.mxu0 0.0
    %3047 = vmatpush1.msra.mxu0 0.0
    %3048 = vmatprep.subr.mxu0 0.0
    %3049 = vmatpush1.msra.mxu0 0.0
    %3050 = vmatprep.subr.mxu0 0.0
    %3051 = vmatpush1.msra.mxu0 0.0
    %3052 = vmatprep.subr.mxu0 0.0
    %3053 = vmatpush1.msra.mxu0 0.0
    %3054 = vmatprep.subr.mxu0 0.0
    %3055 = vmatpush1.msra.mxu0 0.0
    %3056 = vmatprep.subr.mxu0 0.0
    %3057 = vmatpush1.msra.mxu0 0.0
    %3058 = vmatprep.subr.mxu0 0.0
    %3059 = vmatpush1.msra.mxu0 0.0
    %3060 = vmatprep.subr.mxu0 0.0
    %3061 = vmatpush1.msra.mxu0 0.0
    %3062 = vmatprep.subr.mxu0 0.0
    %3063 = vmatpush1.msra.mxu0 0.0
    %3064 = vmatprep.subr.mxu0 0.0
    %3065 = vmatpush1.msra.mxu0 0.0
    %3066 = vmatprep.subr.mxu0 0.0
    %3067 = vmatpush1.msra.mxu0 0.0
    %3068 = vmatprep.subr.mxu0 0.0
    %3069 = vmatpush1.msra.mxu0 0.0
    %3070 = vmatprep.subr.mxu0 0.0
    %3071 = vmatpush1.msra.mxu0 0.0
    %3072 = vmatprep.subr.mxu0 0.0
    %3073 = vmatpush1.msra.mxu0 0.0
    %3074 = vmatprep.subr.mxu0 0.0
    %3075 = vmatpush1.msra.mxu0 0.0
    %3076 = vmatprep.subr.mxu0 0.0
    %3077 = vmatpush1.msra.mxu0 0.0
    %3078 = vmatprep.subr.mxu0 0.0
    %3079 = vmatpush1.msra.mxu0 0.0
    %3080 = vmatprep.subr.mxu0 0.0
    %3081 = vmatpush1.msra.mxu0 0.0
    %3082 = vmatprep.subr.mxu0 0.0
    %3083 = vmatpush1.msra.mxu0 0.0
    %3084 = vmatprep.subr.mxu0 0.0
    %3085 = vmatpush1.msra.mxu0 0.0
    %3086 = vmatprep.subr.mxu0 0.0
    %3087 = vmatpush1.msra.mxu0 0.0
    %3088 = vmatprep.subr.mxu0 0.0
    %3089 = vmatpush1.msra.mxu0 0.0
    %3090 = vmatprep.mubr.f32.mxu0 0.0
    %3091 = vmatmul.mubr.f32.gmra.mrb[0].mxu0 %v3024
    %v3092 = vpop.f32.mrb[0].mxu0
    %v3093 = vadd.f32 1e-05, %v3092
    %v3094 = vpop.f32.mrb[0].mxu0
    %3095 = vdwg.mxu0
    %v3096 = vrsqrt.pop %v3093
    %v3097 = vmul.f32 %v3021, %v3096
    %v3098 = vmul.f32 %v3097, %v2946
    %v3099 = vadd.f32 %v3098, %v2947
    %v3100 = vld [vmem:[#allocation16] sm:$0xff]
    %v3101 = vld [vmem:[#allocation16 + $0x8] sm:$0xff]
    %v3102 = vld [vmem:[#allocation16 + $0x10] sm:$0xff]
    %v3103 = vld [vmem:[#allocation16 + $0x18] sm:$0xff]
    %v3104 = vld [vmem:[#allocation16 + $0x20] sm:$0xff]
    %v3105 = vld [vmem:[#allocation16 + $0x28] sm:$0xff]
    %v3106 = vld [vmem:[#allocation16 + $0x30] sm:$0xff]
    %v3107 = vld [vmem:[#allocation16 + $0x38] sm:$0xff]
    %v3108 = vld [vmem:[#allocation16 + $0x40] sm:$0xff]
    %v3109 = vld [vmem:[#allocation16 + $0x48] sm:$0xff]
    %v3110 = vld [vmem:[#allocation16 + $0x50] sm:$0xff]
    %v3111 = vld [vmem:[#allocation16 + $0x58] sm:$0xff]
    %v3112 = vld [vmem:[#allocation16 + $0x60] sm:$0xff]
    %v3113 = vld [vmem:[#allocation16 + $0x68] sm:$0xff]
    %v3114 = vld [vmem:[#allocation16 + $0x70] sm:$0xff]
    %v3115 = vld [vmem:[#allocation16 + $0x78] sm:$0xff]
    %s3116 = scalar_lea.vmem [#allocation20], 99
    %v3117 = vld [vmem:[%s3116] ss:$8 sm:$0x3]
    %v3119 = vlaneseq
    %v3120 = vshrl.u32 %v3119, 7
    %v3121 = vsub.s32 0, %v3120
    %v3122 = vrot.slane %v3117, %v3121
    %v3123 = vlaneseq
    %v3124 = vshrl.u32 %v3123, 7
    %v3125 = vsub.s32 1, %v3124
    %v3126 = vrot.slane %v3117, %v3125
    %v3130 = vsel %vm2287, %v3099, 0
    %3132 = vmatprep.subr.mxu0 %v3101
    %3133 = vmatpush1.msra.mxu0 %v3100
    %3134 = vmatprep.subr.mxu0 %v3103
    %3135 = vmatpush1.msra.mxu0 %v3102
    %3136 = vmatprep.subr.mxu0 %v3105
    %3137 = vmatpush1.msra.mxu0 %v3104
    %3138 = vmatprep.subr.mxu0 %v3107
    %3139 = vmatpush1.msra.mxu0 %v3106
    %3140 = vmatprep.subr.mxu0 %v3109
    %3141 = vmatpush1.msra.mxu0 %v3108
    %3142 = vmatprep.subr.mxu0 %v3111
    %3143 = vmatpush1.msra.mxu0 %v3110
    %3144 = vmatprep.subr.mxu0 %v3113
    %3145 = vmatpush1.msra.mxu0 %v3112
    %3146 = vmatprep.subr.mxu0 %v3115
    %3147 = vmatpush1.msra.mxu0 %v3114
    %3148 = vmatprep.subr.mxu0 0.0
    %3149 = vmatpush1.msra.mxu0 0.0
    %3150 = vmatprep.subr.mxu0 0.0
    %3151 = vmatpush1.msra.mxu0 0.0
    %3152 = vmatprep.subr.mxu0 0.0
    %3153 = vmatpush1.msra.mxu0 0.0
    %3154 = vmatprep.subr.mxu0 0.0
    %3155 = vmatpush1.msra.mxu0 0.0
    %3156 = vmatprep.subr.mxu0 0.0
    %3157 = vmatpush1.msra.mxu0 0.0
    %3158 = vmatprep.subr.mxu0 0.0
    %3159 = vmatpush1.msra.mxu0 0.0
    %3160 = vmatprep.subr.mxu0 0.0
    %3161 = vmatpush1.msra.mxu0 0.0
    %3162 = vmatprep.subr.mxu0 0.0
    %3163 = vmatpush1.msra.mxu0 0.0
    %3164 = vmatprep.subr.mxu0 0.0
    %3165 = vmatpush1.msra.mxu0 0.0
    %3166 = vmatprep.subr.mxu0 0.0
    %3167 = vmatpush1.msra.mxu0 0.0
    %3168 = vmatprep.subr.mxu0 0.0
    %3169 = vmatpush1.msra.mxu0 0.0
    %3170 = vmatprep.subr.mxu0 0.0
    %3171 = vmatpush1.msra.mxu0 0.0
    %3172 = vmatprep.subr.mxu0 0.0
    %3173 = vmatpush1.msra.mxu0 0.0
    %3174 = vmatprep.subr.mxu0 0.0
    %3175 = vmatpush1.msra.mxu0 0.0
    %3176 = vmatprep.subr.mxu0 0.0
    %3177 = vmatpush1.msra.mxu0 0.0
    %3178 = vmatprep.subr.mxu0 0.0
    %3179 = vmatpush1.msra.mxu0 0.0
    %3180 = vmatprep.subr.mxu0 0.0
    %3181 = vmatpush1.msra.mxu0 0.0
    %3182 = vmatprep.subr.mxu0 0.0
    %3183 = vmatpush1.msra.mxu0 0.0
    %3184 = vmatprep.subr.mxu0 0.0
    %3185 = vmatpush1.msra.mxu0 0.0
    %3186 = vmatprep.subr.mxu0 0.0
    %3187 = vmatpush1.msra.mxu0 0.0
    %3188 = vmatprep.subr.mxu0 0.0
    %3189 = vmatpush1.msra.mxu0 0.0
    %3190 = vmatprep.subr.mxu0 0.0
    %3191 = vmatpush1.msra.mxu0 0.0
    %3192 = vmatprep.subr.mxu0 0.0
    %3193 = vmatpush1.msra.mxu0 0.0
    %3194 = vmatprep.subr.mxu0 0.0
    %3195 = vmatpush1.msra.mxu0 0.0
    %3196 = vmatprep.mubr.f32.mxu0 0.0
    %3197 = vmatmul.mubr.f32.gmra.mrb[0].mxu0 %v3130
    %v3198 = vpop.f32.mrb[0].mxu0
    %v3199 = vadd.f32 %v3122, %v3198
    %v3200 = vpop.f32.mrb[0].mxu0
    %v3201 = vadd.f32 %v3126, %v3200
    %3202 = vdwg.mxu0
    %v3203 = vmul.f32 %v3199, 0.5
    %v3204 = vmul.f32 %v3201, 0.5
    %v3205 = vmul.f32 %v3199, 0.70710677
    %v3206 = vmul.f32 %v3201, 0.70710677
    %v3207 = verf.f32.pop %v3205
    %v3208 = verf.f32.pop %v3206
    %v3209 = vadd.f32 %v3207, 1.0
    %v3210 = vadd.f32 %v3208, 1.0
    %v3211 = vmul.f32 %v3203, %v3209
    %v3212 = vmul.f32 %v3204, %v3210
    %v3213 = vld [vmem:[%s17] sm:$0xff]
    %v3214 = vld [vmem:[%s17 + $0x8] sm:$0xff]
    %v3215 = vld [vmem:[%s17 + $0x10] sm:$0xff]
    %v3216 = vld [vmem:[%s17 + $0x18] sm:$0xff]
    %v3217 = vld [vmem:[%s17 + $0x20] sm:$0xff]
    %v3218 = vld [vmem:[%s17 + $0x28] sm:$0xff]
    %v3219 = vld [vmem:[%s17 + $0x30] sm:$0xff]
    %v3220 = vld [vmem:[%s17 + $0x38] sm:$0xff]
    %v3221 = vld [vmem:[%s17 + $0x40] sm:$0xff]
    %v3222 = vld [vmem:[%s17 + $0x48] sm:$0xff]
    %v3223 = vld [vmem:[%s17 + $0x50] sm:$0xff]
    %v3224 = vld [vmem:[%s17 + $0x58] sm:$0xff]
    %v3225 = vld [vmem:[%s17 + $0x60] sm:$0xff]
    %v3226 = vld [vmem:[%s17 + $0x68] sm:$0xff]
    %v3227 = vld [vmem:[%s17 + $0x70] sm:$0xff]
    %v3228 = vld [vmem:[%s17 + $0x78] sm:$0xff]
    %v3229 = vld [vmem:[%s17 + $0x80] sm:$0xff]
    %v3230 = vld [vmem:[%s17 + $0x88] sm:$0xff]
    %v3231 = vld [vmem:[%s17 + $0x90] sm:$0xff]
    %v3232 = vld [vmem:[%s17 + $0x98] sm:$0xff]
    %v3233 = vld [vmem:[%s17 + $0xa0] sm:$0xff]
    %v3234 = vld [vmem:[%s17 + $0xa8] sm:$0xff]
    %v3235 = vld [vmem:[%s17 + $0xb0] sm:$0xff]
    %v3236 = vld [vmem:[%s17 + $0xb8] sm:$0xff]
    %v3237 = vld [vmem:[%s17 + $0xc0] sm:$0xff]
    %v3238 = vld [vmem:[%s17 + $0xc8] sm:$0xff]
    %v3239 = vld [vmem:[%s17 + $0xd0] sm:$0xff]
    %v3240 = vld [vmem:[%s17 + $0xd8] sm:$0xff]
    %v3241 = vld [vmem:[%s17 + $0xe0] sm:$0xff]
    %v3242 = vld [vmem:[%s17 + $0xe8] sm:$0xff]
    %v3243 = vld [vmem:[%s17 + $0xf0] sm:$0xff]
    %v3244 = vld [vmem:[%s17 + $0xf8] sm:$0xff]
    %3245 = vmatprep.subr.mxu0 0.0
    %3246 = vmatpush1.msra.mxu0 %v3213
    %3247 = vmatprep.subr.mxu0 0.0
    %3248 = vmatpush1.msra.mxu0 %v3214
    %3249 = vmatprep.subr.mxu0 0.0
    %3250 = vmatpush1.msra.mxu0 %v3215
    %3251 = vmatprep.subr.mxu0 0.0
    %3252 = vmatpush1.msra.mxu0 %v3216
    %3253 = vmatprep.subr.mxu0 0.0
    %3254 = vmatpush1.msra.mxu0 %v3217
    %3255 = vmatprep.subr.mxu0 0.0
    %3256 = vmatpush1.msra.mxu0 %v3218
    %3257 = vmatprep.subr.mxu0 0.0
    %3258 = vmatpush1.msra.mxu0 %v3219
    %3259 = vmatprep.subr.mxu0 0.0
    %3260 = vmatpush1.msra.mxu0 %v3220
    %3261 = vmatprep.subr.mxu0 0.0
    %3262 = vmatpush1.msra.mxu0 %v3221
    %3263 = vmatprep.subr.mxu0 0.0
    %3264 = vmatpush1.msra.mxu0 %v3222
    %3265 = vmatprep.subr.mxu0 0.0
    %3266 = vmatpush1.msra.mxu0 %v3223
    %3267 = vmatprep.subr.mxu0 0.0
    %3268 = vmatpush1.msra.mxu0 %v3224
    %3269 = vmatprep.subr.mxu0 0.0
    %3270 = vmatpush1.msra.mxu0 %v3225
    %3271 = vmatprep.subr.mxu0 0.0
    %3272 = vmatpush1.msra.mxu0 %v3226
    %3273 = vmatprep.subr.mxu0 0.0
    %3274 = vmatpush1.msra.mxu0 %v3227
    %3275 = vmatprep.subr.mxu0 0.0
    %3276 = vmatpush1.msra.mxu0 %v3228
    %3277 = vmatprep.subr.mxu0 0.0
    %3278 = vmatpush1.msra.mxu0 %v3229
    %3279 = vmatprep.subr.mxu0 0.0
    %3280 = vmatpush1.msra.mxu0 %v3230
    %3281 = vmatprep.subr.mxu0 0.0
    %3282 = vmatpush1.msra.mxu0 %v3231
    %3283 = vmatprep.subr.mxu0 0.0
    %3284 = vmatpush1.msra.mxu0 %v3232
    %3285 = vmatprep.subr.mxu0 0.0
    %3286 = vmatpush1.msra.mxu0 %v3233
    %3287 = vmatprep.subr.mxu0 0.0
    %3288 = vmatpush1.msra.mxu0 %v3234
    %3289 = vmatprep.subr.mxu0 0.0
    %3290 = vmatpush1.msra.mxu0 %v3235
    %3291 = vmatprep.subr.mxu0 0.0
    %3292 = vmatpush1.msra.mxu0 %v3236
    %3293 = vmatprep.subr.mxu0 0.0
    %3294 = vmatpush1.msra.mxu0 %v3237
    %3295 = vmatprep.subr.mxu0 0.0
    %3296 = vmatpush1.msra.mxu0 %v3238
    %3297 = vmatprep.subr.mxu0 0.0
    %3298 = vmatpush1.msra.mxu0 %v3239
    %3299 = vmatprep.subr.mxu0 0.0
    %3300 = vmatpush1.msra.mxu0 %v3240
    %3301 = vmatprep.subr.mxu0 0.0
    %3302 = vmatpush1.msra.mxu0 %v3241
    %3303 = vmatprep.subr.mxu0 0.0
    %3304 = vmatpush1.msra.mxu0 %v3242
    %3305 = vmatprep.subr.mxu0 0.0
    %3306 = vmatpush1.msra.mxu0 %v3243
    %3307 = vmatprep.subr.mxu0 0.0
    %3308 = vmatpush1.msra.mxu0 %v3244
    %3309 = vmatprep.mubr.f32.mxu0 %v3212
    %3310 = vmatmul.mubr.f32.gmra.mrb[0].mxu0 %v3211
    %v3311 = vpop.f32.mrb[0].mxu0
    %v3312 = vadd.f32 0.0, %v3311
    %v3313 = vpop.f32.mrb[0].mxu0
    %3314 = vdwg.mxu0
    %v3315 = vadd.f32 %v2945, %v3312
    %v3316 = vld [vmem:[#allocation20 + $0x64] ss:$0 sm:$0xff]
    %v3317 = vadd.f32 %v3315, %v3316
    %v3318 = vld [vmem:[#allocation20 + $0x65] ss:$0 sm:$0xff]
    %v3319 = vld [vmem:[#allocation20 + $0x66] ss:$0 sm:$0xff]
    %v3321 = vsel %vm2287, %v3317, 0
    %3323 = vmatprep.subr.mxu0 0.0
    %3324 = vmatpush1.msra.mxu0 %v2277
    %3325 = vmatprep.subr.mxu0 0.0
    %3326 = vmatpush1.msra.mxu0 %v2278
    %3327 = vmatprep.subr.mxu0 0.0
    %3328 = vmatpush1.msra.mxu0 %v2279
    %3329 = vmatprep.subr.mxu0 0.0
    %3330 = vmatpush1.msra.mxu0 %v2280
    %3331 = vmatprep.subr.mxu0 0.0
    %3332 = vmatpush1.msra.mxu0 %v2281
    %3333 = vmatprep.subr.mxu0 0.0
    %3334 = vmatpush1.msra.mxu0 %v2282
    %3335 = vmatprep.subr.mxu0 0.0
    %3336 = vmatpush1.msra.mxu0 %v2283
    %3337 = vmatprep.subr.mxu0 0.0
    %3338 = vmatpush1.msra.mxu0 %v2284
    %3339 = vmatprep.subr.mxu0 0.0
    %3340 = vmatpush1.msra.mxu0 0.0
    %3341 = vmatprep.subr.mxu0 0.0
    %3342 = vmatpush1.msra.mxu0 0.0
    %3343 = vmatprep.subr.mxu0 0.0
    %3344 = vmatpush1.msra.mxu0 0.0
    %3345 = vmatprep.subr.mxu0 0.0
    %3346 = vmatpush1.msra.mxu0 0.0
    %3347 = vmatprep.subr.mxu0 0.0
    %3348 = vmatpush1.msra.mxu0 0.0
    %3349 = vmatprep.subr.mxu0 0.0
    %3350 = vmatpush1.msra.mxu0 0.0
    %3351 = vmatprep.subr.mxu0 0.0
    %3352 = vmatpush1.msra.mxu0 0.0
    %3353 = vmatprep.subr.mxu0 0.0
    %3354 = vmatpush1.msra.mxu0 0.0
    %3355 = vmatprep.subr.mxu0 0.0
    %3356 = vmatpush1.msra.mxu0 0.0
    %3357 = vmatprep.subr.mxu0 0.0
    %3358 = vmatpush1.msra.mxu0 0.0
    %3359 = vmatprep.subr.mxu0 0.0
    %3360 = vmatpush1.msra.mxu0 0.0
    %3361 = vmatprep.subr.mxu0 0.0
    %3362 = vmatpush1.msra.mxu0 0.0
    %3363 = vmatprep.subr.mxu0 0.0
    %3364 = vmatpush1.msra.mxu0 0.0
    %3365 = vmatprep.subr.mxu0 0.0
    %3366 = vmatpush1.msra.mxu0 0.0
    %3367 = vmatprep.subr.mxu0 0.0
    %3368 = vmatpush1.msra.mxu0 0.0
    %3369 = vmatprep.subr.mxu0 0.0
    %3370 = vmatpush1.msra.mxu0 0.0
    %3371 = vmatprep.subr.mxu0 0.0
    %3372 = vmatpush1.msra.mxu0 0.0
    %3373 = vmatprep.subr.mxu0 0.0
    %3374 = vmatpush1.msra.mxu0 0.0
    %3375 = vmatprep.subr.mxu0 0.0
    %3376 = vmatpush1.msra.mxu0 0.0
    %3377 = vmatprep.subr.mxu0 0.0
    %3378 = vmatpush1.msra.mxu0 0.0
    %3379 = vmatprep.subr.mxu0 0.0
    %3380 = vmatpush1.msra.mxu0 0.0
    %3381 = vmatprep.subr.mxu0 0.0
    %3382 = vmatpush1.msra.mxu0 0.0
    %3383 = vmatprep.subr.mxu0 0.0
    %3384 = vmatpush1.msra.mxu0 0.0
    %3385 = vmatprep.subr.mxu0 0.0
    %3386 = vmatpush1.msra.mxu0 0.0
    %3387 = vmatprep.mubr.f32.mxu0 0.0
    %3388 = vmatmul.mubr.f32.gmra.mrb[0].mxu0 %v3321
    %v3389 = vpop.f32.mrb[0].mxu0
    %v3390 = vadd.f32 0.0, %v3389
    %v3391 = vpop.f32.mrb[0].mxu0
    %3392 = vdwg.mxu0
    %v3393 = vsub.f32 %v3317, %v3390
    %v3394 = vmul.f32 %v3393, %v3393
    %v3396 = vsel %vm2287, %v3394, 0
    %3398 = vmatprep.subr.mxu0 0.0
    %3399 = vmatpush1.msra.mxu0 %v2277
    %3400 = vmatprep.subr.mxu0 0.0
    %3401 = vmatpush1.msra.mxu0 %v2278
    %3402 = vmatprep.subr.mxu0 0.0
    %3403 = vmatpush1.msra.mxu0 %v2279
    %3404 = vmatprep.subr.mxu0 0.0
    %3405 = vmatpush1.msra.mxu0 %v2280
    %3406 = vmatprep.subr.mxu0 0.0
    %3407 = vmatpush1.msra.mxu0 %v2281
    %3408 = vmatprep.subr.mxu0 0.0
    %3409 = vmatpush1.msra.mxu0 %v2282
    %3410 = vmatprep.subr.mxu0 0.0
    %3411 = vmatpush1.msra.mxu0 %v2283
    %3412 = vmatprep.subr.mxu0 0.0
    %3413 = vmatpush1.msra.mxu0 %v2284
    %3414 = vmatprep.subr.mxu0 0.0
    %3415 = vmatpush1.msra.mxu0 0.0
    %3416 = vmatprep.subr.mxu0 0.0
    %3417 = vmatpush1.msra.mxu0 0.0
    %3418 = vmatprep.subr.mxu0 0.0
    %3419 = vmatpush1.msra.mxu0 0.0
    %3420 = vmatprep.subr.mxu0 0.0
    %3421 = vmatpush1.msra.mxu0 0.0
    %3422 = vmatprep.subr.mxu0 0.0
    %3423 = vmatpush1.msra.mxu0 0.0
    %3424 = vmatprep.subr.mxu0 0.0
    %3425 = vmatpush1.msra.mxu0 0.0
    %3426 = vmatprep.subr.mxu0 0.0
    %3427 = vmatpush1.msra.mxu0 0.0
    %3428 = vmatprep.subr.mxu0 0.0
    %3429 = vmatpush1.msra.mxu0 0.0
    %3430 = vmatprep.subr.mxu0 0.0
    %3431 = vmatpush1.msra.mxu0 0.0
    %3432 = vmatprep.subr.mxu0 0.0
    %3433 = vmatpush1.msra.mxu0 0.0
    %3434 = vmatprep.subr.mxu0 0.0
    %3435 = vmatpush1.msra.mxu0 0.0
    %3436 = vmatprep.subr.mxu0 0.0
    %3437 = vmatpush1.msra.mxu0 0.0
    %3438 = vmatprep.subr.mxu0 0.0
    %3439 = vmatpush1.msra.mxu0 0.0
    %3440 = vmatprep.subr.mxu0 0.0
    %3441 = vmatpush1.msra.mxu0 0.0
    %3442 = vmatprep.subr.mxu0 0.0
    %3443 = vmatpush1.msra.mxu0 0.0
    %3444 = vmatprep.subr.mxu0 0.0
    %3445 = vmatpush1.msra.mxu0 0.0
    %3446 = vmatprep.subr.mxu0 0.0
    %3447 = vmatpush1.msra.mxu0 0.0
    %3448 = vmatprep.subr.mxu0 0.0
    %3449 = vmatpush1.msra.mxu0 0.0
    %3450 = vmatprep.subr.mxu0 0.0
    %3451 = vmatpush1.msra.mxu0 0.0
    %3452 = vmatprep.subr.mxu0 0.0
    %3453 = vmatpush1.msra.mxu0 0.0
    %3454 = vmatprep.subr.mxu0 0.0
    %3455 = vmatpush1.msra.mxu0 0.0
    %3456 = vmatprep.subr.mxu0 0.0
    %3457 = vmatpush1.msra.mxu0 0.0
    %3458 = vmatprep.subr.mxu0 0.0
    %3459 = vmatpush1.msra.mxu0 0.0
    %3460 = vmatprep.subr.mxu0 0.0
    %3461 = vmatpush1.msra.mxu0 0.0
    %3462 = vmatprep.mubr.f32.mxu0 0.0
    %3463 = vmatmul.mubr.f32.gmra.mrb[0].mxu0 %v3396
    %v3464 = vpop.f32.mrb[0].mxu0
    %v3465 = vadd.f32 1e-05, %v3464
    %v3466 = vpop.f32.mrb[0].mxu0
    %3467 = vdwg.mxu0
    %v3468 = vrsqrt.pop %v3465
    %v3469 = vmul.f32 %v3393, %v3468
    %v3470 = vmul.f32 %v3469, %v3318
    %v3471 = vadd.f32 %v3470, %v3319
    %v3472 = vld [vmem:[#allocation17] sm:$0xff]
    %v3473 = vld [vmem:[#allocation17 + $0x8] sm:$0xff]
    %v3474 = vld [vmem:[#allocation17 + $0x10] sm:$0xff]
    %v3475 = vld [vmem:[#allocation17 + $0x18] sm:$0xff]
    %vm3476 = vcmask 261120
    %v3478 = vsel %vm3476, %v2187, 0
    %3480 = vmatprep.subr.mxu0 0.0
    %3481 = vmatpush1.msra.mxu0 %v3472
    %3482 = vmatprep.subr.mxu0 0.0
    %3483 = vmatpush1.msra.mxu0 %v3473
    %3484 = vmatprep.subr.mxu0 0.0
    %3485 = vmatpush1.msra.mxu0 %v3474
    %3486 = vmatprep.subr.mxu0 0.0
    %3487 = vmatpush1.msra.mxu0 %v3475
    %3488 = vmatprep.subr.mxu0 0.0
    %3489 = vmatpush1.msra.mxu0 0.0
    %3490 = vmatprep.subr.mxu0 0.0
    %3491 = vmatpush1.msra.mxu0 0.0
    %3492 = vmatprep.subr.mxu0 0.0
    %3493 = vmatpush1.msra.mxu0 0.0
    %3494 = vmatprep.subr.mxu0 0.0
    %3495 = vmatpush1.msra.mxu0 0.0
    %3496 = vmatprep.subr.mxu0 0.0
    %3497 = vmatpush1.msra.mxu0 0.0
    %3498 = vmatprep.subr.mxu0 0.0
    %3499 = vmatpush1.msra.mxu0 0.0
    %3500 = vmatprep.subr.mxu0 0.0
    %3501 = vmatpush1.msra.mxu0 0.0
    %3502 = vmatprep.subr.mxu0 0.0
    %3503 = vmatpush1.msra.mxu0 0.0
    %3504 = vmatprep.subr.mxu0 0.0
    %3505 = vmatpush1.msra.mxu0 0.0
    %3506 = vmatprep.subr.mxu0 0.0
    %3507 = vmatpush1.msra.mxu0 0.0
    %3508 = vmatprep.subr.mxu0 0.0
    %3509 = vmatpush1.msra.mxu0 0.0
    %3510 = vmatprep.subr.mxu0 0.0
    %3511 = vmatpush1.msra.mxu0 0.0
    %3512 = vmatprep.subr.mxu0 0.0
    %3513 = vmatpush1.msra.mxu0 0.0
    %3514 = vmatprep.subr.mxu0 0.0
    %3515 = vmatpush1.msra.mxu0 0.0
    %3516 = vmatprep.subr.mxu0 0.0
    %3517 = vmatpush1.msra.mxu0 0.0
    %3518 = vmatprep.subr.mxu0 0.0
    %3519 = vmatpush1.msra.mxu0 0.0
    %3520 = vmatprep.subr.mxu0 0.0
    %3521 = vmatpush1.msra.mxu0 0.0
    %3522 = vmatprep.subr.mxu0 0.0
    %3523 = vmatpush1.msra.mxu0 0.0
    %3524 = vmatprep.subr.mxu0 0.0
    %3525 = vmatpush1.msra.mxu0 0.0
    %3526 = vmatprep.subr.mxu0 0.0
    %3527 = vmatpush1.msra.mxu0 0.0
    %3528 = vmatprep.subr.mxu0 0.0
    %3529 = vmatpush1.msra.mxu0 0.0
    %3530 = vmatprep.subr.mxu0 0.0
    %3531 = vmatpush1.msra.mxu0 0.0
    %3532 = vmatprep.subr.mxu0 0.0
    %3533 = vmatpush1.msra.mxu0 0.0
    %3534 = vmatprep.subr.mxu0 0.0
    %3535 = vmatpush1.msra.mxu0 0.0
    %3536 = vmatprep.subr.mxu0 0.0
    %3537 = vmatpush1.msra.mxu0 0.0
    %3538 = vmatprep.subr.mxu0 0.0
    %3539 = vmatpush1.msra.mxu0 0.0
    %3540 = vmatprep.subr.mxu0 0.0
    %3541 = vmatpush1.msra.mxu0 0.0
    %3542 = vmatprep.subr.mxu0 0.0
    %3543 = vmatpush1.msra.mxu0 0.0
    %3544 = vmatprep.mubr.f32.mxu0 0.0
    %3545 = vmatmul.mubr.f32.gmra.mrb[0].mxu0 %v3478
    %v3546 = vpop.f32.mrb[0].mxu0
    %v3547 = vadd.f32 0.0, %v3546
    %v3548 = vpop.f32.mrb[0].mxu0
    %3549 = vdwg.mxu0
    %v3550 = vmul.f32 %v3547, %v3471
    %v3551 = vld [vmem:[#allocation19] sm:$0xff]
    %v3552 = vld [vmem:[#allocation19 + $0x8] sm:$0xff]
    %v3553 = vld [vmem:[#allocation19 + $0x10] sm:$0xff]
    %v3554 = vld [vmem:[#allocation19 + $0x18] sm:$0xff]
    %3555 = vmatprep.subr.mxu0 0.0
    %3556 = vmatpush1.msra.mxu0 %v3551
    %3557 = vmatprep.subr.mxu0 0.0
    %3558 = vmatpush1.msra.mxu0 %v3552
    %3559 = vmatprep.subr.mxu0 0.0
    %3560 = vmatpush1.msra.mxu0 %v3553
    %3561 = vmatprep.subr.mxu0 0.0
    %3562 = vmatpush1.msra.mxu0 %v3554
    %3563 = vmatprep.subr.mxu0 0.0
    %3564 = vmatpush1.msra.mxu0 0.0
    %3565 = vmatprep.subr.mxu0 0.0
    %3566 = vmatpush1.msra.mxu0 0.0
    %3567 = vmatprep.subr.mxu0 0.0
    %3568 = vmatpush1.msra.mxu0 0.0
    %3569 = vmatprep.subr.mxu0 0.0
    %3570 = vmatpush1.msra.mxu0 0.0
    %3571 = vmatprep.subr.mxu0 0.0
    %3572 = vmatpush1.msra.mxu0 0.0
    %3573 = vmatprep.subr.mxu0 0.0
    %3574 = vmatpush1.msra.mxu0 0.0
    %3575 = vmatprep.subr.mxu0 0.0
    %3576 = vmatpush1.msra.mxu0 0.0
    %3577 = vmatprep.subr.mxu0 0.0
    %3578 = vmatpush1.msra.mxu0 0.0
    %3579 = vmatprep.subr.mxu0 0.0
    %3580 = vmatpush1.msra.mxu0 0.0
    %3581 = vmatprep.subr.mxu0 0.0
    %3582 = vmatpush1.msra.mxu0 0.0
    %3583 = vmatprep.subr.mxu0 0.0
    %3584 = vmatpush1.msra.mxu0 0.0
    %3585 = vmatprep.subr.mxu0 0.0
    %3586 = vmatpush1.msra.mxu0 0.0
    %3587 = vmatprep.subr.mxu0 0.0
    %3588 = vmatpush1.msra.mxu0 0.0
    %3589 = vmatprep.subr.mxu0 0.0
    %3590 = vmatpush1.msra.mxu0 0.0
    %3591 = vmatprep.subr.mxu0 0.0
    %3592 = vmatpush1.msra.mxu0 0.0
    %3593 = vmatprep.subr.mxu0 0.0
    %3594 = vmatpush1.msra.mxu0 0.0
    %3595 = vmatprep.subr.mxu0 0.0
    %3596 = vmatpush1.msra.mxu0 0.0
    %3597 = vmatprep.subr.mxu0 0.0
    %3598 = vmatpush1.msra.mxu0 0.0
    %3599 = vmatprep.subr.mxu0 0.0
    %3600 = vmatpush1.msra.mxu0 0.0
    %3601 = vmatprep.subr.mxu0 0.0
    %3602 = vmatpush1.msra.mxu0 0.0
    %3603 = vmatprep.subr.mxu0 0.0
    %3604 = vmatpush1.msra.mxu0 0.0
    %3605 = vmatprep.subr.mxu0 0.0
    %3606 = vmatpush1.msra.mxu0 0.0
    %3607 = vmatprep.subr.mxu0 0.0
    %3608 = vmatpush1.msra.mxu0 0.0
    %3609 = vmatprep.subr.mxu0 0.0
    %3610 = vmatpush1.msra.mxu0 0.0
    %3611 = vmatprep.subr.mxu0 0.0
    %3612 = vmatpush1.msra.mxu0 0.0
    %3613 = vmatprep.subr.mxu0 0.0
    %3614 = vmatpush1.msra.mxu0 0.0
    %3615 = vmatprep.subr.mxu0 0.0
    %3616 = vmatpush1.msra.mxu0 0.0
    %3617 = vmatprep.subr.mxu0 0.0
    %3618 = vmatpush1.msra.mxu0 0.0
    %3619 = vmatprep.mubr.f32.mxu0 0.0
    %3620 = vmatmul.mubr.f32.gmra.mrb[0].mxu0 %v3478
    %v3621 = vpop.f32.mrb[0].mxu0
    %v3622 = vadd.f32 0.0, %v3621
    %v3623 = vpop.f32.mrb[0].mxu0
    %3624 = vdwg.mxu0
    %v3625 = vadd.f32 %v3550, %v3622
    %v3626 = vld [vmem:[%s20] sm:$0xff]
    %v3627 = vld [vmem:[%s20 + $0x8] sm:$0xff]
    %v3628 = vld [vmem:[%s20 + $0x10] sm:$0xff]
    %v3629 = vld [vmem:[%s20 + $0x18] sm:$0xff]
    %v3630 = vld [vmem:[%s20 + $0x20] sm:$0xff]
    %v3631 = vld [vmem:[%s20 + $0x28] sm:$0xff]
    %v3632 = vld [vmem:[%s20 + $0x30] sm:$0xff]
    %v3633 = vld [vmem:[%s20 + $0x38] sm:$0xff]
    %v3634 = vld [vmem:[#allocation20 + $0x67] ss:$0 sm:$0xff]
    %v3636 = vsel %vm2287, %v3625, 0
    %3638 = vmatprep.subr.mxu0 0.0
    %3639 = vmatpush1.msra.mxu0 %v3626
    %3640 = vmatprep.subr.mxu0 0.0
    %3641 = vmatpush1.msra.mxu0 %v3627
    %3642 = vmatprep.subr.mxu0 0.0
    %3643 = vmatpush1.msra.mxu0 %v3628
    %3644 = vmatprep.subr.mxu0 0.0
    %3645 = vmatpush1.msra.mxu0 %v3629
    %3646 = vmatprep.subr.mxu0 0.0
    %3647 = vmatpush1.msra.mxu0 %v3630
    %3648 = vmatprep.subr.mxu0 0.0
    %3649 = vmatpush1.msra.mxu0 %v3631
    %3650 = vmatprep.subr.mxu0 0.0
    %3651 = vmatpush1.msra.mxu0 %v3632
    %3652 = vmatprep.subr.mxu0 0.0
    %3653 = vmatpush1.msra.mxu0 %v3633
    %3654 = vmatprep.subr.mxu0 0.0
    %3655 = vmatpush1.msra.mxu0 0.0
    %3656 = vmatprep.subr.mxu0 0.0
    %3657 = vmatpush1.msra.mxu0 0.0
    %3658 = vmatprep.subr.mxu0 0.0
    %3659 = vmatpush1.msra.mxu0 0.0
    %3660 = vmatprep.subr.mxu0 0.0
    %3661 = vmatpush1.msra.mxu0 0.0
    %3662 = vmatprep.subr.mxu0 0.0
    %3663 = vmatpush1.msra.mxu0 0.0
    %3664 = vmatprep.subr.mxu0 0.0
    %3665 = vmatpush1.msra.mxu0 0.0
    %3666 = vmatprep.subr.mxu0 0.0
    %3667 = vmatpush1.msra.mxu0 0.0
    %3668 = vmatprep.subr.mxu0 0.0
    %3669 = vmatpush1.msra.mxu0 0.0
    %3670 = vmatprep.subr.mxu0 0.0
    %3671 = vmatpush1.msra.mxu0 0.0
    %3672 = vmatprep.subr.mxu0 0.0
    %3673 = vmatpush1.msra.mxu0 0.0
    %3674 = vmatprep.subr.mxu0 0.0
    %3675 = vmatpush1.msra.mxu0 0.0
    %3676 = vmatprep.subr.mxu0 0.0
    %3677 = vmatpush1.msra.mxu0 0.0
    %3678 = vmatprep.subr.mxu0 0.0
    %3679 = vmatpush1.msra.mxu0 0.0
    %3680 = vmatprep.subr.mxu0 0.0
    %3681 = vmatpush1.msra.mxu0 0.0
    %3682 = vmatprep.subr.mxu0 0.0
    %3683 = vmatpush1.msra.mxu0 0.0
    %3684 = vmatprep.subr.mxu0 0.0
    %3685 = vmatpush1.msra.mxu0 0.0
    %3686 = vmatprep.subr.mxu0 0.0
    %3687 = vmatpush1.msra.mxu0 0.0
    %3688 = vmatprep.subr.mxu0 0.0
    %3689 = vmatpush1.msra.mxu0 0.0
    %3690 = vmatprep.subr.mxu0 0.0
    %3691 = vmatpush1.msra.mxu0 0.0
    %3692 = vmatprep.subr.mxu0 0.0
    %3693 = vmatpush1.msra.mxu0 0.0
    %3694 = vmatprep.subr.mxu0 0.0
    %3695 = vmatpush1.msra.mxu0 0.0
    %3696 = vmatprep.subr.mxu0 0.0
    %3697 = vmatpush1.msra.mxu0 0.0
    %3698 = vmatprep.subr.mxu0 0.0
    %3699 = vmatpush1.msra.mxu0 0.0
    %3700 = vmatprep.subr.mxu0 0.0
    %3701 = vmatpush1.msra.mxu0 0.0
    %3702 = vmatprep.mubr.f32.mxu0 0.0
    %3703 = vmatmul.mubr.f32.gmra.mrb[0].mxu0 %v3636
    %v3704 = vpop.f32.mrb[0].mxu0
    %v3705 = vadd.f32 %v3634, %v3704
    %v3706 = vpop.f32.mrb[0].mxu0
    %3707 = vdwg.mxu0
    %vm3708 = vcmask 74752
    %3709 = vst.msk [vmem:[#allocation22] sm:$0x3] %vm3708, %v3705
    // Predicated region
    $region138: #{forward.1} parent=1 // pred_check
      _
    $region139: #{forward.1} parent=1 // pred_check_branch
      %3711 = sbr.rel (0) target = $region141
    $region140: #{forward.1} parent=1 // pred_region
      %s3713 = ssub.s32 32, 32
      %3714 = vsyncadd [#allocation4], %s3713
      %s3716 = sshll.u32 [#allocation22], 4
      %s3717 = int_to_ptr.vmem [resolvable:$true] %s3716
      %3719 = dma.vmem_to_hbm [thread:$0]  %s3717, 32, %s22, [#allocation4]
    $region141: #{forward.1} parent=1 // pred_fallthru
      _
    // Predicated region
    $region142: #{forward.1} parent=1 // pred_check
      _
    $region143: #{forward.1} parent=1 // pred_check_branch
      %3721 = sbr.rel (0) target = $region145
    $region144: #{forward.1} parent=1 // pred_region
      %3722 = dma.done [#allocation4], 32
    $region145: #{forward.1} parent=1 // pred_fallthru
      _
    %3723 = vsyncpa [#allocation3], 1
    %3724 = vsyncpa [#allocation6], 1
    %3725 = vsyncpa [#allocation9], 1
    %3726 = vsyncpa [#allocation12], 1
    %3727 = vsyncpa [#allocation15], 1
    %3728 = vsyncpa [#allocation18], 1
    %3729 = vsyncpa [#allocation21], 1
    %3730 = vsyncpa [#allocation4], 1

</llo_original>
